<compile_context>
chip_gen: v7x
topology: tpu7x:2x2x1
jax: 0.10.0
libtpu: 0.0.40
codegen_flags: <defaults>
</compile_context>

<pallas_src>
import jax
import jax.numpy as jnp
import numpy as np
from jax.experimental import pallas as pl
from jax.experimental.pallas import tpu as pltpu

BN_EPS = 1e-5


def _pointnet_kernel(x_ref, w1_ref, b1_ref, w2_ref, b2_ref, w3_ref, b3_ref,
                     local_ref, glob_ref):
    # x_ref: (1, tile_n, 3) f32
    # w1:(3,64) f32   b1:(1,64) f32
    # w2:(64,128) bf16   b2:(1,128) f32
    # w3:(128,1024) bf16 b3:(1,1024) f32
    x = x_ref[0]                       # [tn, 3]
    w1 = w1_ref[...]                   # [3, 64]

    # --- mlp64: 3 -> 64 as three VPU broadcast FMAs (K=3 would underfill the MXU) + ReLU
    h1 = (x[:, 0:1] * w1[0:1, :]
          + x[:, 1:2] * w1[1:2, :]
          + x[:, 2:3] * w1[2:3, :]
          + b1_ref[...])
    h1 = jnp.maximum(h1, 0.0)          # [tn, 64] f32

    # local feature, lane-dense: store as a [64, tile_n] slab (unmasked stores,
    # no wrapper-side transpose pass over HBM).
    local_ref[0] = h1.T

    # --- mlp128: bf16 MXU matmul, f32 accumulation, + bias, ReLU
    h2 = jnp.dot(h1.astype(jnp.bfloat16), w2_ref[...],
                 preferred_element_type=jnp.float32) + b2_ref[...]
    h2 = jnp.maximum(h2, 0.0)          # [tn, 128] f32

    # --- mlp1024: bf16 MXU matmul, f32 accumulation, + bias (NO ReLU)
    h3 = jnp.dot(h2.astype(jnp.bfloat16), w3_ref[...],
                 preferred_element_type=jnp.float32) + b3_ref[...]   # [tn, 1024] f32

    # running max over point tiles (reduction axis = grid axis 1, resident output block)
    tile_max = jnp.max(h3, axis=0, keepdims=True)[None]              # [1, 1, 1024]

    @pl.when(pl.program_id(1) == 0)
    def _():
        glob_ref[...] = jnp.full(glob_ref.shape, -jnp.inf, glob_ref.dtype)

    glob_ref[...] = jnp.maximum(glob_ref[...], tile_max)


def pointnet_feat(pointcloud, params, *, tile_n=1024):
    """pointcloud: [B, N, 3] float32.
    Returns (global_feature [B, 1024], None, local_feature [B, 64, N])."""
    B, N, C = pointcloud.shape
    assert C == 3

    # Tile size: multiple of 128, no larger than the (padded) point count.
    tile_n = max(128, (tile_n // 128) * 128)
    tile_n = min(tile_n, pl.cdiv(N, 128) * 128)
    n_pad = pl.cdiv(N, tile_n) * tile_n

    # Edge-pad the point axis: duplicated points do not change the global max,
    # and the local feature is sliced back to N below.
    if n_pad != N:
        pointcloud = jnp.pad(pointcloud, ((0, 0), (0, n_pad - N), (0, 0)), mode="edge")

    w1, b1 = params["w1"], params["b1"]             # (3,64),   (1,64)    f32
    w2 = params["w2"].astype(jnp.bfloat16)          # (64,128)            bf16
    b2 = params["b2"]                               # (1,128)             f32
    w3 = params["w3"].astype(jnp.bfloat16)          # (128,1024)          bf16
    b3 = params["b3"]                               # (1,1024)            f32

    grid = (B, n_pad // tile_n)

    # TODO(synk): on v7x with B == 1, split the point axis into a second "parallel"
    # grid axis (per-core partial maxes) so both TensorCores get work.
    local_cn, glob = pl.pallas_call(
        _pointnet_kernel,
        out_shape=(
            jax.ShapeDtypeStruct((B, 64, n_pad), jnp.float32),   # local feature [B,64,Npad]
            jax.ShapeDtypeStruct((B, 1, 1024), jnp.float32),     # global feature
        ),
        grid_spec=pltpu.PrefetchScalarGridSpec(
            num_scalar_prefetch=0,
            grid=grid,
            in_specs=[
                pl.BlockSpec((1, tile_n, 3), lambda b, n: (b, n, 0)),
                pl.BlockSpec((3, 64), lambda b, n: (0, 0)),
                pl.BlockSpec((1, 64), lambda b, n: (0, 0)),
                pl.BlockSpec((64, 128), lambda b, n: (0, 0)),
                pl.BlockSpec((1, 128), lambda b, n: (0, 0)),
                pl.BlockSpec((128, 1024), lambda b, n: (0, 0)),
                pl.BlockSpec((1, 1024), lambda b, n: (0, 0)),
            ],
            out_specs=(
                pl.BlockSpec((1, 64, tile_n), lambda b, n: (b, 0, n)),
                pl.BlockSpec((1, 1, 1024), lambda b, n: (b, 0, 0)),
            ),
        ),
        compiler_params=pltpu.CompilerParams(
            dimension_semantics=("parallel", "arbitrary"),
            vmem_limit_bytes=32 * 1024 * 1024,   # fits all chips incl. v7x (64 MiB physical)
        ),
    )(pointcloud, w1, b1, w2, b2, w3, b3)

    global_feature = glob.reshape(B, 1024)
    local_feature = local_cn[:, :, :N]           # [B, 64, N] (PyTorch NCW), already lane-dense
    return global_feature, None, local_feature


def _fold_bn(w, b_conv, gamma, beta, mean, var):
    """Fold eval-mode BatchNorm1d into a 1x1 conv.  w: (Cin, Cout)."""
    scale = gamma / jnp.sqrt(var + BN_EPS)                      # (Cout,)
    w_eff = w * scale[None, :]
    b_eff = (b_conv - mean) * scale + beta
    return w_eff.astype(jnp.float32), b_eff.reshape(1, -1).astype(jnp.float32)


def _make_params(key):
    def layer(key, cin, cout):
        ks = jax.random.split(key, 6)
        w = jax.random.normal(ks[0], (cin, cout), jnp.float32) * 0.1
        b = jax.random.normal(ks[1], (cout,), jnp.float32) * 0.1
        gamma = 1.0 + 0.1 * jax.random.normal(ks[2], (cout,), jnp.float32)
        beta = 0.1 * jax.random.normal(ks[3], (cout,), jnp.float32)
        mean = 0.1 * jax.random.normal(ks[4], (cout,), jnp.float32)
        var = jnp.abs(jax.random.normal(ks[5], (cout,), jnp.float32)) + 0.5
        return _fold_bn(w, b, gamma, beta, mean, var)

    k1, k2, k3 = jax.random.split(key, 3)
    w1, b1 = layer(k1, 3, 64)
    w2, b2 = layer(k2, 64, 128)
    w3, b3 = layer(k3, 128, 1024)
    return {"w1": w1, "b1": b1, "w2": w2, "b2": b2, "w3": w3, "b3": b3}


def _reference(pointcloud, p):
    # pure-JAX f32 reference (same folded parameters), for correctness check
    h1 = jnp.maximum(jnp.einsum("bnc,cd->bnd", pointcloud, p["w1"]) + p["b1"], 0.0)
    h2 = jnp.maximum(jnp.einsum("bnc,cd->bnd", h1, p["w2"]) + p["b2"], 0.0)
    h3 = jnp.einsum("bnc,cd->bnd", h2, p["w3"]) + p["b3"]
    glob = jnp.max(h3, axis=1)                                  # [B, 1024]
    local = jnp.transpose(h1, (0, 2, 1))                        # [B, 64, N]
    return glob, local


if __name__ == "__main__":
    key = jax.random.PRNGKey(0)
    kx, kp = jax.random.split(key)

    # N deliberately NOT a multiple of 128 to exercise the edge-padding path.
    B, N = 2, 500
    pointcloud = jax.random.normal(kx, (B, N, 3), jnp.float32)
    params = _make_params(kp)

    global_feature, ft_matrix, local_feature = pointnet_feat(pointcloud, params)
    jax.block_until_ready((global_feature, local_feature))

    ref_glob, ref_local = _reference(pointcloud, params)
    # layer 1 (local feature) stays f32 -> tight tolerance; layers 2/3 run in bf16
    # on the MXU with f32 accumulation -> loosened tolerance for the global feature.
    np.testing.assert_allclose(np.asarray(local_feature), np.asarray(ref_local),
                               rtol=1e-4, atol=1e-4)
    np.testing.assert_allclose(np.asarray(global_feature), np.asarray(ref_glob),
                               rtol=2e-2, atol=2e-2)
    assert global_feature.shape == (B, 1024)
    assert local_feature.shape == (B, 64, N)
    assert ft_matrix is None  # feature_transform=False

    print("KERNEL_OK")
</pallas_src>

<mosaic_0001>
module attributes {stable_mosaic.version = 11 : i64} {
  func.func @_pointnet_kernel(%arg0: i32, %arg1: i32, %arg2: memref<1x512x3xf32, #tpu.memory_space<vmem>>, %arg3: memref<3x64xf32, #tpu.memory_space<vmem>>, %arg4: memref<1x64xf32, #tpu.memory_space<vmem>>, %arg5: memref<64x128xbf16, #tpu.memory_space<vmem>>, %arg6: memref<1x128xf32, #tpu.memory_space<vmem>>, %arg7: memref<128x1024xbf16, #tpu.memory_space<vmem>>, %arg8: memref<1x1024xf32, #tpu.memory_space<vmem>>, %arg9: memref<1x64x512xf32, #tpu.memory_space<vmem>>, %arg10: memref<1x1x1024xf32, #tpu.memory_space<vmem>>) attributes {dimension_semantics = [#tpu.dimension_semantics<parallel>, #tpu.dimension_semantics<arbitrary>], iteration_bounds = array<i64: 2, 1>, scalar_prefetch = 0 : i64, scratch_operands = 0 : i64, tpu.core_type = #tpu.core_type<tc>, window_params = [{transform_indices = @transform_0, window_bounds = array<i64: 1, 512, 3>}, {pipeline_mode = #tpu.pipeline_mode<synchronous>, transform_indices = @transform_1, window_bounds = array<i64: 3, 64>}, {pipeline_mode = #tpu.pipeline_mode<synchronous>, transform_indices = @transform_2, window_bounds = array<i64: 1, 64>}, {pipeline_mode = #tpu.pipeline_mode<synchronous>, transform_indices = @transform_3, window_bounds = array<i64: 64, 128>}, {pipeline_mode = #tpu.pipeline_mode<synchronous>, transform_indices = @transform_4, window_bounds = array<i64: 1, 128>}, {pipeline_mode = #tpu.pipeline_mode<synchronous>, transform_indices = @transform_5, window_bounds = array<i64: 128, 1024>}, {pipeline_mode = #tpu.pipeline_mode<synchronous>, transform_indices = @transform_6, window_bounds = array<i64: 1, 1024>}, {transform_indices = @transform_7, window_bounds = array<i64: 1, 64, 512>}, {transform_indices = @transform_8, window_bounds = array<i64: 1, 1, 1024>}]} {
    %c0 = arith.constant 0 : index
    %c0_0 = arith.constant 0 : index
    %c0_1 = arith.constant 0 : index
    %0 = vector.load %arg2[%c0, %c0_0, %c0_1] : memref<1x512x3xf32, #tpu.memory_space<vmem>>, vector<1x512x3xf32>
    %1 = vector.shape_cast %0 : vector<1x512x3xf32> to vector<512x3xf32>
    %c0_2 = arith.constant 0 : index
    %c0_3 = arith.constant 0 : index
    %2 = vector.load %arg3[%c0_2, %c0_3] : memref<3x64xf32, #tpu.memory_space<vmem>>, vector<3x64xf32>
    %3 = vector.extract_strided_slice %1 {offsets = [0, 0], sizes = [512, 1], strides = [1, 1]} : vector<512x3xf32> to vector<512x1xf32>
    %4 = vector.extract_strided_slice %2 {offsets = [0, 0], sizes = [1, 64], strides = [1, 1]} : vector<3x64xf32> to vector<1x64xf32>
    %5 = vector.broadcast %3 : vector<512x1xf32> to vector<512x64xf32>
    %6 = vector.broadcast %4 : vector<1x64xf32> to vector<512x64xf32>
    %7 = arith.mulf %5, %6 : vector<512x64xf32>
    %8 = vector.extract_strided_slice %1 {offsets = [0, 1], sizes = [512, 1], strides = [1, 1]} : vector<512x3xf32> to vector<512x1xf32>
    %9 = vector.extract_strided_slice %2 {offsets = [1, 0], sizes = [1, 64], strides = [1, 1]} : vector<3x64xf32> to vector<1x64xf32>
    %10 = vector.broadcast %8 : vector<512x1xf32> to vector<512x64xf32>
    %11 = vector.broadcast %9 : vector<1x64xf32> to vector<512x64xf32>
    %12 = arith.mulf %10, %11 : vector<512x64xf32>
    %13 = arith.addf %7, %12 : vector<512x64xf32>
    %14 = vector.extract_strided_slice %1 {offsets = [0, 2], sizes = [512, 1], strides = [1, 1]} : vector<512x3xf32> to vector<512x1xf32>
    %15 = vector.extract_strided_slice %2 {offsets = [2, 0], sizes = [1, 64], strides = [1, 1]} : vector<3x64xf32> to vector<1x64xf32>
    %16 = vector.broadcast %14 : vector<512x1xf32> to vector<512x64xf32>
    %17 = vector.broadcast %15 : vector<1x64xf32> to vector<512x64xf32>
    %18 = arith.mulf %16, %17 : vector<512x64xf32>
    %19 = arith.addf %13, %18 : vector<512x64xf32>
    %c0_4 = arith.constant 0 : index
    %c0_5 = arith.constant 0 : index
    %20 = vector.load %arg4[%c0_4, %c0_5] : memref<1x64xf32, #tpu.memory_space<vmem>>, vector<1x64xf32>
    %21 = vector.broadcast %20 : vector<1x64xf32> to vector<512x64xf32>
    %22 = arith.addf %19, %21 : vector<512x64xf32>
    %cst = arith.constant 0.000000e+00 : f32
    %23 = vector.broadcast %cst : f32 to vector<512x64xf32>
    %24 = arith.maximumf %22, %23 : vector<512x64xf32>
    %25 = tpu.transpose %24, [1, 0] : vector<512x64xf32> -> vector<64x512xf32>
    %c0_6 = arith.constant 0 : index
    %c0_7 = arith.constant 0 : index
    %c0_8 = arith.constant 0 : index
    %26 = vector.load %arg9[%c0_6, %c0_7, %c0_8] : memref<1x64x512xf32, #tpu.memory_space<vmem>>, vector<1x64x512xf32>
    %27 = vector.shape_cast %26 : vector<1x64x512xf32> to vector<64x512xf32>
    %28 = vector.shape_cast %25 : vector<64x512xf32> to vector<1x64x512xf32>
    tpu.vector_store %arg9[%c0_6, %c0_7, %c0_8], %28 {strides = array<i32>} : memref<1x64x512xf32, #tpu.memory_space<vmem>>, vector<1x64x512xf32>,
    %29 = arith.truncf %24 : vector<512x64xf32> to vector<512x64xbf16>
    %c0_9 = arith.constant 0 : index
    %c0_10 = arith.constant 0 : index
    %30 = vector.load %arg5[%c0_9, %c0_10] : memref<64x128xbf16, #tpu.memory_space<vmem>>, vector<64x128xbf16>
    %cst_11 = arith.constant dense<0.000000e+00> : vector<512x128xf32>
    %31 = tpu.matmul %29, %30, %cst_11 {dimension_numbers = #tpu.dot_dimension_numbers<[1], [0], [0], [1], [0, 0, 1, 1], [], []>} : vector<512x64xbf16>, vector<64x128xbf16>, vector<512x128xf32> -> vector<512x128xf32>
    %c0_12 = arith.constant 0 : index
    %c0_13 = arith.constant 0 : index
    %32 = vector.load %arg6[%c0_12, %c0_13] : memref<1x128xf32, #tpu.memory_space<vmem>>, vector<1x128xf32>
    %33 = vector.broadcast %32 : vector<1x128xf32> to vector<512x128xf32>
    %34 = arith.addf %31, %33 : vector<512x128xf32>
    %cst_14 = arith.constant 0.000000e+00 : f32
    %35 = vector.broadcast %cst_14 : f32 to vector<512x128xf32>
    %36 = arith.maximumf %34, %35 : vector<512x128xf32>
    %37 = arith.truncf %36 : vector<512x128xf32> to vector<512x128xbf16>
    %c0_15 = arith.constant 0 : index
    %c0_16 = arith.constant 0 : index
    %38 = vector.load %arg7[%c0_15, %c0_16] : memref<128x1024xbf16, #tpu.memory_space<vmem>>, vector<128x1024xbf16>
    %cst_17 = arith.constant dense<0.000000e+00> : vector<512x1024xf32>
    %39 = tpu.matmul %37, %38, %cst_17 {dimension_numbers = #tpu.dot_dimension_numbers<[1], [0], [0], [1], [0, 0, 1, 1], [], []>} : vector<512x128xbf16>, vector<128x1024xbf16>, vector<512x1024xf32> -> vector<512x1024xf32>
    %c0_18 = arith.constant 0 : index
    %c0_19 = arith.constant 0 : index
    %40 = vector.load %arg8[%c0_18, %c0_19] : memref<1x1024xf32, #tpu.memory_space<vmem>>, vector<1x1024xf32>
    %41 = vector.broadcast %40 : vector<1x1024xf32> to vector<512x1024xf32>
    %42 = arith.addf %39, %41 : vector<512x1024xf32>
    %cst_20 = arith.constant dense<0xFF800000> : vector<1024xf32>
    %43 = vector.multi_reduction <maximumf>, %42, %cst_20 [0] : vector<512x1024xf32> to vector<1024xf32>
    %44 = vector.shape_cast %43 : vector<1024xf32> to vector<1x1024xf32>
    %45 = vector.shape_cast %44 : vector<1x1024xf32> to vector<1x1x1024xf32>
    %c0_i32 = arith.constant 0 : i32
    %46 = arith.cmpi eq, %arg1, %c0_i32 : i32
    %47 = arith.extui %46 : i1 to i32
    %c0_i32_21 = arith.constant 0 : i32
    %48 = arith.cmpi ne, %47, %c0_i32_21 : i32
    scf.if %48 {
      %cst_28 = arith.constant 0xFF800000 : f32
      %52 = vector.broadcast %cst_28 : f32 to vector<1x1x1024xf32>
      %c0_29 = arith.constant 0 : index
      %c0_30 = arith.constant 0 : index
      %c0_31 = arith.constant 0 : index
      %53 = vector.load %arg10[%c0_29, %c0_30, %c0_31] : memref<1x1x1024xf32, #tpu.memory_space<vmem>>, vector<1x1x1024xf32>
      tpu.vector_store %arg10[%c0_29, %c0_30, %c0_31], %52 {strides = array<i32>} : memref<1x1x1024xf32, #tpu.memory_space<vmem>>, vector<1x1x1024xf32>,
    } else {
    }
    %c0_22 = arith.constant 0 : index
    %c0_23 = arith.constant 0 : index
    %c0_24 = arith.constant 0 : index
    %49 = vector.load %arg10[%c0_22, %c0_23, %c0_24] : memref<1x1x1024xf32, #tpu.memory_space<vmem>>, vector<1x1x1024xf32>
    %50 = arith.maximumf %49, %45 : vector<1x1x1024xf32>
    %c0_25 = arith.constant 0 : index
    %c0_26 = arith.constant 0 : index
    %c0_27 = arith.constant 0 : index
    %51 = vector.load %arg10[%c0_25, %c0_26, %c0_27] : memref<1x1x1024xf32, #tpu.memory_space<vmem>>, vector<1x1x1024xf32>
    tpu.vector_store %arg10[%c0_25, %c0_26, %c0_27], %50 {strides = array<i32>} : memref<1x1x1024xf32, #tpu.memory_space<vmem>>, vector<1x1x1024xf32>,
    return
  }
  func.func @transform_0(%arg0: i32, %arg1: i32) -> (i32, i32, i32) {
    %c0_i32 = arith.constant 0 : i32
    %c0_i32_0 = arith.constant 0 : i32
    return %arg0, %arg1, %c0_i32 : i32, i32, i32
  }
  func.func @transform_1(%arg0: i32, %arg1: i32) -> (i32, i32) {
    %c0_i32 = arith.constant 0 : i32
    %c0_i32_0 = arith.constant 0 : i32
    %c0_i32_1 = arith.constant 0 : i32
    return %c0_i32, %c0_i32_0 : i32, i32
  }
  func.func @transform_2(%arg0: i32, %arg1: i32) -> (i32, i32) {
    %c0_i32 = arith.constant 0 : i32
    %c0_i32_0 = arith.constant 0 : i32
    %c0_i32_1 = arith.constant 0 : i32
    return %c0_i32, %c0_i32_0 : i32, i32
  }
  func.func @transform_3(%arg0: i32, %arg1: i32) -> (i32, i32) {
    %c0_i32 = arith.constant 0 : i32
    %c0_i32_0 = arith.constant 0 : i32
    %c0_i32_1 = arith.constant 0 : i32
    return %c0_i32, %c0_i32_0 : i32, i32
  }
  func.func @transform_4(%arg0: i32, %arg1: i32) -> (i32, i32) {
    %c0_i32 = arith.constant 0 : i32
    %c0_i32_0 = arith.constant 0 : i32
    %c0_i32_1 = arith.constant 0 : i32
    return %c0_i32, %c0_i32_0 : i32, i32
  }
  func.func @transform_5(%arg0: i32, %arg1: i32) -> (i32, i32) {
    %c0_i32 = arith.constant 0 : i32
    %c0_i32_0 = arith.constant 0 : i32
    %c0_i32_1 = arith.constant 0 : i32
    return %c0_i32, %c0_i32_0 : i32, i32
  }
  func.func @transform_6(%arg0: i32, %arg1: i32) -> (i32, i32) {
    %c0_i32 = arith.constant 0 : i32
    %c0_i32_0 = arith.constant 0 : i32
    %c0_i32_1 = arith.constant 0 : i32
    return %c0_i32, %c0_i32_0 : i32, i32
  }
  func.func @transform_7(%arg0: i32, %arg1: i32) -> (i32, i32, i32) {
    %c0_i32 = arith.constant 0 : i32
    %c0_i32_0 = arith.constant 0 : i32
    return %arg0, %c0_i32, %arg1 : i32, i32, i32
  }
  func.func @transform_8(%arg0: i32, %arg1: i32) -> (i32, i32, i32) {
    %c0_i32 = arith.constant 0 : i32
    %c0_i32_0 = arith.constant 0 : i32
    %c0_i32_1 = arith.constant 0 : i32
    return %arg0, %c0_i32, %c0_i32_0 : i32, i32, i32
  }
}

</mosaic_0001>

<llo_original>
// kernel: tpu_custom_call.1
$region0: #{tpu_custom_call.1}
  #allocation0 [shape = 'u32[]', space=smem, size = 0x4, offset = 0x4, fixed_abs, tag = 'smem constant byte address 0x4 - core index']
  #allocation1 [shape = 'u32[144,128]{1,0:T(1,128)}', space=vmem, size = 0x12000, scoped, tag = 'internal scratch']
  %s0 = inlined_call_operand.vmem [shape: f32[2,512,3], index: 0, kind: input, shape index: {}]
  %s1 = inlined_call_operand.vmem [shape: f32[3,64], index: 1, kind: input, shape index: {}]
  %s2 = inlined_call_operand.vmem [shape: f32[1,64], index: 2, kind: input, shape index: {}]
  %s3 = inlined_call_operand.vmem [shape: bf16[64,128], index: 3, kind: input, shape index: {}]
  %s4 = inlined_call_operand.vmem [shape: f32[1,128], index: 4, kind: input, shape index: {}]
  %s5 = inlined_call_operand.vmem [shape: bf16[128,1024], index: 5, kind: input, shape index: {}]
  %s6 = inlined_call_operand.vmem [shape: f32[1,1024], index: 6, kind: input, shape index: {}]
  %s7 = inlined_call_operand.hbm [shape: f32[2,64,512], index: 7, kind: output, shape index: {0}]
  %s8 = inlined_call_operand.hbm [shape: f32[2,1,1024], index: 8, kind: output, shape index: {1}]
  %9 = xla_tuple %s7, %s8
  %s10 = sld [smem:[#allocation0]]
  $region73: #{tpu_custom_call.1} parent=0
    _
  %s12 = ssub.s32 1, %s10
  %s13 = scalar_select 0, %s12, %s10
  $region1: #{tpu_custom_call.1} parent=0
    #allocation2 [shape = 'u8[262144]{0}', space=vmem, size = 0x40000, scoped, tag = 'output window, operand 0']
    #allocation3 [shape = 's32[2]{0}', space=sflag, size = 0x8, scoped, tag = 'scoped memory for tpu_custom_call.1']
    #allocation4 [shape = 'u8[8192]{0}', space=vmem, size = 0x2000, scoped, tag = 'output window, operand 1']
    #allocation5 [shape = 's32[2]{0}', space=sflag, size = 0x8, scoped, tag = 'scoped memory for tpu_custom_call.1']
    %14 = vsyncpa [#allocation3], 0
    %s15 = scalar_lea.sflag [#allocation3], 1
    %16 = vsyncpa %s15, 0
    %17 = vsyncpa [#allocation5], 0
    %s18 = scalar_lea.sflag [#allocation5], 1
    %19 = vsyncpa %s18, 0
    loop: start=0, step=1, limit=4
    $region2: #{tpu_custom_call.1} parent=1 // loop_pre_header
      _
    $region3: #{tpu_custom_call.1} parent=1 // loop_header
      %s21 = sphi 0, %s25
      %p22 = scmp.ge.s32.totalorder %s21, 4
      %s28 = sphi 0, %s40
      %s29 = sphi 0, %s36
      %s30 = sphi 0, %s28
      %s31 = sphi 0, %s29
      %s32 = sphi 0, %s30
      %s33 = sphi 0, %s31
      %s45 = sphi 0, %s47
      %s48 = sphi 0, %s45
      %s49 = sphi 0, %s48
      %s65 = sphi 0, %s49
      %s69 = sphi 0, %s69
      %s71 = sphi 0, %s69
      %s72 = sphi 0, %s71
      %s86 = sphi 0, %s72
      %s90 = sphi 0, %s90
      %s92 = sphi 0, %s90
      %s93 = sphi 0, %s92
      %s107 = sphi 0, %s93
      %s111 = sphi 0, %s111
      %s113 = sphi 0, %s111
      %s114 = sphi 0, %s113
      %s128 = sphi 0, %s114
      %s132 = sphi 0, %s132
      %s134 = sphi 0, %s132
      %s135 = sphi 0, %s134
      %s149 = sphi 0, %s135
      %s153 = sphi 0, %s153
      %s155 = sphi 0, %s153
      %s156 = sphi 0, %s155
      %s170 = sphi 0, %s156
      %s174 = sphi 0, %s174
      %s176 = sphi 0, %s174
      %s177 = sphi 0, %s176
      %s191 = sphi 0, %s177
      %s199 = sphi 0, %s201
      %s202 = sphi 0, %s199
      %s203 = sphi 0, %s202
      %s219 = sphi 0, %s203
      %s225 = sphi 0, %s227
      %s228 = sphi 0, %s225
      %s229 = sphi 0, %s228
      %s245 = sphi 0, %s229
    $region4: #{tpu_custom_call.1} parent=1 // loop_header_branch
      %24 = sbr.rel (%p22) target = $region8
    $region5: #{tpu_custom_call.1} parent=1 // loop_body
      %s26 = ssub.s32 %s21, 1
      %s27 = ssub.s32 %s21, 2
      %s34 = sadd.s32 1, %s29
      %p35 = scmp.ge.s32.totalorder %s34, 1
      %s36 = scalar_select %p35, 0, %s34
      %s37 = sadd.s32 1, %s28
      %s38 = scalar_select %p35, %s37, %s28
      %p39 = scmp.ge.s32.totalorder %s38, 2
      %s40 = scalar_select %p39, 0, %s38
      %s41 = ssub.s32 %s28, %s40
      %s42 = ssub.s32 %s29, %s36
      %s43 = sor.u32 %s41, %s42
      %p44 = scmp.eq.s32.totalorder %s43, 0
      %s46 = sadd.s32 %s45, 1
      %s47 = scalar_select %p44, %s45, %s46
      %p50 = pneg %p44
      %p51 = scmp.eq.s32.totalorder %s21, 1
      %p52 = por %p50, %p51
      %p53 = scmp.ne.s32.totalorder %s45, %s48
      %p54 = scmp.eq.s32.totalorder %s21, 0
      %p55 = por %p53, %p54
      %p56 = scmp.ne.s32.totalorder %s45, %s48
      %p57 = scmp.eq.s32.totalorder %s26, 1
      %p58 = por %p56, %p57
      %p59 = scmp.ne.s32.totalorder %s48, %s49
      %p60 = scmp.eq.s32.totalorder %s26, 0
      %p61 = por %p59, %p60
      %p62 = scmp.ne.s32.totalorder %s48, %s49
      %p63 = scmp.eq.s32.totalorder %s27, 1
      %p64 = por %p62, %p63
      %p66 = scmp.ne.s32.totalorder %s49, %s65
      %p67 = scmp.eq.s32.totalorder %s27, 0
      %p68 = por %p66, %p67
      %s70 = sadd.s32 %s69, 1
      %p73 = scmp.eq.s32.totalorder %s21, 1
      %p74 = scmp.ne.s32.totalorder %s69, %s71
      %p75 = scmp.eq.s32.totalorder %s21, 0
      %p76 = por %p74, %p75
      %p77 = scmp.ne.s32.totalorder %s69, %s71
      %p78 = scmp.eq.s32.totalorder %s26, 1
      %p79 = por %p77, %p78
      %p80 = scmp.ne.s32.totalorder %s71, %s72
      %p81 = scmp.eq.s32.totalorder %s26, 0
      %p82 = por %p80, %p81
      %p83 = scmp.ne.s32.totalorder %s71, %s72
      %p84 = scmp.eq.s32.totalorder %s27, 1
      %p85 = por %p83, %p84
      %p87 = scmp.ne.s32.totalorder %s72, %s86
      %p88 = scmp.eq.s32.totalorder %s27, 0
      %p89 = por %p87, %p88
      %s91 = sadd.s32 %s90, 1
      %p94 = scmp.eq.s32.totalorder %s21, 1
      %p95 = scmp.ne.s32.totalorder %s90, %s92
      %p96 = scmp.eq.s32.totalorder %s21, 0
      %p97 = por %p95, %p96
      %p98 = scmp.ne.s32.totalorder %s90, %s92
      %p99 = scmp.eq.s32.totalorder %s26, 1
      %p100 = por %p98, %p99
      %p101 = scmp.ne.s32.totalorder %s92, %s93
      %p102 = scmp.eq.s32.totalorder %s26, 0
      %p103 = por %p101, %p102
      %p104 = scmp.ne.s32.totalorder %s92, %s93
      %p105 = scmp.eq.s32.totalorder %s27, 1
      %p106 = por %p104, %p105
      %p108 = scmp.ne.s32.totalorder %s93, %s107
      %p109 = scmp.eq.s32.totalorder %s27, 0
      %p110 = por %p108, %p109
      %s112 = sadd.s32 %s111, 1
      %p115 = scmp.eq.s32.totalorder %s21, 1
      %p116 = scmp.ne.s32.totalorder %s111, %s113
      %p117 = scmp.eq.s32.totalorder %s21, 0
      %p118 = por %p116, %p117
      %p119 = scmp.ne.s32.totalorder %s111, %s113
      %p120 = scmp.eq.s32.totalorder %s26, 1
      %p121 = por %p119, %p120
      %p122 = scmp.ne.s32.totalorder %s113, %s114
      %p123 = scmp.eq.s32.totalorder %s26, 0
      %p124 = por %p122, %p123
      %p125 = scmp.ne.s32.totalorder %s113, %s114
      %p126 = scmp.eq.s32.totalorder %s27, 1
      %p127 = por %p125, %p126
      %p129 = scmp.ne.s32.totalorder %s114, %s128
      %p130 = scmp.eq.s32.totalorder %s27, 0
      %p131 = por %p129, %p130
      %s133 = sadd.s32 %s132, 1
      %p136 = scmp.eq.s32.totalorder %s21, 1
      %p137 = scmp.ne.s32.totalorder %s132, %s134
      %p138 = scmp.eq.s32.totalorder %s21, 0
      %p139 = por %p137, %p138
      %p140 = scmp.ne.s32.totalorder %s132, %s134
      %p141 = scmp.eq.s32.totalorder %s26, 1
      %p142 = por %p140, %p141
      %p143 = scmp.ne.s32.totalorder %s134, %s135
      %p144 = scmp.eq.s32.totalorder %s26, 0
      %p145 = por %p143, %p144
      %p146 = scmp.ne.s32.totalorder %s134, %s135
      %p147 = scmp.eq.s32.totalorder %s27, 1
      %p148 = por %p146, %p147
      %p150 = scmp.ne.s32.totalorder %s135, %s149
      %p151 = scmp.eq.s32.totalorder %s27, 0
      %p152 = por %p150, %p151
      %s154 = sadd.s32 %s153, 1
      %p157 = scmp.eq.s32.totalorder %s21, 1
      %p158 = scmp.ne.s32.totalorder %s153, %s155
      %p159 = scmp.eq.s32.totalorder %s21, 0
      %p160 = por %p158, %p159
      %p161 = scmp.ne.s32.totalorder %s153, %s155
      %p162 = scmp.eq.s32.totalorder %s26, 1
      %p163 = por %p161, %p162
      %p164 = scmp.ne.s32.totalorder %s155, %s156
      %p165 = scmp.eq.s32.totalorder %s26, 0
      %p166 = por %p164, %p165
      %p167 = scmp.ne.s32.totalorder %s155, %s156
      %p168 = scmp.eq.s32.totalorder %s27, 1
      %p169 = por %p167, %p168
      %p171 = scmp.ne.s32.totalorder %s156, %s170
      %p172 = scmp.eq.s32.totalorder %s27, 0
      %p173 = por %p171, %p172
      %s175 = sadd.s32 %s174, 1
      %p178 = scmp.eq.s32.totalorder %s21, 1
      %p179 = scmp.ne.s32.totalorder %s174, %s176
      %p180 = scmp.eq.s32.totalorder %s21, 0
      %p181 = por %p179, %p180
      %p182 = scmp.ne.s32.totalorder %s174, %s176
      %p183 = scmp.eq.s32.totalorder %s26, 1
      %p184 = por %p182, %p183
      %p185 = scmp.ne.s32.totalorder %s176, %s177
      %p186 = scmp.eq.s32.totalorder %s26, 0
      %p187 = por %p185, %p186
      %p188 = scmp.ne.s32.totalorder %s176, %s177
      %p189 = scmp.eq.s32.totalorder %s27, 1
      %p190 = por %p188, %p189
      %p192 = scmp.ne.s32.totalorder %s177, %s191
      %p193 = scmp.eq.s32.totalorder %s27, 0
      %p194 = por %p192, %p193
      %s195 = ssub.s32 %s28, %s40
      %s196 = ssub.s32 %s29, %s36
      %s197 = sor.u32 %s195, %s196
      %p198 = scmp.eq.s32.totalorder %s197, 0
      %s200 = sadd.s32 %s199, 1
      %s201 = scalar_select %p198, %s199, %s200
      %p204 = pneg %p198
      %p205 = scmp.eq.s32.totalorder %s21, 1
      %p206 = por %p204, %p205
      %p207 = scmp.ne.s32.totalorder %s199, %s202
      %p208 = scmp.eq.s32.totalorder %s21, 0
      %p209 = por %p207, %p208
      %p210 = scmp.ne.s32.totalorder %s199, %s202
      %p211 = scmp.eq.s32.totalorder %s26, 1
      %p212 = por %p210, %p211
      %p213 = scmp.ne.s32.totalorder %s202, %s203
      %p214 = scmp.eq.s32.totalorder %s26, 0
      %p215 = por %p213, %p214
      %p216 = scmp.ne.s32.totalorder %s202, %s203
      %p217 = scmp.eq.s32.totalorder %s27, 1
      %p218 = por %p216, %p217
      %p220 = scmp.ne.s32.totalorder %s203, %s219
      %p221 = scmp.eq.s32.totalorder %s27, 0
      %p222 = por %p220, %p221
      %s223 = ssub.s32 %s28, %s40
      %p224 = scmp.eq.s32.totalorder %s223, 0
      %s226 = sadd.s32 %s225, 1
      %s227 = scalar_select %p224, %s225, %s226
      %p230 = pneg %p224
      %p231 = scmp.eq.s32.totalorder %s21, 1
      %p232 = por %p230, %p231
      %p233 = scmp.ne.s32.totalorder %s225, %s228
      %p234 = scmp.eq.s32.totalorder %s21, 0
      %p235 = por %p233, %p234
      %p236 = scmp.ne.s32.totalorder %s225, %s228
      %p237 = scmp.eq.s32.totalorder %s26, 1
      %p238 = por %p236, %p237
      %p239 = scmp.ne.s32.totalorder %s228, %s229
      %p240 = scmp.eq.s32.totalorder %s26, 0
      %p241 = por %p239, %p240
      %p242 = scmp.ne.s32.totalorder %s228, %s229
      %p243 = scmp.eq.s32.totalorder %s27, 1
      %p244 = por %p242, %p243
      %p246 = scmp.ne.s32.totalorder %s229, %s245
      %p247 = scmp.eq.s32.totalorder %s27, 0
      %p248 = por %p246, %p247
      %p249 = scmp.le.s32.totalorder 1, %s21
      %p250 = scmp.lt.s32.totalorder %s21, 3
      %p251 = pnand %p249, %p250
      %p252 = pneg %p251
      // Predicated region
      $region9: #{tpu_custom_call.1} parent=5 // pred_check
        _
      $region10: #{tpu_custom_call.1} parent=5 // pred_check_branch
        %254 = sbr.rel (%p251) target = $region12
      $region11: #{tpu_custom_call.1} parent=5 // pred_region
        %s255 = ssub.s32 %s21, 1
        // Predicated region
        $region13: #{tpu_custom_call.1} parent=11 // pred_check
          %p256 = pneg %p82
        $region14: #{tpu_custom_call.1} parent=11 // pred_check_branch
          %258 = sbr.rel (%p256) target = $region16
        $region15: #{tpu_custom_call.1} parent=11 // pred_region
          _
        $region16: #{tpu_custom_call.1} parent=11 // pred_fallthru
          _
        // Predicated region
        $region17: #{tpu_custom_call.1} parent=11 // pred_check
          %p259 = pneg %p103
        $region18: #{tpu_custom_call.1} parent=11 // pred_check_branch
          %261 = sbr.rel (%p259) target = $region20
        $region19: #{tpu_custom_call.1} parent=11 // pred_region
          _
        $region20: #{tpu_custom_call.1} parent=11 // pred_fallthru
          _
        // Predicated region
        $region21: #{tpu_custom_call.1} parent=11 // pred_check
          %p262 = pneg %p124
        $region22: #{tpu_custom_call.1} parent=11 // pred_check_branch
          %264 = sbr.rel (%p262) target = $region24
        $region23: #{tpu_custom_call.1} parent=11 // pred_region
          _
        $region24: #{tpu_custom_call.1} parent=11 // pred_fallthru
          _
        // Predicated region
        $region25: #{tpu_custom_call.1} parent=11 // pred_check
          %p265 = pneg %p145
        $region26: #{tpu_custom_call.1} parent=11 // pred_check_branch
          %267 = sbr.rel (%p265) target = $region28
        $region27: #{tpu_custom_call.1} parent=11 // pred_region
          _
        $region28: #{tpu_custom_call.1} parent=11 // pred_fallthru
          _
        // Predicated region
        $region29: #{tpu_custom_call.1} parent=11 // pred_check
          %p268 = pneg %p166
        $region30: #{tpu_custom_call.1} parent=11 // pred_check_branch
          %270 = sbr.rel (%p268) target = $region32
        $region31: #{tpu_custom_call.1} parent=11 // pred_region
          _
        $region32: #{tpu_custom_call.1} parent=11 // pred_fallthru
          _
        // Predicated region
        $region33: #{tpu_custom_call.1} parent=11 // pred_check
          %p271 = pneg %p187
        $region34: #{tpu_custom_call.1} parent=11 // pred_check_branch
          %273 = sbr.rel (%p271) target = $region36
        $region35: #{tpu_custom_call.1} parent=11 // pred_region
          _
        $region36: #{tpu_custom_call.1} parent=11 // pred_fallthru
          _
      $region12: #{tpu_custom_call.1} parent=5 // pred_fallthru
        _
      %p274 = scmp.lt.s32.totalorder %s21, 2
      // Predicated region
      $region37: #{tpu_custom_call.1} parent=5 // pred_check
        %p275 = pneg %p274
      $region38: #{tpu_custom_call.1} parent=5 // pred_check_branch
        %277 = sbr.rel (%p275) target = $region40
      $region39: #{tpu_custom_call.1} parent=5 // pred_region
        // Predicated region
        $region41: #{tpu_custom_call.1} parent=39 // pred_check
          %p278 = pneg %p55
        $region42: #{tpu_custom_call.1} parent=39 // pred_check_branch
          %280 = sbr.rel (%p278) target = $region44
        $region43: #{tpu_custom_call.1} parent=39 // pred_region
          %s281 = smul.u32 64, %s29
          %p282 = scmp.lt.s32.totalorder %s28, 1
          %s283 = scalar_select %p282, %s28, 1
          %p284 = scmp.lt.s32.totalorder %s281, 63
          %s285 = scalar_select %p284, %s281, 63
          %s286 = smul.addr %s283, 64
          %s287 = sadd.s32 %s285, %s286
          %s288 = smul.addr %s287, 8
          %s289 = scalar_lea.vmem %s0, %s288
          %s290 = smul.u32 64, %s29
        $region44: #{tpu_custom_call.1} parent=39 // pred_fallthru
          _
      $region40: #{tpu_custom_call.1} parent=5 // pred_fallthru
        _
      %p291 = scmp.le.s32.totalorder 1, %s21
      %p292 = scmp.lt.s32.totalorder %s21, 3
      %p293 = pnand %p291, %p292
      %p294 = pneg %p293
      // Predicated region
      $region45: #{tpu_custom_call.1} parent=5 // pred_check
        _
      $region46: #{tpu_custom_call.1} parent=5 // pred_check_branch
        %296 = sbr.rel (%p293) target = $region48
      $region47: #{tpu_custom_call.1} parent=5 // pred_region
        %s297 = ssub.s32 %s21, 1
        %s298 = smul.u32 64, %s31
        %p299 = scmp.lt.s32.totalorder %s30, 1
        %s300 = scalar_select %p299, %s30, 1
        %p301 = scmp.lt.s32.totalorder %s298, 63
        %s302 = scalar_select %p301, %s298, 63
        %s303 = smul.addr %s300, 64
        %s304 = sadd.s32 %s302, %s303
        %s305 = smul.addr %s304, 8
        %s306 = scalar_lea.vmem %s0, %s305
        %p307 = pneg %p61
        %p308 = pneg %p58
        %p309 = pneg %p82
        %p310 = pneg %p79
        %p311 = pneg %p103
        %p312 = pneg %p100
        %p313 = pneg %p124
        %p314 = pneg %p121
        %p315 = pneg %p145
        %p316 = pneg %p142
        %p317 = pneg %p166
        %p318 = pneg %p163
        %p319 = pneg %p187
        %p320 = pneg %p184
        %p321 = pneg %p215
        %p322 = pneg %p212
        %s323 = sand.u32 %s202, 1
        %s324 = scalar_lea.sflag [#allocation3], %s323
        %s325 = sand.u32 %s202, 1
        %s326 = smul.addr %s325, 256
        %s327 = scalar_lea.vmem [#allocation2], %s326
        %p328 = pneg %p241
        %p329 = pneg %p238
        %s330 = sand.u32 %s228, 1
        %s331 = scalar_lea.sflag [#allocation5], %s330
        %s332 = sand.u32 %s228, 1
        %s333 = smul.addr %s332, 8
        %s334 = scalar_lea.vmem [#allocation4], %s333
        %s335 = smul.u32 64, %s31
        %p336 = scmp.lt.s32.totalorder %s30, 1
        %s337 = scalar_select %p336, %s30, 1
        %p338 = scmp.lt.s32.totalorder %s335, 63
        %s339 = scalar_select %p338, %s335, 63
        %s340 = smul.addr %s337, 64
        %s341 = sadd.s32 %s339, %s340
        %s342 = smul.addr %s341, 8
        %s343 = scalar_lea.vmem %s0, %s342
        %s344 = smul.u32 64, %s31
        %s345 = smul.u32 4, %s31
        %v347 = vld [vmem:[%s343] sm:$0xff]
        %v348 = vld [vmem:[%s343 + $0x8] sm:$0xff]
        %v349 = vld [vmem:[%s343 + $0x10] sm:$0xff]
        %v350 = vld [vmem:[%s343 + $0x18] sm:$0xff]
        %v351 = vld [vmem:[%s343 + $0x20] sm:$0xff]
        %v352 = vld [vmem:[%s343 + $0x28] sm:$0xff]
        %v353 = vld [vmem:[%s343 + $0x30] sm:$0xff]
        %v354 = vld [vmem:[%s343 + $0x38] sm:$0xff]
        %v355 = vld [vmem:[%s343 + $0x40] sm:$0xff]
        %v356 = vld [vmem:[%s343 + $0x48] sm:$0xff]
        %v357 = vld [vmem:[%s343 + $0x50] sm:$0xff]
        %v358 = vld [vmem:[%s343 + $0x58] sm:$0xff]
        %v359 = vld [vmem:[%s343 + $0x60] sm:$0xff]
        %v360 = vld [vmem:[%s343 + $0x68] sm:$0xff]
        %v361 = vld [vmem:[%s343 + $0x70] sm:$0xff]
        %v362 = vld [vmem:[%s343 + $0x78] sm:$0xff]
        %v363 = vld [vmem:[%s343 + $0x80] sm:$0xff]
        %v364 = vld [vmem:[%s343 + $0x88] sm:$0xff]
        %v365 = vld [vmem:[%s343 + $0x90] sm:$0xff]
        %v366 = vld [vmem:[%s343 + $0x98] sm:$0xff]
        %v367 = vld [vmem:[%s343 + $0xa0] sm:$0xff]
        %v368 = vld [vmem:[%s343 + $0xa8] sm:$0xff]
        %v369 = vld [vmem:[%s343 + $0xb0] sm:$0xff]
        %v370 = vld [vmem:[%s343 + $0xb8] sm:$0xff]
        %v371 = vld [vmem:[%s343 + $0xc0] sm:$0xff]
        %v372 = vld [vmem:[%s343 + $0xc8] sm:$0xff]
        %v373 = vld [vmem:[%s343 + $0xd0] sm:$0xff]
        %v374 = vld [vmem:[%s343 + $0xd8] sm:$0xff]
        %v375 = vld [vmem:[%s343 + $0xe0] sm:$0xff]
        %v376 = vld [vmem:[%s343 + $0xe8] sm:$0xff]
        %v377 = vld [vmem:[%s343 + $0xf0] sm:$0xff]
        %v378 = vld [vmem:[%s343 + $0xf8] sm:$0xff]
        %v379 = vld [vmem:[%s343 + $0x100] sm:$0xff]
        %v380 = vld [vmem:[%s343 + $0x108] sm:$0xff]
        %v381 = vld [vmem:[%s343 + $0x110] sm:$0xff]
        %v382 = vld [vmem:[%s343 + $0x118] sm:$0xff]
        %v383 = vld [vmem:[%s343 + $0x120] sm:$0xff]
        %v384 = vld [vmem:[%s343 + $0x128] sm:$0xff]
        %v385 = vld [vmem:[%s343 + $0x130] sm:$0xff]
        %v386 = vld [vmem:[%s343 + $0x138] sm:$0xff]
        %v387 = vld [vmem:[%s343 + $0x140] sm:$0xff]
        %v388 = vld [vmem:[%s343 + $0x148] sm:$0xff]
        %v389 = vld [vmem:[%s343 + $0x150] sm:$0xff]
        %v390 = vld [vmem:[%s343 + $0x158] sm:$0xff]
        %v391 = vld [vmem:[%s343 + $0x160] sm:$0xff]
        %v392 = vld [vmem:[%s343 + $0x168] sm:$0xff]
        %v393 = vld [vmem:[%s343 + $0x170] sm:$0xff]
        %v394 = vld [vmem:[%s343 + $0x178] sm:$0xff]
        %v395 = vld [vmem:[%s343 + $0x180] sm:$0xff]
        %v396 = vld [vmem:[%s343 + $0x188] sm:$0xff]
        %v397 = vld [vmem:[%s343 + $0x190] sm:$0xff]
        %v398 = vld [vmem:[%s343 + $0x198] sm:$0xff]
        %v399 = vld [vmem:[%s343 + $0x1a0] sm:$0xff]
        %v400 = vld [vmem:[%s343 + $0x1a8] sm:$0xff]
        %v401 = vld [vmem:[%s343 + $0x1b0] sm:$0xff]
        %v402 = vld [vmem:[%s343 + $0x1b8] sm:$0xff]
        %v403 = vld [vmem:[%s343 + $0x1c0] sm:$0xff]
        %v404 = vld [vmem:[%s343 + $0x1c8] sm:$0xff]
        %v405 = vld [vmem:[%s343 + $0x1d0] sm:$0xff]
        %v406 = vld [vmem:[%s343 + $0x1d8] sm:$0xff]
        %v407 = vld [vmem:[%s343 + $0x1e0] sm:$0xff]
        %v408 = vld [vmem:[%s343 + $0x1e8] sm:$0xff]
        %v409 = vld [vmem:[%s343 + $0x1f0] sm:$0xff]
        %v410 = vld [vmem:[%s343 + $0x1f8] sm:$0xff]
        %v411 = vld [vmem:[%s1] sm:$0x7]
        %413 = vset.pattern.permute.xlu0 0
        %414 = vperm.xlu0 %413, %v347
        %v415 = vpop.permute.xlu0 %414
        %418 = vset.pattern.permute.xlu0 0
        %419 = vperm.xlu0 %418, %v348
        %v420 = vpop.permute.xlu0 %419
        %423 = vset.pattern.permute.xlu0 0
        %424 = vperm.xlu0 %423, %v349
        %v425 = vpop.permute.xlu0 %424
        %428 = vset.pattern.permute.xlu0 0
        %429 = vperm.xlu0 %428, %v350
        %v430 = vpop.permute.xlu0 %429
        %433 = vset.pattern.permute.xlu0 0
        %434 = vperm.xlu0 %433, %v351
        %v435 = vpop.permute.xlu0 %434
        %438 = vset.pattern.permute.xlu0 0
        %439 = vperm.xlu0 %438, %v352
        %v440 = vpop.permute.xlu0 %439
        %443 = vset.pattern.permute.xlu0 0
        %444 = vperm.xlu0 %443, %v353
        %v445 = vpop.permute.xlu0 %444
        %448 = vset.pattern.permute.xlu0 0
        %449 = vperm.xlu0 %448, %v354
        %v450 = vpop.permute.xlu0 %449
        %453 = vset.pattern.permute.xlu0 0
        %454 = vperm.xlu0 %453, %v355
        %v455 = vpop.permute.xlu0 %454
        %458 = vset.pattern.permute.xlu0 0
        %459 = vperm.xlu0 %458, %v356
        %v460 = vpop.permute.xlu0 %459
        %463 = vset.pattern.permute.xlu0 0
        %464 = vperm.xlu0 %463, %v357
        %v465 = vpop.permute.xlu0 %464
        %468 = vset.pattern.permute.xlu0 0
        %469 = vperm.xlu0 %468, %v358
        %v470 = vpop.permute.xlu0 %469
        %473 = vset.pattern.permute.xlu0 0
        %474 = vperm.xlu0 %473, %v359
        %v475 = vpop.permute.xlu0 %474
        %478 = vset.pattern.permute.xlu0 0
        %479 = vperm.xlu0 %478, %v360
        %v480 = vpop.permute.xlu0 %479
        %483 = vset.pattern.permute.xlu0 0
        %484 = vperm.xlu0 %483, %v361
        %v485 = vpop.permute.xlu0 %484
        %488 = vset.pattern.permute.xlu0 0
        %489 = vperm.xlu0 %488, %v362
        %v490 = vpop.permute.xlu0 %489
        %493 = vset.pattern.permute.xlu0 0
        %494 = vperm.xlu0 %493, %v363
        %v495 = vpop.permute.xlu0 %494
        %498 = vset.pattern.permute.xlu0 0
        %499 = vperm.xlu0 %498, %v364
        %v500 = vpop.permute.xlu0 %499
        %503 = vset.pattern.permute.xlu0 0
        %504 = vperm.xlu0 %503, %v365
        %v505 = vpop.permute.xlu0 %504
        %508 = vset.pattern.permute.xlu0 0
        %509 = vperm.xlu0 %508, %v366
        %v510 = vpop.permute.xlu0 %509
        %513 = vset.pattern.permute.xlu0 0
        %514 = vperm.xlu0 %513, %v367
        %v515 = vpop.permute.xlu0 %514
        %518 = vset.pattern.permute.xlu0 0
        %519 = vperm.xlu0 %518, %v368
        %v520 = vpop.permute.xlu0 %519
        %523 = vset.pattern.permute.xlu0 0
        %524 = vperm.xlu0 %523, %v369
        %v525 = vpop.permute.xlu0 %524
        %528 = vset.pattern.permute.xlu0 0
        %529 = vperm.xlu0 %528, %v370
        %v530 = vpop.permute.xlu0 %529
        %533 = vset.pattern.permute.xlu0 0
        %534 = vperm.xlu0 %533, %v371
        %v535 = vpop.permute.xlu0 %534
        %538 = vset.pattern.permute.xlu0 0
        %539 = vperm.xlu0 %538, %v372
        %v540 = vpop.permute.xlu0 %539
        %543 = vset.pattern.permute.xlu0 0
        %544 = vperm.xlu0 %543, %v373
        %v545 = vpop.permute.xlu0 %544
        %548 = vset.pattern.permute.xlu0 0
        %549 = vperm.xlu0 %548, %v374
        %v550 = vpop.permute.xlu0 %549
        %553 = vset.pattern.permute.xlu0 0
        %554 = vperm.xlu0 %553, %v375
        %v555 = vpop.permute.xlu0 %554
        %558 = vset.pattern.permute.xlu0 0
        %559 = vperm.xlu0 %558, %v376
        %v560 = vpop.permute.xlu0 %559
        %563 = vset.pattern.permute.xlu0 0
        %564 = vperm.xlu0 %563, %v377
        %v565 = vpop.permute.xlu0 %564
        %568 = vset.pattern.permute.xlu0 0
        %569 = vperm.xlu0 %568, %v378
        %v570 = vpop.permute.xlu0 %569
        %573 = vset.pattern.permute.xlu0 0
        %574 = vperm.xlu0 %573, %v379
        %v575 = vpop.permute.xlu0 %574
        %578 = vset.pattern.permute.xlu0 0
        %579 = vperm.xlu0 %578, %v380
        %v580 = vpop.permute.xlu0 %579
        %583 = vset.pattern.permute.xlu0 0
        %584 = vperm.xlu0 %583, %v381
        %v585 = vpop.permute.xlu0 %584
        %588 = vset.pattern.permute.xlu0 0
        %589 = vperm.xlu0 %588, %v382
        %v590 = vpop.permute.xlu0 %589
        %593 = vset.pattern.permute.xlu0 0
        %594 = vperm.xlu0 %593, %v383
        %v595 = vpop.permute.xlu0 %594
        %598 = vset.pattern.permute.xlu0 0
        %599 = vperm.xlu0 %598, %v384
        %v600 = vpop.permute.xlu0 %599
        %603 = vset.pattern.permute.xlu0 0
        %604 = vperm.xlu0 %603, %v385
        %v605 = vpop.permute.xlu0 %604
        %608 = vset.pattern.permute.xlu0 0
        %609 = vperm.xlu0 %608, %v386
        %v610 = vpop.permute.xlu0 %609
        %613 = vset.pattern.permute.xlu0 0
        %614 = vperm.xlu0 %613, %v387
        %v615 = vpop.permute.xlu0 %614
        %618 = vset.pattern.permute.xlu0 0
        %619 = vperm.xlu0 %618, %v388
        %v620 = vpop.permute.xlu0 %619
        %623 = vset.pattern.permute.xlu0 0
        %624 = vperm.xlu0 %623, %v389
        %v625 = vpop.permute.xlu0 %624
        %628 = vset.pattern.permute.xlu0 0
        %629 = vperm.xlu0 %628, %v390
        %v630 = vpop.permute.xlu0 %629
        %633 = vset.pattern.permute.xlu0 0
        %634 = vperm.xlu0 %633, %v391
        %v635 = vpop.permute.xlu0 %634
        %638 = vset.pattern.permute.xlu0 0
        %639 = vperm.xlu0 %638, %v392
        %v640 = vpop.permute.xlu0 %639
        %643 = vset.pattern.permute.xlu0 0
        %644 = vperm.xlu0 %643, %v393
        %v645 = vpop.permute.xlu0 %644
        %648 = vset.pattern.permute.xlu0 0
        %649 = vperm.xlu0 %648, %v394
        %v650 = vpop.permute.xlu0 %649
        %653 = vset.pattern.permute.xlu0 0
        %654 = vperm.xlu0 %653, %v395
        %v655 = vpop.permute.xlu0 %654
        %658 = vset.pattern.permute.xlu0 0
        %659 = vperm.xlu0 %658, %v396
        %v660 = vpop.permute.xlu0 %659
        %663 = vset.pattern.permute.xlu0 0
        %664 = vperm.xlu0 %663, %v397
        %v665 = vpop.permute.xlu0 %664
        %668 = vset.pattern.permute.xlu0 0
        %669 = vperm.xlu0 %668, %v398
        %v670 = vpop.permute.xlu0 %669
        %673 = vset.pattern.permute.xlu0 0
        %674 = vperm.xlu0 %673, %v399
        %v675 = vpop.permute.xlu0 %674
        %678 = vset.pattern.permute.xlu0 0
        %679 = vperm.xlu0 %678, %v400
        %v680 = vpop.permute.xlu0 %679
        %683 = vset.pattern.permute.xlu0 0
        %684 = vperm.xlu0 %683, %v401
        %v685 = vpop.permute.xlu0 %684
        %688 = vset.pattern.permute.xlu0 0
        %689 = vperm.xlu0 %688, %v402
        %v690 = vpop.permute.xlu0 %689
        %693 = vset.pattern.permute.xlu0 0
        %694 = vperm.xlu0 %693, %v403
        %v695 = vpop.permute.xlu0 %694
        %698 = vset.pattern.permute.xlu0 0
        %699 = vperm.xlu0 %698, %v404
        %v700 = vpop.permute.xlu0 %699
        %703 = vset.pattern.permute.xlu0 0
        %704 = vperm.xlu0 %703, %v405
        %v705 = vpop.permute.xlu0 %704
        %708 = vset.pattern.permute.xlu0 0
        %709 = vperm.xlu0 %708, %v406
        %v710 = vpop.permute.xlu0 %709
        %713 = vset.pattern.permute.xlu0 0
        %714 = vperm.xlu0 %713, %v407
        %v715 = vpop.permute.xlu0 %714
        %718 = vset.pattern.permute.xlu0 0
        %719 = vperm.xlu0 %718, %v408
        %v720 = vpop.permute.xlu0 %719
        %723 = vset.pattern.permute.xlu0 0
        %724 = vperm.xlu0 %723, %v409
        %v725 = vpop.permute.xlu0 %724
        %728 = vset.pattern.permute.xlu0 0
        %729 = vperm.xlu0 %728, %v410
        %v730 = vpop.permute.xlu0 %729
        %v732 = vlaneseq
        %v733 = vshrl.u32 %v732, 7
        %v734 = vsub.s32 0, %v733
        %v735 = vrot.slane %v411, %v734
        %v736 = vmul.f32 %v415, %v735
        %v737 = vmul.f32 %v420, %v735
        %v738 = vmul.f32 %v425, %v735
        %v739 = vmul.f32 %v430, %v735
        %v740 = vmul.f32 %v435, %v735
        %v741 = vmul.f32 %v440, %v735
        %v742 = vmul.f32 %v445, %v735
        %v743 = vmul.f32 %v450, %v735
        %v744 = vmul.f32 %v455, %v735
        %v745 = vmul.f32 %v460, %v735
        %v746 = vmul.f32 %v465, %v735
        %v747 = vmul.f32 %v470, %v735
        %v748 = vmul.f32 %v475, %v735
        %v749 = vmul.f32 %v480, %v735
        %v750 = vmul.f32 %v485, %v735
        %v751 = vmul.f32 %v490, %v735
        %v752 = vmul.f32 %v495, %v735
        %v753 = vmul.f32 %v500, %v735
        %v754 = vmul.f32 %v505, %v735
        %v755 = vmul.f32 %v510, %v735
        %v756 = vmul.f32 %v515, %v735
        %v757 = vmul.f32 %v520, %v735
        %v758 = vmul.f32 %v525, %v735
        %v759 = vmul.f32 %v530, %v735
        %v760 = vmul.f32 %v535, %v735
        %v761 = vmul.f32 %v540, %v735
        %v762 = vmul.f32 %v545, %v735
        %v763 = vmul.f32 %v550, %v735
        %v764 = vmul.f32 %v555, %v735
        %v765 = vmul.f32 %v560, %v735
        %v766 = vmul.f32 %v565, %v735
        %v767 = vmul.f32 %v570, %v735
        %v768 = vmul.f32 %v575, %v735
        %v769 = vmul.f32 %v580, %v735
        %v770 = vmul.f32 %v585, %v735
        %v771 = vmul.f32 %v590, %v735
        %v772 = vmul.f32 %v595, %v735
        %v773 = vmul.f32 %v600, %v735
        %v774 = vmul.f32 %v605, %v735
        %v775 = vmul.f32 %v610, %v735
        %v776 = vmul.f32 %v615, %v735
        %v777 = vmul.f32 %v620, %v735
        %v778 = vmul.f32 %v625, %v735
        %v779 = vmul.f32 %v630, %v735
        %v780 = vmul.f32 %v635, %v735
        %v781 = vmul.f32 %v640, %v735
        %v782 = vmul.f32 %v645, %v735
        %v783 = vmul.f32 %v650, %v735
        %v784 = vmul.f32 %v655, %v735
        %v785 = vmul.f32 %v660, %v735
        %v786 = vmul.f32 %v665, %v735
        %v787 = vmul.f32 %v670, %v735
        %v788 = vmul.f32 %v675, %v735
        %v789 = vmul.f32 %v680, %v735
        %v790 = vmul.f32 %v685, %v735
        %v791 = vmul.f32 %v690, %v735
        %v792 = vmul.f32 %v695, %v735
        %v793 = vmul.f32 %v700, %v735
        %v794 = vmul.f32 %v705, %v735
        %v795 = vmul.f32 %v710, %v735
        %v796 = vmul.f32 %v715, %v735
        %v797 = vmul.f32 %v720, %v735
        %v798 = vmul.f32 %v725, %v735
        %v799 = vmul.f32 %v730, %v735
        %800 = vset.pattern.permute.xlu0 1
        %801 = vperm.xlu0 %800, %v347
        %v802 = vpop.permute.xlu0 %801
        %804 = vset.pattern.permute.xlu0 1
        %805 = vperm.xlu0 %804, %v348
        %v806 = vpop.permute.xlu0 %805
        %808 = vset.pattern.permute.xlu0 1
        %809 = vperm.xlu0 %808, %v349
        %v810 = vpop.permute.xlu0 %809
        %812 = vset.pattern.permute.xlu0 1
        %813 = vperm.xlu0 %812, %v350
        %v814 = vpop.permute.xlu0 %813
        %816 = vset.pattern.permute.xlu0 1
        %817 = vperm.xlu0 %816, %v351
        %v818 = vpop.permute.xlu0 %817
        %820 = vset.pattern.permute.xlu0 1
        %821 = vperm.xlu0 %820, %v352
        %v822 = vpop.permute.xlu0 %821
        %824 = vset.pattern.permute.xlu0 1
        %825 = vperm.xlu0 %824, %v353
        %v826 = vpop.permute.xlu0 %825
        %828 = vset.pattern.permute.xlu0 1
        %829 = vperm.xlu0 %828, %v354
        %v830 = vpop.permute.xlu0 %829
        %832 = vset.pattern.permute.xlu0 1
        %833 = vperm.xlu0 %832, %v355
        %v834 = vpop.permute.xlu0 %833
        %836 = vset.pattern.permute.xlu0 1
        %837 = vperm.xlu0 %836, %v356
        %v838 = vpop.permute.xlu0 %837
        %840 = vset.pattern.permute.xlu0 1
        %841 = vperm.xlu0 %840, %v357
        %v842 = vpop.permute.xlu0 %841
        %844 = vset.pattern.permute.xlu0 1
        %845 = vperm.xlu0 %844, %v358
        %v846 = vpop.permute.xlu0 %845
        %848 = vset.pattern.permute.xlu0 1
        %849 = vperm.xlu0 %848, %v359
        %v850 = vpop.permute.xlu0 %849
        %852 = vset.pattern.permute.xlu0 1
        %853 = vperm.xlu0 %852, %v360
        %v854 = vpop.permute.xlu0 %853
        %856 = vset.pattern.permute.xlu0 1
        %857 = vperm.xlu0 %856, %v361
        %v858 = vpop.permute.xlu0 %857
        %860 = vset.pattern.permute.xlu0 1
        %861 = vperm.xlu0 %860, %v362
        %v862 = vpop.permute.xlu0 %861
        %864 = vset.pattern.permute.xlu0 1
        %865 = vperm.xlu0 %864, %v363
        %v866 = vpop.permute.xlu0 %865
        %868 = vset.pattern.permute.xlu0 1
        %869 = vperm.xlu0 %868, %v364
        %v870 = vpop.permute.xlu0 %869
        %872 = vset.pattern.permute.xlu0 1
        %873 = vperm.xlu0 %872, %v365
        %v874 = vpop.permute.xlu0 %873
        %876 = vset.pattern.permute.xlu0 1
        %877 = vperm.xlu0 %876, %v366
        %v878 = vpop.permute.xlu0 %877
        %880 = vset.pattern.permute.xlu0 1
        %881 = vperm.xlu0 %880, %v367
        %v882 = vpop.permute.xlu0 %881
        %884 = vset.pattern.permute.xlu0 1
        %885 = vperm.xlu0 %884, %v368
        %v886 = vpop.permute.xlu0 %885
        %888 = vset.pattern.permute.xlu0 1
        %889 = vperm.xlu0 %888, %v369
        %v890 = vpop.permute.xlu0 %889
        %892 = vset.pattern.permute.xlu0 1
        %893 = vperm.xlu0 %892, %v370
        %v894 = vpop.permute.xlu0 %893
        %896 = vset.pattern.permute.xlu0 1
        %897 = vperm.xlu0 %896, %v371
        %v898 = vpop.permute.xlu0 %897
        %900 = vset.pattern.permute.xlu0 1
        %901 = vperm.xlu0 %900, %v372
        %v902 = vpop.permute.xlu0 %901
        %904 = vset.pattern.permute.xlu0 1
        %905 = vperm.xlu0 %904, %v373
        %v906 = vpop.permute.xlu0 %905
        %908 = vset.pattern.permute.xlu0 1
        %909 = vperm.xlu0 %908, %v374
        %v910 = vpop.permute.xlu0 %909
        %912 = vset.pattern.permute.xlu0 1
        %913 = vperm.xlu0 %912, %v375
        %v914 = vpop.permute.xlu0 %913
        %916 = vset.pattern.permute.xlu0 1
        %917 = vperm.xlu0 %916, %v376
        %v918 = vpop.permute.xlu0 %917
        %920 = vset.pattern.permute.xlu0 1
        %921 = vperm.xlu0 %920, %v377
        %v922 = vpop.permute.xlu0 %921
        %924 = vset.pattern.permute.xlu0 1
        %925 = vperm.xlu0 %924, %v378
        %v926 = vpop.permute.xlu0 %925
        %928 = vset.pattern.permute.xlu0 1
        %929 = vperm.xlu0 %928, %v379
        %v930 = vpop.permute.xlu0 %929
        %932 = vset.pattern.permute.xlu0 1
        %933 = vperm.xlu0 %932, %v380
        %v934 = vpop.permute.xlu0 %933
        %936 = vset.pattern.permute.xlu0 1
        %937 = vperm.xlu0 %936, %v381
        %v938 = vpop.permute.xlu0 %937
        %940 = vset.pattern.permute.xlu0 1
        %941 = vperm.xlu0 %940, %v382
        %v942 = vpop.permute.xlu0 %941
        %944 = vset.pattern.permute.xlu0 1
        %945 = vperm.xlu0 %944, %v383
        %v946 = vpop.permute.xlu0 %945
        %948 = vset.pattern.permute.xlu0 1
        %949 = vperm.xlu0 %948, %v384
        %v950 = vpop.permute.xlu0 %949
        %952 = vset.pattern.permute.xlu0 1
        %953 = vperm.xlu0 %952, %v385
        %v954 = vpop.permute.xlu0 %953
        %956 = vset.pattern.permute.xlu0 1
        %957 = vperm.xlu0 %956, %v386
        %v958 = vpop.permute.xlu0 %957
        %960 = vset.pattern.permute.xlu0 1
        %961 = vperm.xlu0 %960, %v387
        %v962 = vpop.permute.xlu0 %961
        %964 = vset.pattern.permute.xlu0 1
        %965 = vperm.xlu0 %964, %v388
        %v966 = vpop.permute.xlu0 %965
        %968 = vset.pattern.permute.xlu0 1
        %969 = vperm.xlu0 %968, %v389
        %v970 = vpop.permute.xlu0 %969
        %972 = vset.pattern.permute.xlu0 1
        %973 = vperm.xlu0 %972, %v390
        %v974 = vpop.permute.xlu0 %973
        %976 = vset.pattern.permute.xlu0 1
        %977 = vperm.xlu0 %976, %v391
        %v978 = vpop.permute.xlu0 %977
        %980 = vset.pattern.permute.xlu0 1
        %981 = vperm.xlu0 %980, %v392
        %v982 = vpop.permute.xlu0 %981
        %984 = vset.pattern.permute.xlu0 1
        %985 = vperm.xlu0 %984, %v393
        %v986 = vpop.permute.xlu0 %985
        %988 = vset.pattern.permute.xlu0 1
        %989 = vperm.xlu0 %988, %v394
        %v990 = vpop.permute.xlu0 %989
        %992 = vset.pattern.permute.xlu0 1
        %993 = vperm.xlu0 %992, %v395
        %v994 = vpop.permute.xlu0 %993
        %996 = vset.pattern.permute.xlu0 1
        %997 = vperm.xlu0 %996, %v396
        %v998 = vpop.permute.xlu0 %997
        %1000 = vset.pattern.permute.xlu0 1
        %1001 = vperm.xlu0 %1000, %v397
        %v1002 = vpop.permute.xlu0 %1001
        %1004 = vset.pattern.permute.xlu0 1
        %1005 = vperm.xlu0 %1004, %v398
        %v1006 = vpop.permute.xlu0 %1005
        %1008 = vset.pattern.permute.xlu0 1
        %1009 = vperm.xlu0 %1008, %v399
        %v1010 = vpop.permute.xlu0 %1009
        %1012 = vset.pattern.permute.xlu0 1
        %1013 = vperm.xlu0 %1012, %v400
        %v1014 = vpop.permute.xlu0 %1013
        %1016 = vset.pattern.permute.xlu0 1
        %1017 = vperm.xlu0 %1016, %v401
        %v1018 = vpop.permute.xlu0 %1017
        %1020 = vset.pattern.permute.xlu0 1
        %1021 = vperm.xlu0 %1020, %v402
        %v1022 = vpop.permute.xlu0 %1021
        %1024 = vset.pattern.permute.xlu0 1
        %1025 = vperm.xlu0 %1024, %v403
        %v1026 = vpop.permute.xlu0 %1025
        %1028 = vset.pattern.permute.xlu0 1
        %1029 = vperm.xlu0 %1028, %v404
        %v1030 = vpop.permute.xlu0 %1029
        %1032 = vset.pattern.permute.xlu0 1
        %1033 = vperm.xlu0 %1032, %v405
        %v1034 = vpop.permute.xlu0 %1033
        %1036 = vset.pattern.permute.xlu0 1
        %1037 = vperm.xlu0 %1036, %v406
        %v1038 = vpop.permute.xlu0 %1037
        %1040 = vset.pattern.permute.xlu0 1
        %1041 = vperm.xlu0 %1040, %v407
        %v1042 = vpop.permute.xlu0 %1041
        %1044 = vset.pattern.permute.xlu0 1
        %1045 = vperm.xlu0 %1044, %v408
        %v1046 = vpop.permute.xlu0 %1045
        %1048 = vset.pattern.permute.xlu0 1
        %1049 = vperm.xlu0 %1048, %v409
        %v1050 = vpop.permute.xlu0 %1049
        %1052 = vset.pattern.permute.xlu0 1
        %1053 = vperm.xlu0 %1052, %v410
        %v1054 = vpop.permute.xlu0 %1053
        %v1056 = vlaneseq
        %v1057 = vshrl.u32 %v1056, 7
        %v1058 = vsub.s32 1, %v1057
        %v1059 = vrot.slane %v411, %v1058
        %v1060 = vmul.f32 %v802, %v1059
        %v1061 = vmul.f32 %v806, %v1059
        %v1062 = vmul.f32 %v810, %v1059
        %v1063 = vmul.f32 %v814, %v1059
        %v1064 = vmul.f32 %v818, %v1059
        %v1065 = vmul.f32 %v822, %v1059
        %v1066 = vmul.f32 %v826, %v1059
        %v1067 = vmul.f32 %v830, %v1059
        %v1068 = vmul.f32 %v834, %v1059
        %v1069 = vmul.f32 %v838, %v1059
        %v1070 = vmul.f32 %v842, %v1059
        %v1071 = vmul.f32 %v846, %v1059
        %v1072 = vmul.f32 %v850, %v1059
        %v1073 = vmul.f32 %v854, %v1059
        %v1074 = vmul.f32 %v858, %v1059
        %v1075 = vmul.f32 %v862, %v1059
        %v1076 = vmul.f32 %v866, %v1059
        %v1077 = vmul.f32 %v870, %v1059
        %v1078 = vmul.f32 %v874, %v1059
        %v1079 = vmul.f32 %v878, %v1059
        %v1080 = vmul.f32 %v882, %v1059
        %v1081 = vmul.f32 %v886, %v1059
        %v1082 = vmul.f32 %v890, %v1059
        %v1083 = vmul.f32 %v894, %v1059
        %v1084 = vmul.f32 %v898, %v1059
        %v1085 = vmul.f32 %v902, %v1059
        %v1086 = vmul.f32 %v906, %v1059
        %v1087 = vmul.f32 %v910, %v1059
        %v1088 = vmul.f32 %v914, %v1059
        %v1089 = vmul.f32 %v918, %v1059
        %v1090 = vmul.f32 %v922, %v1059
        %v1091 = vmul.f32 %v926, %v1059
        %v1092 = vmul.f32 %v930, %v1059
        %v1093 = vmul.f32 %v934, %v1059
        %v1094 = vmul.f32 %v938, %v1059
        %v1095 = vmul.f32 %v942, %v1059
        %v1096 = vmul.f32 %v946, %v1059
        %v1097 = vmul.f32 %v950, %v1059
        %v1098 = vmul.f32 %v954, %v1059
        %v1099 = vmul.f32 %v958, %v1059
        %v1100 = vmul.f32 %v962, %v1059
        %v1101 = vmul.f32 %v966, %v1059
        %v1102 = vmul.f32 %v970, %v1059
        %v1103 = vmul.f32 %v974, %v1059
        %v1104 = vmul.f32 %v978, %v1059
        %v1105 = vmul.f32 %v982, %v1059
        %v1106 = vmul.f32 %v986, %v1059
        %v1107 = vmul.f32 %v990, %v1059
        %v1108 = vmul.f32 %v994, %v1059
        %v1109 = vmul.f32 %v998, %v1059
        %v1110 = vmul.f32 %v1002, %v1059
        %v1111 = vmul.f32 %v1006, %v1059
        %v1112 = vmul.f32 %v1010, %v1059
        %v1113 = vmul.f32 %v1014, %v1059
        %v1114 = vmul.f32 %v1018, %v1059
        %v1115 = vmul.f32 %v1022, %v1059
        %v1116 = vmul.f32 %v1026, %v1059
        %v1117 = vmul.f32 %v1030, %v1059
        %v1118 = vmul.f32 %v1034, %v1059
        %v1119 = vmul.f32 %v1038, %v1059
        %v1120 = vmul.f32 %v1042, %v1059
        %v1121 = vmul.f32 %v1046, %v1059
        %v1122 = vmul.f32 %v1050, %v1059
        %v1123 = vmul.f32 %v1054, %v1059
        %v1124 = vadd.f32 %v736, %v1060
        %v1125 = vadd.f32 %v737, %v1061
        %v1126 = vadd.f32 %v738, %v1062
        %v1127 = vadd.f32 %v739, %v1063
        %v1128 = vadd.f32 %v740, %v1064
        %v1129 = vadd.f32 %v741, %v1065
        %v1130 = vadd.f32 %v742, %v1066
        %v1131 = vadd.f32 %v743, %v1067
        %v1132 = vadd.f32 %v744, %v1068
        %v1133 = vadd.f32 %v745, %v1069
        %v1134 = vadd.f32 %v746, %v1070
        %v1135 = vadd.f32 %v747, %v1071
        %v1136 = vadd.f32 %v748, %v1072
        %v1137 = vadd.f32 %v749, %v1073
        %v1138 = vadd.f32 %v750, %v1074
        %v1139 = vadd.f32 %v751, %v1075
        %v1140 = vadd.f32 %v752, %v1076
        %v1141 = vadd.f32 %v753, %v1077
        %v1142 = vadd.f32 %v754, %v1078
        %v1143 = vadd.f32 %v755, %v1079
        %v1144 = vadd.f32 %v756, %v1080
        %v1145 = vadd.f32 %v757, %v1081
        %v1146 = vadd.f32 %v758, %v1082
        %v1147 = vadd.f32 %v759, %v1083
        %v1148 = vadd.f32 %v760, %v1084
        %v1149 = vadd.f32 %v761, %v1085
        %v1150 = vadd.f32 %v762, %v1086
        %v1151 = vadd.f32 %v763, %v1087
        %v1152 = vadd.f32 %v764, %v1088
        %v1153 = vadd.f32 %v765, %v1089
        %v1154 = vadd.f32 %v766, %v1090
        %v1155 = vadd.f32 %v767, %v1091
        %v1156 = vadd.f32 %v768, %v1092
        %v1157 = vadd.f32 %v769, %v1093
        %v1158 = vadd.f32 %v770, %v1094
        %v1159 = vadd.f32 %v771, %v1095
        %v1160 = vadd.f32 %v772, %v1096
        %v1161 = vadd.f32 %v773, %v1097
        %v1162 = vadd.f32 %v774, %v1098
        %v1163 = vadd.f32 %v775, %v1099
        %v1164 = vadd.f32 %v776, %v1100
        %v1165 = vadd.f32 %v777, %v1101
        %v1166 = vadd.f32 %v778, %v1102
        %v1167 = vadd.f32 %v779, %v1103
        %v1168 = vadd.f32 %v780, %v1104
        %v1169 = vadd.f32 %v781, %v1105
        %v1170 = vadd.f32 %v782, %v1106
        %v1171 = vadd.f32 %v783, %v1107
        %v1172 = vadd.f32 %v784, %v1108
        %v1173 = vadd.f32 %v785, %v1109
        %v1174 = vadd.f32 %v786, %v1110
        %v1175 = vadd.f32 %v787, %v1111
        %v1176 = vadd.f32 %v788, %v1112
        %v1177 = vadd.f32 %v789, %v1113
        %v1178 = vadd.f32 %v790, %v1114
        %v1179 = vadd.f32 %v791, %v1115
        %v1180 = vadd.f32 %v792, %v1116
        %v1181 = vadd.f32 %v793, %v1117
        %v1182 = vadd.f32 %v794, %v1118
        %v1183 = vadd.f32 %v795, %v1119
        %v1184 = vadd.f32 %v796, %v1120
        %v1185 = vadd.f32 %v797, %v1121
        %v1186 = vadd.f32 %v798, %v1122
        %v1187 = vadd.f32 %v799, %v1123
        %1188 = vset.pattern.permute.xlu0 2
        %1189 = vperm.xlu0 %1188, %v347
        %v1190 = vpop.permute.xlu0 %1189
        %1192 = vset.pattern.permute.xlu0 2
        %1193 = vperm.xlu0 %1192, %v348
        %v1194 = vpop.permute.xlu0 %1193
        %1196 = vset.pattern.permute.xlu0 2
        %1197 = vperm.xlu0 %1196, %v349
        %v1198 = vpop.permute.xlu0 %1197
        %1200 = vset.pattern.permute.xlu0 2
        %1201 = vperm.xlu0 %1200, %v350
        %v1202 = vpop.permute.xlu0 %1201
        %1204 = vset.pattern.permute.xlu0 2
        %1205 = vperm.xlu0 %1204, %v351
        %v1206 = vpop.permute.xlu0 %1205
        %1208 = vset.pattern.permute.xlu0 2
        %1209 = vperm.xlu0 %1208, %v352
        %v1210 = vpop.permute.xlu0 %1209
        %1212 = vset.pattern.permute.xlu0 2
        %1213 = vperm.xlu0 %1212, %v353
        %v1214 = vpop.permute.xlu0 %1213
        %1216 = vset.pattern.permute.xlu0 2
        %1217 = vperm.xlu0 %1216, %v354
        %v1218 = vpop.permute.xlu0 %1217
        %1220 = vset.pattern.permute.xlu0 2
        %1221 = vperm.xlu0 %1220, %v355
        %v1222 = vpop.permute.xlu0 %1221
        %1224 = vset.pattern.permute.xlu0 2
        %1225 = vperm.xlu0 %1224, %v356
        %v1226 = vpop.permute.xlu0 %1225
        %1228 = vset.pattern.permute.xlu0 2
        %1229 = vperm.xlu0 %1228, %v357
        %v1230 = vpop.permute.xlu0 %1229
        %1232 = vset.pattern.permute.xlu0 2
        %1233 = vperm.xlu0 %1232, %v358
        %v1234 = vpop.permute.xlu0 %1233
        %1236 = vset.pattern.permute.xlu0 2
        %1237 = vperm.xlu0 %1236, %v359
        %v1238 = vpop.permute.xlu0 %1237
        %1240 = vset.pattern.permute.xlu0 2
        %1241 = vperm.xlu0 %1240, %v360
        %v1242 = vpop.permute.xlu0 %1241
        %1244 = vset.pattern.permute.xlu0 2
        %1245 = vperm.xlu0 %1244, %v361
        %v1246 = vpop.permute.xlu0 %1245
        %1248 = vset.pattern.permute.xlu0 2
        %1249 = vperm.xlu0 %1248, %v362
        %v1250 = vpop.permute.xlu0 %1249
        %1252 = vset.pattern.permute.xlu0 2
        %1253 = vperm.xlu0 %1252, %v363
        %v1254 = vpop.permute.xlu0 %1253
        %1256 = vset.pattern.permute.xlu0 2
        %1257 = vperm.xlu0 %1256, %v364
        %v1258 = vpop.permute.xlu0 %1257
        %1260 = vset.pattern.permute.xlu0 2
        %1261 = vperm.xlu0 %1260, %v365
        %v1262 = vpop.permute.xlu0 %1261
        %1264 = vset.pattern.permute.xlu0 2
        %1265 = vperm.xlu0 %1264, %v366
        %v1266 = vpop.permute.xlu0 %1265
        %1268 = vset.pattern.permute.xlu0 2
        %1269 = vperm.xlu0 %1268, %v367
        %v1270 = vpop.permute.xlu0 %1269
        %1272 = vset.pattern.permute.xlu0 2
        %1273 = vperm.xlu0 %1272, %v368
        %v1274 = vpop.permute.xlu0 %1273
        %1276 = vset.pattern.permute.xlu0 2
        %1277 = vperm.xlu0 %1276, %v369
        %v1278 = vpop.permute.xlu0 %1277
        %1280 = vset.pattern.permute.xlu0 2
        %1281 = vperm.xlu0 %1280, %v370
        %v1282 = vpop.permute.xlu0 %1281
        %1284 = vset.pattern.permute.xlu0 2
        %1285 = vperm.xlu0 %1284, %v371
        %v1286 = vpop.permute.xlu0 %1285
        %1288 = vset.pattern.permute.xlu0 2
        %1289 = vperm.xlu0 %1288, %v372
        %v1290 = vpop.permute.xlu0 %1289
        %1292 = vset.pattern.permute.xlu0 2
        %1293 = vperm.xlu0 %1292, %v373
        %v1294 = vpop.permute.xlu0 %1293
        %1296 = vset.pattern.permute.xlu0 2
        %1297 = vperm.xlu0 %1296, %v374
        %v1298 = vpop.permute.xlu0 %1297
        %1300 = vset.pattern.permute.xlu0 2
        %1301 = vperm.xlu0 %1300, %v375
        %v1302 = vpop.permute.xlu0 %1301
        %1304 = vset.pattern.permute.xlu0 2
        %1305 = vperm.xlu0 %1304, %v376
        %v1306 = vpop.permute.xlu0 %1305
        %1308 = vset.pattern.permute.xlu0 2
        %1309 = vperm.xlu0 %1308, %v377
        %v1310 = vpop.permute.xlu0 %1309
        %1312 = vset.pattern.permute.xlu0 2
        %1313 = vperm.xlu0 %1312, %v378
        %v1314 = vpop.permute.xlu0 %1313
        %1316 = vset.pattern.permute.xlu0 2
        %1317 = vperm.xlu0 %1316, %v379
        %v1318 = vpop.permute.xlu0 %1317
        %1320 = vset.pattern.permute.xlu0 2
        %1321 = vperm.xlu0 %1320, %v380
        %v1322 = vpop.permute.xlu0 %1321
        %1324 = vset.pattern.permute.xlu0 2
        %1325 = vperm.xlu0 %1324, %v381
        %v1326 = vpop.permute.xlu0 %1325
        %1328 = vset.pattern.permute.xlu0 2
        %1329 = vperm.xlu0 %1328, %v382
        %v1330 = vpop.permute.xlu0 %1329
        %1332 = vset.pattern.permute.xlu0 2
        %1333 = vperm.xlu0 %1332, %v383
        %v1334 = vpop.permute.xlu0 %1333
        %1336 = vset.pattern.permute.xlu0 2
        %1337 = vperm.xlu0 %1336, %v384
        %v1338 = vpop.permute.xlu0 %1337
        %1340 = vset.pattern.permute.xlu0 2
        %1341 = vperm.xlu0 %1340, %v385
        %v1342 = vpop.permute.xlu0 %1341
        %1344 = vset.pattern.permute.xlu0 2
        %1345 = vperm.xlu0 %1344, %v386
        %v1346 = vpop.permute.xlu0 %1345
        %1348 = vset.pattern.permute.xlu0 2
        %1349 = vperm.xlu0 %1348, %v387
        %v1350 = vpop.permute.xlu0 %1349
        %1352 = vset.pattern.permute.xlu0 2
        %1353 = vperm.xlu0 %1352, %v388
        %v1354 = vpop.permute.xlu0 %1353
        %1356 = vset.pattern.permute.xlu0 2
        %1357 = vperm.xlu0 %1356, %v389
        %v1358 = vpop.permute.xlu0 %1357
        %1360 = vset.pattern.permute.xlu0 2
        %1361 = vperm.xlu0 %1360, %v390
        %v1362 = vpop.permute.xlu0 %1361
        %1364 = vset.pattern.permute.xlu0 2
        %1365 = vperm.xlu0 %1364, %v391
        %v1366 = vpop.permute.xlu0 %1365
        %1368 = vset.pattern.permute.xlu0 2
        %1369 = vperm.xlu0 %1368, %v392
        %v1370 = vpop.permute.xlu0 %1369
        %1372 = vset.pattern.permute.xlu0 2
        %1373 = vperm.xlu0 %1372, %v393
        %v1374 = vpop.permute.xlu0 %1373
        %1376 = vset.pattern.permute.xlu0 2
        %1377 = vperm.xlu0 %1376, %v394
        %v1378 = vpop.permute.xlu0 %1377
        %1380 = vset.pattern.permute.xlu0 2
        %1381 = vperm.xlu0 %1380, %v395
        %v1382 = vpop.permute.xlu0 %1381
        %1384 = vset.pattern.permute.xlu0 2
        %1385 = vperm.xlu0 %1384, %v396
        %v1386 = vpop.permute.xlu0 %1385
        %1388 = vset.pattern.permute.xlu0 2
        %1389 = vperm.xlu0 %1388, %v397
        %v1390 = vpop.permute.xlu0 %1389
        %1392 = vset.pattern.permute.xlu0 2
        %1393 = vperm.xlu0 %1392, %v398
        %v1394 = vpop.permute.xlu0 %1393
        %1396 = vset.pattern.permute.xlu0 2
        %1397 = vperm.xlu0 %1396, %v399
        %v1398 = vpop.permute.xlu0 %1397
        %1400 = vset.pattern.permute.xlu0 2
        %1401 = vperm.xlu0 %1400, %v400
        %v1402 = vpop.permute.xlu0 %1401
        %1404 = vset.pattern.permute.xlu0 2
        %1405 = vperm.xlu0 %1404, %v401
        %v1406 = vpop.permute.xlu0 %1405
        %1408 = vset.pattern.permute.xlu0 2
        %1409 = vperm.xlu0 %1408, %v402
        %v1410 = vpop.permute.xlu0 %1409
        %1412 = vset.pattern.permute.xlu0 2
        %1413 = vperm.xlu0 %1412, %v403
        %v1414 = vpop.permute.xlu0 %1413
        %1416 = vset.pattern.permute.xlu0 2
        %1417 = vperm.xlu0 %1416, %v404
        %v1418 = vpop.permute.xlu0 %1417
        %1420 = vset.pattern.permute.xlu0 2
        %1421 = vperm.xlu0 %1420, %v405
        %v1422 = vpop.permute.xlu0 %1421
        %1424 = vset.pattern.permute.xlu0 2
        %1425 = vperm.xlu0 %1424, %v406
        %v1426 = vpop.permute.xlu0 %1425
        %1428 = vset.pattern.permute.xlu0 2
        %1429 = vperm.xlu0 %1428, %v407
        %v1430 = vpop.permute.xlu0 %1429
        %1432 = vset.pattern.permute.xlu0 2
        %1433 = vperm.xlu0 %1432, %v408
        %v1434 = vpop.permute.xlu0 %1433
        %1436 = vset.pattern.permute.xlu0 2
        %1437 = vperm.xlu0 %1436, %v409
        %v1438 = vpop.permute.xlu0 %1437
        %1440 = vset.pattern.permute.xlu0 2
        %1441 = vperm.xlu0 %1440, %v410
        %v1442 = vpop.permute.xlu0 %1441
        %v1444 = vlaneseq
        %v1445 = vshrl.u32 %v1444, 7
        %v1446 = vsub.s32 2, %v1445
        %v1447 = vrot.slane %v411, %v1446
        %v1448 = vmul.f32 %v1190, %v1447
        %v1449 = vmul.f32 %v1194, %v1447
        %v1450 = vmul.f32 %v1198, %v1447
        %v1451 = vmul.f32 %v1202, %v1447
        %v1452 = vmul.f32 %v1206, %v1447
        %v1453 = vmul.f32 %v1210, %v1447
        %v1454 = vmul.f32 %v1214, %v1447
        %v1455 = vmul.f32 %v1218, %v1447
        %v1456 = vmul.f32 %v1222, %v1447
        %v1457 = vmul.f32 %v1226, %v1447
        %v1458 = vmul.f32 %v1230, %v1447
        %v1459 = vmul.f32 %v1234, %v1447
        %v1460 = vmul.f32 %v1238, %v1447
        %v1461 = vmul.f32 %v1242, %v1447
        %v1462 = vmul.f32 %v1246, %v1447
        %v1463 = vmul.f32 %v1250, %v1447
        %v1464 = vmul.f32 %v1254, %v1447
        %v1465 = vmul.f32 %v1258, %v1447
        %v1466 = vmul.f32 %v1262, %v1447
        %v1467 = vmul.f32 %v1266, %v1447
        %v1468 = vmul.f32 %v1270, %v1447
        %v1469 = vmul.f32 %v1274, %v1447
        %v1470 = vmul.f32 %v1278, %v1447
        %v1471 = vmul.f32 %v1282, %v1447
        %v1472 = vmul.f32 %v1286, %v1447
        %v1473 = vmul.f32 %v1290, %v1447
        %v1474 = vmul.f32 %v1294, %v1447
        %v1475 = vmul.f32 %v1298, %v1447
        %v1476 = vmul.f32 %v1302, %v1447
        %v1477 = vmul.f32 %v1306, %v1447
        %v1478 = vmul.f32 %v1310, %v1447
        %v1479 = vmul.f32 %v1314, %v1447
        %v1480 = vmul.f32 %v1318, %v1447
        %v1481 = vmul.f32 %v1322, %v1447
        %v1482 = vmul.f32 %v1326, %v1447
        %v1483 = vmul.f32 %v1330, %v1447
        %v1484 = vmul.f32 %v1334, %v1447
        %v1485 = vmul.f32 %v1338, %v1447
        %v1486 = vmul.f32 %v1342, %v1447
        %v1487 = vmul.f32 %v1346, %v1447
        %v1488 = vmul.f32 %v1350, %v1447
        %v1489 = vmul.f32 %v1354, %v1447
        %v1490 = vmul.f32 %v1358, %v1447
        %v1491 = vmul.f32 %v1362, %v1447
        %v1492 = vmul.f32 %v1366, %v1447
        %v1493 = vmul.f32 %v1370, %v1447
        %v1494 = vmul.f32 %v1374, %v1447
        %v1495 = vmul.f32 %v1378, %v1447
        %v1496 = vmul.f32 %v1382, %v1447
        %v1497 = vmul.f32 %v1386, %v1447
        %v1498 = vmul.f32 %v1390, %v1447
        %v1499 = vmul.f32 %v1394, %v1447
        %v1500 = vmul.f32 %v1398, %v1447
        %v1501 = vmul.f32 %v1402, %v1447
        %v1502 = vmul.f32 %v1406, %v1447
        %v1503 = vmul.f32 %v1410, %v1447
        %v1504 = vmul.f32 %v1414, %v1447
        %v1505 = vmul.f32 %v1418, %v1447
        %v1506 = vmul.f32 %v1422, %v1447
        %v1507 = vmul.f32 %v1426, %v1447
        %v1508 = vmul.f32 %v1430, %v1447
        %v1509 = vmul.f32 %v1434, %v1447
        %v1510 = vmul.f32 %v1438, %v1447
        %v1511 = vmul.f32 %v1442, %v1447
        %v1512 = vadd.f32 %v1124, %v1448
        %v1513 = vadd.f32 %v1125, %v1449
        %v1514 = vadd.f32 %v1126, %v1450
        %v1515 = vadd.f32 %v1127, %v1451
        %v1516 = vadd.f32 %v1128, %v1452
        %v1517 = vadd.f32 %v1129, %v1453
        %v1518 = vadd.f32 %v1130, %v1454
        %v1519 = vadd.f32 %v1131, %v1455
        %v1520 = vadd.f32 %v1132, %v1456
        %v1521 = vadd.f32 %v1133, %v1457
        %v1522 = vadd.f32 %v1134, %v1458
        %v1523 = vadd.f32 %v1135, %v1459
        %v1524 = vadd.f32 %v1136, %v1460
        %v1525 = vadd.f32 %v1137, %v1461
        %v1526 = vadd.f32 %v1138, %v1462
        %v1527 = vadd.f32 %v1139, %v1463
        %v1528 = vadd.f32 %v1140, %v1464
        %v1529 = vadd.f32 %v1141, %v1465
        %v1530 = vadd.f32 %v1142, %v1466
        %v1531 = vadd.f32 %v1143, %v1467
        %v1532 = vadd.f32 %v1144, %v1468
        %v1533 = vadd.f32 %v1145, %v1469
        %v1534 = vadd.f32 %v1146, %v1470
        %v1535 = vadd.f32 %v1147, %v1471
        %v1536 = vadd.f32 %v1148, %v1472
        %v1537 = vadd.f32 %v1149, %v1473
        %v1538 = vadd.f32 %v1150, %v1474
        %v1539 = vadd.f32 %v1151, %v1475
        %v1540 = vadd.f32 %v1152, %v1476
        %v1541 = vadd.f32 %v1153, %v1477
        %v1542 = vadd.f32 %v1154, %v1478
        %v1543 = vadd.f32 %v1155, %v1479
        %v1544 = vadd.f32 %v1156, %v1480
        %v1545 = vadd.f32 %v1157, %v1481
        %v1546 = vadd.f32 %v1158, %v1482
        %v1547 = vadd.f32 %v1159, %v1483
        %v1548 = vadd.f32 %v1160, %v1484
        %v1549 = vadd.f32 %v1161, %v1485
        %v1550 = vadd.f32 %v1162, %v1486
        %v1551 = vadd.f32 %v1163, %v1487
        %v1552 = vadd.f32 %v1164, %v1488
        %v1553 = vadd.f32 %v1165, %v1489
        %v1554 = vadd.f32 %v1166, %v1490
        %v1555 = vadd.f32 %v1167, %v1491
        %v1556 = vadd.f32 %v1168, %v1492
        %v1557 = vadd.f32 %v1169, %v1493
        %v1558 = vadd.f32 %v1170, %v1494
        %v1559 = vadd.f32 %v1171, %v1495
        %v1560 = vadd.f32 %v1172, %v1496
        %v1561 = vadd.f32 %v1173, %v1497
        %v1562 = vadd.f32 %v1174, %v1498
        %v1563 = vadd.f32 %v1175, %v1499
        %v1564 = vadd.f32 %v1176, %v1500
        %v1565 = vadd.f32 %v1177, %v1501
        %v1566 = vadd.f32 %v1178, %v1502
        %v1567 = vadd.f32 %v1179, %v1503
        %v1568 = vadd.f32 %v1180, %v1504
        %v1569 = vadd.f32 %v1181, %v1505
        %v1570 = vadd.f32 %v1182, %v1506
        %v1571 = vadd.f32 %v1183, %v1507
        %v1572 = vadd.f32 %v1184, %v1508
        %v1573 = vadd.f32 %v1185, %v1509
        %v1574 = vadd.f32 %v1186, %v1510
        %v1575 = vadd.f32 %v1187, %v1511
        %v1576 = vld [vmem:[%s2] sm:$0x1]
        %v1578 = vlaneseq
        %v1579 = vshrl.u32 %v1578, 7
        %v1580 = vsub.s32 0, %v1579
        %v1581 = vrot.slane %v1576, %v1580
        %v1583 = vadd.f32 %v1512, %v1581
        %v1584 = vadd.f32 %v1513, %v1581
        %v1585 = vadd.f32 %v1514, %v1581
        %v1586 = vadd.f32 %v1515, %v1581
        %v1587 = vadd.f32 %v1516, %v1581
        %v1588 = vadd.f32 %v1517, %v1581
        %v1589 = vadd.f32 %v1518, %v1581
        %v1590 = vadd.f32 %v1519, %v1581
        %v1591 = vadd.f32 %v1520, %v1581
        %v1592 = vadd.f32 %v1521, %v1581
        %v1593 = vadd.f32 %v1522, %v1581
        %v1594 = vadd.f32 %v1523, %v1581
        %v1595 = vadd.f32 %v1524, %v1581
        %v1596 = vadd.f32 %v1525, %v1581
        %v1597 = vadd.f32 %v1526, %v1581
        %v1598 = vadd.f32 %v1527, %v1581
        %v1599 = vadd.f32 %v1528, %v1581
        %v1600 = vadd.f32 %v1529, %v1581
        %v1601 = vadd.f32 %v1530, %v1581
        %v1602 = vadd.f32 %v1531, %v1581
        %v1603 = vadd.f32 %v1532, %v1581
        %v1604 = vadd.f32 %v1533, %v1581
        %v1605 = vadd.f32 %v1534, %v1581
        %v1606 = vadd.f32 %v1535, %v1581
        %v1607 = vadd.f32 %v1536, %v1581
        %v1608 = vadd.f32 %v1537, %v1581
        %v1609 = vadd.f32 %v1538, %v1581
        %v1610 = vadd.f32 %v1539, %v1581
        %v1611 = vadd.f32 %v1540, %v1581
        %v1612 = vadd.f32 %v1541, %v1581
        %v1613 = vadd.f32 %v1542, %v1581
        %v1614 = vadd.f32 %v1543, %v1581
        %v1615 = vadd.f32 %v1544, %v1581
        %v1616 = vadd.f32 %v1545, %v1581
        %v1617 = vadd.f32 %v1546, %v1581
        %v1618 = vadd.f32 %v1547, %v1581
        %v1619 = vadd.f32 %v1548, %v1581
        %v1620 = vadd.f32 %v1549, %v1581
        %v1621 = vadd.f32 %v1550, %v1581
        %v1622 = vadd.f32 %v1551, %v1581
        %v1623 = vadd.f32 %v1552, %v1581
        %v1624 = vadd.f32 %v1553, %v1581
        %v1625 = vadd.f32 %v1554, %v1581
        %v1626 = vadd.f32 %v1555, %v1581
        %v1627 = vadd.f32 %v1556, %v1581
        %v1628 = vadd.f32 %v1557, %v1581
        %v1629 = vadd.f32 %v1558, %v1581
        %v1630 = vadd.f32 %v1559, %v1581
        %v1631 = vadd.f32 %v1560, %v1581
        %v1632 = vadd.f32 %v1561, %v1581
        %v1633 = vadd.f32 %v1562, %v1581
        %v1634 = vadd.f32 %v1563, %v1581
        %v1635 = vadd.f32 %v1564, %v1581
        %v1636 = vadd.f32 %v1565, %v1581
        %v1637 = vadd.f32 %v1566, %v1581
        %v1638 = vadd.f32 %v1567, %v1581
        %v1639 = vadd.f32 %v1568, %v1581
        %v1640 = vadd.f32 %v1569, %v1581
        %v1641 = vadd.f32 %v1570, %v1581
        %v1642 = vadd.f32 %v1571, %v1581
        %v1643 = vadd.f32 %v1572, %v1581
        %v1644 = vadd.f32 %v1573, %v1581
        %v1645 = vadd.f32 %v1574, %v1581
        %v1646 = vadd.f32 %v1575, %v1581
        %v1647 = vmax.f32 %v1583, 0.0
        %v1648 = vmax.f32 %v1584, 0.0
        %v1649 = vmax.f32 %v1585, 0.0
        %v1650 = vmax.f32 %v1586, 0.0
        %v1651 = vmax.f32 %v1587, 0.0
        %v1652 = vmax.f32 %v1588, 0.0
        %v1653 = vmax.f32 %v1589, 0.0
        %v1654 = vmax.f32 %v1590, 0.0
        %v1655 = vmax.f32 %v1591, 0.0
        %v1656 = vmax.f32 %v1592, 0.0
        %v1657 = vmax.f32 %v1593, 0.0
        %v1658 = vmax.f32 %v1594, 0.0
        %v1659 = vmax.f32 %v1595, 0.0
        %v1660 = vmax.f32 %v1596, 0.0
        %v1661 = vmax.f32 %v1597, 0.0
        %v1662 = vmax.f32 %v1598, 0.0
        %v1663 = vmax.f32 %v1599, 0.0
        %v1664 = vmax.f32 %v1600, 0.0
        %v1665 = vmax.f32 %v1601, 0.0
        %v1666 = vmax.f32 %v1602, 0.0
        %v1667 = vmax.f32 %v1603, 0.0
        %v1668 = vmax.f32 %v1604, 0.0
        %v1669 = vmax.f32 %v1605, 0.0
        %v1670 = vmax.f32 %v1606, 0.0
        %v1671 = vmax.f32 %v1607, 0.0
        %v1672 = vmax.f32 %v1608, 0.0
        %v1673 = vmax.f32 %v1609, 0.0
        %v1674 = vmax.f32 %v1610, 0.0
        %v1675 = vmax.f32 %v1611, 0.0
        %v1676 = vmax.f32 %v1612, 0.0
        %v1677 = vmax.f32 %v1613, 0.0
        %v1678 = vmax.f32 %v1614, 0.0
        %v1679 = vmax.f32 %v1615, 0.0
        %v1680 = vmax.f32 %v1616, 0.0
        %v1681 = vmax.f32 %v1617, 0.0
        %v1682 = vmax.f32 %v1618, 0.0
        %v1683 = vmax.f32 %v1619, 0.0
        %v1684 = vmax.f32 %v1620, 0.0
        %v1685 = vmax.f32 %v1621, 0.0
        %v1686 = vmax.f32 %v1622, 0.0
        %v1687 = vmax.f32 %v1623, 0.0
        %v1688 = vmax.f32 %v1624, 0.0
        %v1689 = vmax.f32 %v1625, 0.0
        %v1690 = vmax.f32 %v1626, 0.0
        %v1691 = vmax.f32 %v1627, 0.0
        %v1692 = vmax.f32 %v1628, 0.0
        %v1693 = vmax.f32 %v1629, 0.0
        %v1694 = vmax.f32 %v1630, 0.0
        %v1695 = vmax.f32 %v1631, 0.0
        %v1696 = vmax.f32 %v1632, 0.0
        %v1697 = vmax.f32 %v1633, 0.0
        %v1698 = vmax.f32 %v1634, 0.0
        %v1699 = vmax.f32 %v1635, 0.0
        %v1700 = vmax.f32 %v1636, 0.0
        %v1701 = vmax.f32 %v1637, 0.0
        %v1702 = vmax.f32 %v1638, 0.0
        %v1703 = vmax.f32 %v1639, 0.0
        %v1704 = vmax.f32 %v1640, 0.0
        %v1705 = vmax.f32 %v1641, 0.0
        %v1706 = vmax.f32 %v1642, 0.0
        %v1707 = vmax.f32 %v1643, 0.0
        %v1708 = vmax.f32 %v1644, 0.0
        %v1709 = vmax.f32 %v1645, 0.0
        %v1710 = vmax.f32 %v1646, 0.0
        %1711 = vxpose.xlu0.b32.start [1/16] %v1647, 128
        %1712 = vxpose.xlu0.b32.cont [2/16] %v1648, 128
        %1713 = vxpose.xlu0.b32.cont [3/16] %v1649, 128
        %1714 = vxpose.xlu0.b32.cont [4/16] %v1650, 128
        %1715 = vxpose.xlu0.b32.cont [5/16] %v1651, 128
        %1716 = vxpose.xlu0.b32.cont [6/16] %v1652, 128
        %1717 = vxpose.xlu0.b32.cont [7/16] %v1653, 128
        %1718 = vxpose.xlu0.b32.cont [8/16] %v1654, 128
        %1719 = vxpose.xlu0.b32.cont [9/16] %v1655, 128
        %1720 = vxpose.xlu0.b32.cont [10/16] %v1656, 128
        %1721 = vxpose.xlu0.b32.cont [11/16] %v1657, 128
        %1722 = vxpose.xlu0.b32.cont [12/16] %v1658, 128
        %1723 = vxpose.xlu0.b32.cont [13/16] %v1659, 128
        %1724 = vxpose.xlu0.b32.cont [14/16] %v1660, 128
        %1725 = vxpose.xlu0.b32.cont [15/16] %v1661, 128
        %1726 = vxpose.xlu0.b32.end [16/16] %v1662, 128
        %v1727 = vpop.trf.xlu0
        %v1728 = vpop.trf.xlu0
        %v1729 = vpop.trf.xlu0
        %v1730 = vpop.trf.xlu0
        %v1731 = vpop.trf.xlu0
        %v1732 = vpop.trf.xlu0
        %v1733 = vpop.trf.xlu0
        %v1734 = vpop.trf.xlu0
        %v1735 = vpop.trf.xlu0
        %v1736 = vpop.trf.xlu0
        %v1737 = vpop.trf.xlu0
        %v1738 = vpop.trf.xlu0
        %v1739 = vpop.trf.xlu0
        %v1740 = vpop.trf.xlu0
        %v1741 = vpop.trf.xlu0
        %v1742 = vpop.trf.xlu0
        %1743 = vxpose.xlu0.b32.start [1/16] %v1663, 128
        %1744 = vxpose.xlu0.b32.cont [2/16] %v1664, 128
        %1745 = vxpose.xlu0.b32.cont [3/16] %v1665, 128
        %1746 = vxpose.xlu0.b32.cont [4/16] %v1666, 128
        %1747 = vxpose.xlu0.b32.cont [5/16] %v1667, 128
        %1748 = vxpose.xlu0.b32.cont [6/16] %v1668, 128
        %1749 = vxpose.xlu0.b32.cont [7/16] %v1669, 128
        %1750 = vxpose.xlu0.b32.cont [8/16] %v1670, 128
        %1751 = vxpose.xlu0.b32.cont [9/16] %v1671, 128
        %1752 = vxpose.xlu0.b32.cont [10/16] %v1672, 128
        %1753 = vxpose.xlu0.b32.cont [11/16] %v1673, 128
        %1754 = vxpose.xlu0.b32.cont [12/16] %v1674, 128
        %1755 = vxpose.xlu0.b32.cont [13/16] %v1675, 128
        %1756 = vxpose.xlu0.b32.cont [14/16] %v1676, 128
        %1757 = vxpose.xlu0.b32.cont [15/16] %v1677, 128
        %1758 = vxpose.xlu0.b32.end [16/16] %v1678, 128
        %v1759 = vpop.trf.xlu0
        %v1760 = vpop.trf.xlu0
        %v1761 = vpop.trf.xlu0
        %v1762 = vpop.trf.xlu0
        %v1763 = vpop.trf.xlu0
        %v1764 = vpop.trf.xlu0
        %v1765 = vpop.trf.xlu0
        %v1766 = vpop.trf.xlu0
        %v1767 = vpop.trf.xlu0
        %v1768 = vpop.trf.xlu0
        %v1769 = vpop.trf.xlu0
        %v1770 = vpop.trf.xlu0
        %v1771 = vpop.trf.xlu0
        %v1772 = vpop.trf.xlu0
        %v1773 = vpop.trf.xlu0
        %v1774 = vpop.trf.xlu0
        %1775 = vxpose.xlu0.b32.start [1/16] %v1679, 128
        %1776 = vxpose.xlu0.b32.cont [2/16] %v1680, 128
        %1777 = vxpose.xlu0.b32.cont [3/16] %v1681, 128
        %1778 = vxpose.xlu0.b32.cont [4/16] %v1682, 128
        %1779 = vxpose.xlu0.b32.cont [5/16] %v1683, 128
        %1780 = vxpose.xlu0.b32.cont [6/16] %v1684, 128
        %1781 = vxpose.xlu0.b32.cont [7/16] %v1685, 128
        %1782 = vxpose.xlu0.b32.cont [8/16] %v1686, 128
        %1783 = vxpose.xlu0.b32.cont [9/16] %v1687, 128
        %1784 = vxpose.xlu0.b32.cont [10/16] %v1688, 128
        %1785 = vxpose.xlu0.b32.cont [11/16] %v1689, 128
        %1786 = vxpose.xlu0.b32.cont [12/16] %v1690, 128
        %1787 = vxpose.xlu0.b32.cont [13/16] %v1691, 128
        %1788 = vxpose.xlu0.b32.cont [14/16] %v1692, 128
        %1789 = vxpose.xlu0.b32.cont [15/16] %v1693, 128
        %1790 = vxpose.xlu0.b32.end [16/16] %v1694, 128
        %v1791 = vpop.trf.xlu0
        %v1792 = vpop.trf.xlu0
        %v1793 = vpop.trf.xlu0
        %v1794 = vpop.trf.xlu0
        %v1795 = vpop.trf.xlu0
        %v1796 = vpop.trf.xlu0
        %v1797 = vpop.trf.xlu0
        %v1798 = vpop.trf.xlu0
        %v1799 = vpop.trf.xlu0
        %v1800 = vpop.trf.xlu0
        %v1801 = vpop.trf.xlu0
        %v1802 = vpop.trf.xlu0
        %v1803 = vpop.trf.xlu0
        %v1804 = vpop.trf.xlu0
        %v1805 = vpop.trf.xlu0
        %v1806 = vpop.trf.xlu0
        %1807 = vxpose.xlu0.b32.start [1/16] %v1695, 128
        %1808 = vxpose.xlu0.b32.cont [2/16] %v1696, 128
        %1809 = vxpose.xlu0.b32.cont [3/16] %v1697, 128
        %1810 = vxpose.xlu0.b32.cont [4/16] %v1698, 128
        %1811 = vxpose.xlu0.b32.cont [5/16] %v1699, 128
        %1812 = vxpose.xlu0.b32.cont [6/16] %v1700, 128
        %1813 = vxpose.xlu0.b32.cont [7/16] %v1701, 128
        %1814 = vxpose.xlu0.b32.cont [8/16] %v1702, 128
        %1815 = vxpose.xlu0.b32.cont [9/16] %v1703, 128
        %1816 = vxpose.xlu0.b32.cont [10/16] %v1704, 128
        %1817 = vxpose.xlu0.b32.cont [11/16] %v1705, 128
        %1818 = vxpose.xlu0.b32.cont [12/16] %v1706, 128
        %1819 = vxpose.xlu0.b32.cont [13/16] %v1707, 128
        %1820 = vxpose.xlu0.b32.cont [14/16] %v1708, 128
        %1821 = vxpose.xlu0.b32.cont [15/16] %v1709, 128
        %1822 = vxpose.xlu0.b32.end [16/16] %v1710, 128
        %v1823 = vpop.trf.xlu0
        %v1824 = vpop.trf.xlu0
        %v1825 = vpop.trf.xlu0
        %v1826 = vpop.trf.xlu0
        %v1827 = vpop.trf.xlu0
        %v1828 = vpop.trf.xlu0
        %v1829 = vpop.trf.xlu0
        %v1830 = vpop.trf.xlu0
        %v1831 = vpop.trf.xlu0
        %v1832 = vpop.trf.xlu0
        %v1833 = vpop.trf.xlu0
        %v1834 = vpop.trf.xlu0
        %v1835 = vpop.trf.xlu0
        %v1836 = vpop.trf.xlu0
        %v1837 = vpop.trf.xlu0
        %v1838 = vpop.trf.xlu0
        %1839 = vst [vmem:[%s327] sm:$0xff] %v1727
        %1840 = vst [vmem:[%s327 + $0x8] sm:$0xff] %v1759
        %1841 = vst [vmem:[%s327 + $0x10] sm:$0xff] %v1791
        %1842 = vst [vmem:[%s327 + $0x18] sm:$0xff] %v1823
        %1843 = vst [vmem:[%s327 + $0x20] sm:$0xff] %v1728
        %1844 = vst [vmem:[%s327 + $0x28] sm:$0xff] %v1760
        %1845 = vst [vmem:[%s327 + $0x30] sm:$0xff] %v1792
        %1846 = vst [vmem:[%s327 + $0x38] sm:$0xff] %v1824
        %1847 = vst [vmem:[%s327 + $0x40] sm:$0xff] %v1729
        %1848 = vst [vmem:[%s327 + $0x48] sm:$0xff] %v1761
        %1849 = vst [vmem:[%s327 + $0x50] sm:$0xff] %v1793
        %1850 = vst [vmem:[%s327 + $0x58] sm:$0xff] %v1825
        %1851 = vst [vmem:[%s327 + $0x60] sm:$0xff] %v1730
        %1852 = vst [vmem:[%s327 + $0x68] sm:$0xff] %v1762
        %1853 = vst [vmem:[%s327 + $0x70] sm:$0xff] %v1794
        %1854 = vst [vmem:[%s327 + $0x78] sm:$0xff] %v1826
        %1855 = vst [vmem:[%s327 + $0x80] sm:$0xff] %v1731
        %1856 = vst [vmem:[%s327 + $0x88] sm:$0xff] %v1763
        %1857 = vst [vmem:[%s327 + $0x90] sm:$0xff] %v1795
        %1858 = vst [vmem:[%s327 + $0x98] sm:$0xff] %v1827
        %1859 = vst [vmem:[%s327 + $0xa0] sm:$0xff] %v1732
        %1860 = vst [vmem:[%s327 + $0xa8] sm:$0xff] %v1764
        %1861 = vst [vmem:[%s327 + $0xb0] sm:$0xff] %v1796
        %1862 = vst [vmem:[%s327 + $0xb8] sm:$0xff] %v1828
        %1863 = vst [vmem:[%s327 + $0xc0] sm:$0xff] %v1733
        %1864 = vst [vmem:[%s327 + $0xc8] sm:$0xff] %v1765
        %1865 = vst [vmem:[%s327 + $0xd0] sm:$0xff] %v1797
        %1866 = vst [vmem:[%s327 + $0xd8] sm:$0xff] %v1829
        %1867 = vst [vmem:[%s327 + $0xe0] sm:$0xff] %v1734
        %1868 = vst [vmem:[%s327 + $0xe8] sm:$0xff] %v1766
        %1869 = vst [vmem:[%s327 + $0xf0] sm:$0xff] %v1798
        %1870 = vst [vmem:[%s327 + $0xf8] sm:$0xff] %v1830
        %v1871 = vpack.c.bf16 %v1648, %v1647
        %v1872 = vpack.c.bf16 %v1650, %v1649
        %v1873 = vpack.c.bf16 %v1652, %v1651
        %v1874 = vpack.c.bf16 %v1654, %v1653
        %v1875 = vpack.c.bf16 %v1656, %v1655
        %v1876 = vpack.c.bf16 %v1658, %v1657
        %v1877 = vpack.c.bf16 %v1660, %v1659
        %v1878 = vpack.c.bf16 %v1662, %v1661
        %v1879 = vpack.c.bf16 %v1664, %v1663
        %v1880 = vpack.c.bf16 %v1666, %v1665
        %v1881 = vpack.c.bf16 %v1668, %v1667
        %v1882 = vpack.c.bf16 %v1670, %v1669
        %v1883 = vpack.c.bf16 %v1672, %v1671
        %v1884 = vpack.c.bf16 %v1674, %v1673
        %v1885 = vpack.c.bf16 %v1676, %v1675
        %v1886 = vpack.c.bf16 %v1678, %v1677
        %v1887 = vpack.c.bf16 %v1680, %v1679
        %v1888 = vpack.c.bf16 %v1682, %v1681
        %v1889 = vpack.c.bf16 %v1684, %v1683
        %v1890 = vpack.c.bf16 %v1686, %v1685
        %v1891 = vpack.c.bf16 %v1688, %v1687
        %v1892 = vpack.c.bf16 %v1690, %v1689
        %v1893 = vpack.c.bf16 %v1692, %v1691
        %v1894 = vpack.c.bf16 %v1694, %v1693
        %v1895 = vpack.c.bf16 %v1696, %v1695
        %v1896 = vpack.c.bf16 %v1698, %v1697
        %v1897 = vpack.c.bf16 %v1700, %v1699
        %v1898 = vpack.c.bf16 %v1702, %v1701
        %v1899 = vpack.c.bf16 %v1704, %v1703
        %v1900 = vpack.c.bf16 %v1706, %v1705
        %v1901 = vpack.c.bf16 %v1708, %v1707
        %v1902 = vpack.c.bf16 %v1710, %v1709
        %v1903 = vld [vmem:[%s3] sm:$0xf]
        %v1904 = vld [vmem:[%s3 + $0x4] sm:$0xf]
        %v1905 = vld [vmem:[%s3 + $0x8] sm:$0xf]
        %v1906 = vld [vmem:[%s3 + $0xc] sm:$0xf]
        %v1907 = vld [vmem:[%s3 + $0x10] sm:$0xf]
        %v1908 = vld [vmem:[%s3 + $0x14] sm:$0xf]
        %v1909 = vld [vmem:[%s3 + $0x18] sm:$0xf]
        %v1910 = vld [vmem:[%s3 + $0x1c] sm:$0xf]
        %v1911 = vld [vmem:[%s4] sm:$0x1]
        %v1913 = vlaneseq
        %v1914 = vshrl.u32 %v1913, 7
        %v1915 = vsub.s32 0, %v1914
        %v1916 = vrot.slane %v1911, %v1915
        %v1926 = vunpack.c.l.b16 %v1903
        %v1927 = vunpack.c.l.b16 %v1904
        %v1928 = vunpack.c.l.b16 %v1905
        %v1929 = vunpack.c.l.b16 %v1906
        %v1930 = vunpack.c.l.b16 %v1907
        %v1931 = vunpack.c.l.b16 %v1908
        %v1932 = vunpack.c.l.b16 %v1909
        %v1933 = vunpack.c.l.b16 %v1910
        %v1934 = vpack.c.b16 %v1927, %v1926
        %v1935 = vpack.c.b16 %v1929, %v1928
        %v1936 = vpack.c.b16 %v1931, %v1930
        %v1937 = vpack.c.b16 %v1933, %v1932
        %vm1942 = vcmask 523264
        %v1944 = vsel %vm1942, %v1871, 0
        %v1947 = vsel %vm1942, %v1872, 0
        %v1950 = vsel %vm1942, %v1873, 0
        %v1953 = vsel %vm1942, %v1874, 0
        %v1956 = vsel %vm1942, %v1875, 0
        %v1959 = vsel %vm1942, %v1876, 0
        %v1962 = vsel %vm1942, %v1877, 0
        %v1965 = vsel %vm1942, %v1878, 0
        %v1968 = vsel %vm1942, %v1879, 0
        %v1971 = vsel %vm1942, %v1880, 0
        %v1974 = vsel %vm1942, %v1881, 0
        %v1977 = vsel %vm1942, %v1882, 0
        %v1980 = vsel %vm1942, %v1883, 0
        %v1983 = vsel %vm1942, %v1884, 0
        %v1986 = vsel %vm1942, %v1885, 0
        %v1989 = vsel %vm1942, %v1886, 0
        %v1992 = vsel %vm1942, %v1887, 0
        %v1995 = vsel %vm1942, %v1888, 0
        %v1998 = vsel %vm1942, %v1889, 0
        %v2001 = vsel %vm1942, %v1890, 0
        %v2004 = vsel %vm1942, %v1891, 0
        %v2007 = vsel %vm1942, %v1892, 0
        %v2010 = vsel %vm1942, %v1893, 0
        %v2013 = vsel %vm1942, %v1894, 0
        %v2016 = vsel %vm1942, %v1895, 0
        %v2019 = vsel %vm1942, %v1896, 0
        %v2022 = vsel %vm1942, %v1897, 0
        %v2025 = vsel %vm1942, %v1898, 0
        %v2028 = vsel %vm1942, %v1899, 0
        %v2031 = vsel %vm1942, %v1900, 0
        %v2034 = vsel %vm1942, %v1901, 0
        %v2037 = vsel %vm1942, %v1902, 0
        %2039 = vmatprep.subr.bf16.mxu0 0
        %2040 = vmatpush1.bf16.msra.mxu0 %v1934
        %2041 = vmatprep.subr.bf16.mxu0 0
        %2042 = vmatpush1.bf16.msra.mxu0 %v1935
        %2043 = vmatprep.subr.bf16.mxu0 0
        %2044 = vmatpush1.bf16.msra.mxu0 %v1936
        %2045 = vmatprep.subr.bf16.mxu0 0
        %2046 = vmatpush1.bf16.msra.mxu0 %v1937
        %2047 = vmatprep.subr.bf16.mxu0 0
        %2048 = vmatpush1.bf16.msra.mxu0 0
        %2049 = vmatprep.subr.bf16.mxu0 0
        %2050 = vmatpush1.bf16.msra.mxu0 0
        %2051 = vmatprep.subr.bf16.mxu0 0
        %2052 = vmatpush1.bf16.msra.mxu0 0
        %2053 = vmatprep.subr.bf16.mxu0 0
        %2054 = vmatpush1.bf16.msra.mxu0 0
        %2055 = vmatprep.subr.bf16.mxu0 0
        %2056 = vmatpush1.bf16.msra.mxu0 0
        %2057 = vmatprep.subr.bf16.mxu0 0
        %2058 = vmatpush1.bf16.msra.mxu0 0
        %2059 = vmatprep.subr.bf16.mxu0 0
        %2060 = vmatpush1.bf16.msra.mxu0 0
        %2061 = vmatprep.subr.bf16.mxu0 0
        %2062 = vmatpush1.bf16.msra.mxu0 0
        %2063 = vmatprep.subr.bf16.mxu0 0
        %2064 = vmatpush1.bf16.msra.mxu0 0
        %2065 = vmatprep.subr.bf16.mxu0 0
        %2066 = vmatpush1.bf16.msra.mxu0 0
        %2067 = vmatprep.subr.bf16.mxu0 0
        %2068 = vmatpush1.bf16.msra.mxu0 0
        %2069 = vmatprep.subr.bf16.mxu0 0
        %2070 = vmatpush1.bf16.msra.mxu0 0
        %2071 = vmatprep.mubr.bf16.mxu0 0
        %2072 = vmatmul.mubr.bf16.gmra.mrb[0].mxu0 %v1944
        %v2073 = vpop.f32.mrb[0].mxu0
        %v2074 = vadd.f32 %v1916, %v2073
        %v2075 = vpop.f32.mrb[0].mxu0
        %v2076 = vpop.f32.mrb[0].mxu0
        %v2077 = vadd.f32 %v1916, %v2076
        %v2078 = vpop.f32.mrb[0].mxu0
        %2079 = vmatprep.mubr.bf16.mxu0 0
        %2080 = vmatmul.mubr.bf16.gmra.mrb[0].mxu0 %v1947
        %v2081 = vpop.f32.mrb[0].mxu0
        %v2082 = vadd.f32 %v1916, %v2081
        %v2083 = vpop.f32.mrb[0].mxu0
        %v2084 = vpop.f32.mrb[0].mxu0
        %v2085 = vadd.f32 %v1916, %v2084
        %v2086 = vpop.f32.mrb[0].mxu0
        %2087 = vmatprep.mubr.bf16.mxu0 0
        %2088 = vmatmul.mubr.bf16.gmra.mrb[0].mxu0 %v1950
        %v2089 = vpop.f32.mrb[0].mxu0
        %v2090 = vadd.f32 %v1916, %v2089
        %v2091 = vpop.f32.mrb[0].mxu0
        %v2092 = vpop.f32.mrb[0].mxu0
        %v2093 = vadd.f32 %v1916, %v2092
        %v2094 = vpop.f32.mrb[0].mxu0
        %2095 = vmatprep.mubr.bf16.mxu0 0
        %2096 = vmatmul.mubr.bf16.gmra.mrb[0].mxu0 %v1953
        %v2097 = vpop.f32.mrb[0].mxu0
        %v2098 = vadd.f32 %v1916, %v2097
        %v2099 = vpop.f32.mrb[0].mxu0
        %v2100 = vpop.f32.mrb[0].mxu0
        %v2101 = vadd.f32 %v1916, %v2100
        %v2102 = vpop.f32.mrb[0].mxu0
        %2103 = vmatprep.mubr.bf16.mxu0 0
        %2104 = vmatmul.mubr.bf16.gmra.mrb[0].mxu0 %v1956
        %v2105 = vpop.f32.mrb[0].mxu0
        %v2106 = vadd.f32 %v1916, %v2105
        %v2107 = vpop.f32.mrb[0].mxu0
        %v2108 = vpop.f32.mrb[0].mxu0
        %v2109 = vadd.f32 %v1916, %v2108
        %v2110 = vpop.f32.mrb[0].mxu0
        %2111 = vmatprep.mubr.bf16.mxu0 0
        %2112 = vmatmul.mubr.bf16.gmra.mrb[0].mxu0 %v1959
        %v2113 = vpop.f32.mrb[0].mxu0
        %v2114 = vadd.f32 %v1916, %v2113
        %v2115 = vpop.f32.mrb[0].mxu0
        %v2116 = vpop.f32.mrb[0].mxu0
        %v2117 = vadd.f32 %v1916, %v2116
        %v2118 = vpop.f32.mrb[0].mxu0
        %2119 = vmatprep.mubr.bf16.mxu0 0
        %2120 = vmatmul.mubr.bf16.gmra.mrb[0].mxu0 %v1962
        %v2121 = vpop.f32.mrb[0].mxu0
        %v2122 = vadd.f32 %v1916, %v2121
        %v2123 = vpop.f32.mrb[0].mxu0
        %v2124 = vpop.f32.mrb[0].mxu0
        %v2125 = vadd.f32 %v1916, %v2124
        %v2126 = vpop.f32.mrb[0].mxu0
        %2127 = vmatprep.mubr.bf16.mxu0 0
        %2128 = vmatmul.mubr.bf16.gmra.mrb[0].mxu0 %v1965
        %v2129 = vpop.f32.mrb[0].mxu0
        %v2130 = vadd.f32 %v1916, %v2129
        %v2131 = vpop.f32.mrb[0].mxu0
        %v2132 = vpop.f32.mrb[0].mxu0
        %v2133 = vadd.f32 %v1916, %v2132
        %v2134 = vpop.f32.mrb[0].mxu0
        %2135 = vmatprep.mubr.bf16.mxu0 0
        %2136 = vmatmul.mubr.bf16.gmra.mrb[0].mxu0 %v1968
        %v2137 = vpop.f32.mrb[0].mxu0
        %v2138 = vadd.f32 %v1916, %v2137
        %v2139 = vpop.f32.mrb[0].mxu0
        %v2140 = vpop.f32.mrb[0].mxu0
        %v2141 = vadd.f32 %v1916, %v2140
        %v2142 = vpop.f32.mrb[0].mxu0
        %2143 = vmatprep.mubr.bf16.mxu0 0
        %2144 = vmatmul.mubr.bf16.gmra.mrb[0].mxu0 %v1971
        %v2145 = vpop.f32.mrb[0].mxu0
        %v2146 = vadd.f32 %v1916, %v2145
        %v2147 = vpop.f32.mrb[0].mxu0
        %v2148 = vpop.f32.mrb[0].mxu0
        %v2149 = vadd.f32 %v1916, %v2148
        %v2150 = vpop.f32.mrb[0].mxu0
        %2151 = vmatprep.mubr.bf16.mxu0 0
        %2152 = vmatmul.mubr.bf16.gmra.mrb[0].mxu0 %v1974
        %v2153 = vpop.f32.mrb[0].mxu0
        %v2154 = vadd.f32 %v1916, %v2153
        %v2155 = vpop.f32.mrb[0].mxu0
        %v2156 = vpop.f32.mrb[0].mxu0
        %v2157 = vadd.f32 %v1916, %v2156
        %v2158 = vpop.f32.mrb[0].mxu0
        %2159 = vmatprep.mubr.bf16.mxu0 0
        %2160 = vmatmul.mubr.bf16.gmra.mrb[0].mxu0 %v1977
        %v2161 = vpop.f32.mrb[0].mxu0
        %v2162 = vadd.f32 %v1916, %v2161
        %v2163 = vpop.f32.mrb[0].mxu0
        %v2164 = vpop.f32.mrb[0].mxu0
        %v2165 = vadd.f32 %v1916, %v2164
        %v2166 = vpop.f32.mrb[0].mxu0
        %2167 = vmatprep.mubr.bf16.mxu0 0
        %2168 = vmatmul.mubr.bf16.gmra.mrb[0].mxu0 %v1980
        %v2169 = vpop.f32.mrb[0].mxu0
        %v2170 = vadd.f32 %v1916, %v2169
        %v2171 = vpop.f32.mrb[0].mxu0
        %v2172 = vpop.f32.mrb[0].mxu0
        %v2173 = vadd.f32 %v1916, %v2172
        %v2174 = vpop.f32.mrb[0].mxu0
        %2175 = vmatprep.mubr.bf16.mxu0 0
        %2176 = vmatmul.mubr.bf16.gmra.mrb[0].mxu0 %v1983
        %v2177 = vpop.f32.mrb[0].mxu0
        %v2178 = vadd.f32 %v1916, %v2177
        %v2179 = vpop.f32.mrb[0].mxu0
        %v2180 = vpop.f32.mrb[0].mxu0
        %v2181 = vadd.f32 %v1916, %v2180
        %v2182 = vpop.f32.mrb[0].mxu0
        %2183 = vmatprep.mubr.bf16.mxu0 0
        %2184 = vmatmul.mubr.bf16.gmra.mrb[0].mxu0 %v1986
        %v2185 = vpop.f32.mrb[0].mxu0
        %v2186 = vadd.f32 %v1916, %v2185
        %v2187 = vpop.f32.mrb[0].mxu0
        %v2188 = vpop.f32.mrb[0].mxu0
        %v2189 = vadd.f32 %v1916, %v2188
        %v2190 = vpop.f32.mrb[0].mxu0
        %2191 = vmatprep.mubr.bf16.mxu0 0
        %2192 = vmatmul.mubr.bf16.gmra.mrb[0].mxu0 %v1989
        %v2193 = vpop.f32.mrb[0].mxu0
        %v2194 = vadd.f32 %v1916, %v2193
        %v2195 = vpop.f32.mrb[0].mxu0
        %v2196 = vpop.f32.mrb[0].mxu0
        %v2197 = vadd.f32 %v1916, %v2196
        %v2198 = vpop.f32.mrb[0].mxu0
        %2199 = vmatprep.mubr.bf16.mxu0 0
        %2200 = vmatmul.mubr.bf16.gmra.mrb[0].mxu0 %v1992
        %v2201 = vpop.f32.mrb[0].mxu0
        %v2202 = vadd.f32 %v1916, %v2201
        %v2203 = vpop.f32.mrb[0].mxu0
        %v2204 = vpop.f32.mrb[0].mxu0
        %v2205 = vadd.f32 %v1916, %v2204
        %v2206 = vpop.f32.mrb[0].mxu0
        %2207 = vmatprep.mubr.bf16.mxu0 0
        %2208 = vmatmul.mubr.bf16.gmra.mrb[0].mxu0 %v1995
        %v2209 = vpop.f32.mrb[0].mxu0
        %v2210 = vadd.f32 %v1916, %v2209
        %v2211 = vpop.f32.mrb[0].mxu0
        %v2212 = vpop.f32.mrb[0].mxu0
        %v2213 = vadd.f32 %v1916, %v2212
        %v2214 = vpop.f32.mrb[0].mxu0
        %2215 = vmatprep.mubr.bf16.mxu0 0
        %2216 = vmatmul.mubr.bf16.gmra.mrb[0].mxu0 %v1998
        %v2217 = vpop.f32.mrb[0].mxu0
        %v2218 = vadd.f32 %v1916, %v2217
        %v2219 = vpop.f32.mrb[0].mxu0
        %v2220 = vpop.f32.mrb[0].mxu0
        %v2221 = vadd.f32 %v1916, %v2220
        %v2222 = vpop.f32.mrb[0].mxu0
        %2223 = vmatprep.mubr.bf16.mxu0 0
        %2224 = vmatmul.mubr.bf16.gmra.mrb[0].mxu0 %v2001
        %v2225 = vpop.f32.mrb[0].mxu0
        %v2226 = vadd.f32 %v1916, %v2225
        %v2227 = vpop.f32.mrb[0].mxu0
        %v2228 = vpop.f32.mrb[0].mxu0
        %v2229 = vadd.f32 %v1916, %v2228
        %v2230 = vpop.f32.mrb[0].mxu0
        %2231 = vmatprep.mubr.bf16.mxu0 0
        %2232 = vmatmul.mubr.bf16.gmra.mrb[0].mxu0 %v2004
        %v2233 = vpop.f32.mrb[0].mxu0
        %v2234 = vadd.f32 %v1916, %v2233
        %v2235 = vpop.f32.mrb[0].mxu0
        %v2236 = vpop.f32.mrb[0].mxu0
        %v2237 = vadd.f32 %v1916, %v2236
        %v2238 = vpop.f32.mrb[0].mxu0
        %2239 = vmatprep.mubr.bf16.mxu0 0
        %2240 = vmatmul.mubr.bf16.gmra.mrb[0].mxu0 %v2007
        %v2241 = vpop.f32.mrb[0].mxu0
        %v2242 = vadd.f32 %v1916, %v2241
        %v2243 = vpop.f32.mrb[0].mxu0
        %v2244 = vpop.f32.mrb[0].mxu0
        %v2245 = vadd.f32 %v1916, %v2244
        %v2246 = vpop.f32.mrb[0].mxu0
        %2247 = vmatprep.mubr.bf16.mxu0 0
        %2248 = vmatmul.mubr.bf16.gmra.mrb[0].mxu0 %v2010
        %v2249 = vpop.f32.mrb[0].mxu0
        %v2250 = vadd.f32 %v1916, %v2249
        %v2251 = vpop.f32.mrb[0].mxu0
        %v2252 = vpop.f32.mrb[0].mxu0
        %v2253 = vadd.f32 %v1916, %v2252
        %v2254 = vpop.f32.mrb[0].mxu0
        %2255 = vmatprep.mubr.bf16.mxu0 0
        %2256 = vmatmul.mubr.bf16.gmra.mrb[0].mxu0 %v2013
        %v2257 = vpop.f32.mrb[0].mxu0
        %v2258 = vadd.f32 %v1916, %v2257
        %v2259 = vpop.f32.mrb[0].mxu0
        %v2260 = vpop.f32.mrb[0].mxu0
        %v2261 = vadd.f32 %v1916, %v2260
        %v2262 = vpop.f32.mrb[0].mxu0
        %2263 = vmatprep.mubr.bf16.mxu0 0
        %2264 = vmatmul.mubr.bf16.gmra.mrb[0].mxu0 %v2016
        %v2265 = vpop.f32.mrb[0].mxu0
        %v2266 = vadd.f32 %v1916, %v2265
        %v2267 = vpop.f32.mrb[0].mxu0
        %v2268 = vpop.f32.mrb[0].mxu0
        %v2269 = vadd.f32 %v1916, %v2268
        %v2270 = vpop.f32.mrb[0].mxu0
        %2271 = vmatprep.mubr.bf16.mxu0 0
        %2272 = vmatmul.mubr.bf16.gmra.mrb[0].mxu0 %v2019
        %v2273 = vpop.f32.mrb[0].mxu0
        %v2274 = vadd.f32 %v1916, %v2273
        %v2275 = vpop.f32.mrb[0].mxu0
        %v2276 = vpop.f32.mrb[0].mxu0
        %v2277 = vadd.f32 %v1916, %v2276
        %v2278 = vpop.f32.mrb[0].mxu0
        %2279 = vmatprep.mubr.bf16.mxu0 0
        %2280 = vmatmul.mubr.bf16.gmra.mrb[0].mxu0 %v2022
        %v2281 = vpop.f32.mrb[0].mxu0
        %v2282 = vadd.f32 %v1916, %v2281
        %v2283 = vpop.f32.mrb[0].mxu0
        %v2284 = vpop.f32.mrb[0].mxu0
        %v2285 = vadd.f32 %v1916, %v2284
        %v2286 = vpop.f32.mrb[0].mxu0
        %2287 = vmatprep.mubr.bf16.mxu0 0
        %2288 = vmatmul.mubr.bf16.gmra.mrb[0].mxu0 %v2025
        %v2289 = vpop.f32.mrb[0].mxu0
        %v2290 = vadd.f32 %v1916, %v2289
        %v2291 = vpop.f32.mrb[0].mxu0
        %v2292 = vpop.f32.mrb[0].mxu0
        %v2293 = vadd.f32 %v1916, %v2292
        %v2294 = vpop.f32.mrb[0].mxu0
        %2295 = vmatprep.mubr.bf16.mxu0 0
        %2296 = vmatmul.mubr.bf16.gmra.mrb[0].mxu0 %v2028
        %v2297 = vpop.f32.mrb[0].mxu0
        %v2298 = vadd.f32 %v1916, %v2297
        %v2299 = vpop.f32.mrb[0].mxu0
        %v2300 = vpop.f32.mrb[0].mxu0
        %v2301 = vadd.f32 %v1916, %v2300
        %v2302 = vpop.f32.mrb[0].mxu0
        %2303 = vmatprep.mubr.bf16.mxu0 0
        %2304 = vmatmul.mubr.bf16.gmra.mrb[0].mxu0 %v2031
        %v2305 = vpop.f32.mrb[0].mxu0
        %v2306 = vadd.f32 %v1916, %v2305
        %v2307 = vpop.f32.mrb[0].mxu0
        %v2308 = vpop.f32.mrb[0].mxu0
        %v2309 = vadd.f32 %v1916, %v2308
        %v2310 = vpop.f32.mrb[0].mxu0
        %2311 = vmatprep.mubr.bf16.mxu0 0
        %2312 = vmatmul.mubr.bf16.gmra.mrb[0].mxu0 %v2034
        %v2313 = vpop.f32.mrb[0].mxu0
        %v2314 = vadd.f32 %v1916, %v2313
        %v2315 = vpop.f32.mrb[0].mxu0
        %v2316 = vpop.f32.mrb[0].mxu0
        %v2317 = vadd.f32 %v1916, %v2316
        %v2318 = vpop.f32.mrb[0].mxu0
        %2319 = vmatprep.mubr.bf16.mxu0 0
        %2320 = vmatmul.mubr.bf16.gmra.mrb[0].mxu0 %v2037
        %v2321 = vpop.f32.mrb[0].mxu0
        %v2322 = vadd.f32 %v1916, %v2321
        %v2323 = vpop.f32.mrb[0].mxu0
        %v2324 = vpop.f32.mrb[0].mxu0
        %v2325 = vadd.f32 %v1916, %v2324
        %v2326 = vpop.f32.mrb[0].mxu0
        %2327 = vdwg.mxu0
        %v2328 = vmax.f32 %v2074, 0.0
        %v2329 = vmax.f32 %v2077, 0.0
        %v2330 = vmax.f32 %v2082, 0.0
        %v2331 = vmax.f32 %v2085, 0.0
        %v2332 = vmax.f32 %v2090, 0.0
        %v2333 = vmax.f32 %v2093, 0.0
        %v2334 = vmax.f32 %v2098, 0.0
        %v2335 = vmax.f32 %v2101, 0.0
        %v2336 = vmax.f32 %v2106, 0.0
        %v2337 = vmax.f32 %v2109, 0.0
        %v2338 = vmax.f32 %v2114, 0.0
        %v2339 = vmax.f32 %v2117, 0.0
        %v2340 = vmax.f32 %v2122, 0.0
        %v2341 = vmax.f32 %v2125, 0.0
        %v2342 = vmax.f32 %v2130, 0.0
        %v2343 = vmax.f32 %v2133, 0.0
        %v2344 = vmax.f32 %v2138, 0.0
        %v2345 = vmax.f32 %v2141, 0.0
        %v2346 = vmax.f32 %v2146, 0.0
        %v2347 = vmax.f32 %v2149, 0.0
        %v2348 = vmax.f32 %v2154, 0.0
        %v2349 = vmax.f32 %v2157, 0.0
        %v2350 = vmax.f32 %v2162, 0.0
        %v2351 = vmax.f32 %v2165, 0.0
        %v2352 = vmax.f32 %v2170, 0.0
        %v2353 = vmax.f32 %v2173, 0.0
        %v2354 = vmax.f32 %v2178, 0.0
        %v2355 = vmax.f32 %v2181, 0.0
        %v2356 = vmax.f32 %v2186, 0.0
        %v2357 = vmax.f32 %v2189, 0.0
        %v2358 = vmax.f32 %v2194, 0.0
        %v2359 = vmax.f32 %v2197, 0.0
        %v2360 = vmax.f32 %v2202, 0.0
        %v2361 = vmax.f32 %v2205, 0.0
        %v2362 = vmax.f32 %v2210, 0.0
        %v2363 = vmax.f32 %v2213, 0.0
        %v2364 = vmax.f32 %v2218, 0.0
        %v2365 = vmax.f32 %v2221, 0.0
        %v2366 = vmax.f32 %v2226, 0.0
        %v2367 = vmax.f32 %v2229, 0.0
        %v2368 = vmax.f32 %v2234, 0.0
        %v2369 = vmax.f32 %v2237, 0.0
        %v2370 = vmax.f32 %v2242, 0.0
        %v2371 = vmax.f32 %v2245, 0.0
        %v2372 = vmax.f32 %v2250, 0.0
        %v2373 = vmax.f32 %v2253, 0.0
        %v2374 = vmax.f32 %v2258, 0.0
        %v2375 = vmax.f32 %v2261, 0.0
        %v2376 = vmax.f32 %v2266, 0.0
        %v2377 = vmax.f32 %v2269, 0.0
        %v2378 = vmax.f32 %v2274, 0.0
        %v2379 = vmax.f32 %v2277, 0.0
        %v2380 = vmax.f32 %v2282, 0.0
        %v2381 = vmax.f32 %v2285, 0.0
        %v2382 = vmax.f32 %v2290, 0.0
        %v2383 = vmax.f32 %v2293, 0.0
        %v2384 = vmax.f32 %v2298, 0.0
        %v2385 = vmax.f32 %v2301, 0.0
        %v2386 = vmax.f32 %v2306, 0.0
        %v2387 = vmax.f32 %v2309, 0.0
        %v2388 = vmax.f32 %v2314, 0.0
        %v2389 = vmax.f32 %v2317, 0.0
        %v2390 = vmax.f32 %v2322, 0.0
        %v2391 = vmax.f32 %v2325, 0.0
        %v2392 = vpack.c.bf16 %v2329, %v2328
        %v2393 = vpack.c.bf16 %v2331, %v2330
        %v2394 = vpack.c.bf16 %v2333, %v2332
        %v2395 = vpack.c.bf16 %v2335, %v2334
        %v2396 = vpack.c.bf16 %v2337, %v2336
        %v2397 = vpack.c.bf16 %v2339, %v2338
        %v2398 = vpack.c.bf16 %v2341, %v2340
        %v2399 = vpack.c.bf16 %v2343, %v2342
        %v2400 = vpack.c.bf16 %v2345, %v2344
        %v2401 = vpack.c.bf16 %v2347, %v2346
        %v2402 = vpack.c.bf16 %v2349, %v2348
        %v2403 = vpack.c.bf16 %v2351, %v2350
        %v2404 = vpack.c.bf16 %v2353, %v2352
        %v2405 = vpack.c.bf16 %v2355, %v2354
        %v2406 = vpack.c.bf16 %v2357, %v2356
        %v2407 = vpack.c.bf16 %v2359, %v2358
        %v2408 = vpack.c.bf16 %v2361, %v2360
        %v2409 = vpack.c.bf16 %v2363, %v2362
        %v2410 = vpack.c.bf16 %v2365, %v2364
        %v2411 = vpack.c.bf16 %v2367, %v2366
        %v2412 = vpack.c.bf16 %v2369, %v2368
        %v2413 = vpack.c.bf16 %v2371, %v2370
        %v2414 = vpack.c.bf16 %v2373, %v2372
        %v2415 = vpack.c.bf16 %v2375, %v2374
        %v2416 = vpack.c.bf16 %v2377, %v2376
        %v2417 = vpack.c.bf16 %v2379, %v2378
        %v2418 = vpack.c.bf16 %v2381, %v2380
        %v2419 = vpack.c.bf16 %v2383, %v2382
        %v2420 = vpack.c.bf16 %v2385, %v2384
        %v2421 = vpack.c.bf16 %v2387, %v2386
        %v2422 = vpack.c.bf16 %v2389, %v2388
        %v2423 = vpack.c.bf16 %v2391, %v2390
        %v2424 = vld [vmem:[%s5] sm:$0xff]
        %v2425 = vld [vmem:[%s5 + $0x8] sm:$0xff]
        %v2426 = vld [vmem:[%s5 + $0x10] sm:$0xff]
        %v2427 = vld [vmem:[%s5 + $0x18] sm:$0xff]
        %v2428 = vld [vmem:[%s5 + $0x20] sm:$0xff]
        %v2429 = vld [vmem:[%s5 + $0x28] sm:$0xff]
        %v2430 = vld [vmem:[%s5 + $0x30] sm:$0xff]
        %v2431 = vld [vmem:[%s5 + $0x38] sm:$0xff]
        %v2432 = vld [vmem:[%s5 + $0x40] sm:$0xff]
        %v2433 = vld [vmem:[%s5 + $0x48] sm:$0xff]
        %v2434 = vld [vmem:[%s5 + $0x50] sm:$0xff]
        %v2435 = vld [vmem:[%s5 + $0x58] sm:$0xff]
        %v2436 = vld [vmem:[%s5 + $0x60] sm:$0xff]
        %v2437 = vld [vmem:[%s5 + $0x68] sm:$0xff]
        %v2438 = vld [vmem:[%s5 + $0x70] sm:$0xff]
        %v2439 = vld [vmem:[%s5 + $0x78] sm:$0xff]
        %v2440 = vld [vmem:[%s5 + $0x80] sm:$0xff]
        %v2441 = vld [vmem:[%s5 + $0x88] sm:$0xff]
        %v2442 = vld [vmem:[%s5 + $0x90] sm:$0xff]
        %v2443 = vld [vmem:[%s5 + $0x98] sm:$0xff]
        %v2444 = vld [vmem:[%s5 + $0xa0] sm:$0xff]
        %v2445 = vld [vmem:[%s5 + $0xa8] sm:$0xff]
        %v2446 = vld [vmem:[%s5 + $0xb0] sm:$0xff]
        %v2447 = vld [vmem:[%s5 + $0xb8] sm:$0xff]
        %v2448 = vld [vmem:[%s5 + $0xc0] sm:$0xff]
        %v2449 = vld [vmem:[%s5 + $0xc8] sm:$0xff]
        %v2450 = vld [vmem:[%s5 + $0xd0] sm:$0xff]
        %v2451 = vld [vmem:[%s5 + $0xd8] sm:$0xff]
        %v2452 = vld [vmem:[%s5 + $0xe0] sm:$0xff]
        %v2453 = vld [vmem:[%s5 + $0xe8] sm:$0xff]
        %v2454 = vld [vmem:[%s5 + $0xf0] sm:$0xff]
        %v2455 = vld [vmem:[%s5 + $0xf8] sm:$0xff]
        %v2456 = vld [vmem:[%s5 + $0x100] sm:$0xff]
        %v2457 = vld [vmem:[%s5 + $0x108] sm:$0xff]
        %v2458 = vld [vmem:[%s5 + $0x110] sm:$0xff]
        %v2459 = vld [vmem:[%s5 + $0x118] sm:$0xff]
        %v2460 = vld [vmem:[%s5 + $0x120] sm:$0xff]
        %v2461 = vld [vmem:[%s5 + $0x128] sm:$0xff]
        %v2462 = vld [vmem:[%s5 + $0x130] sm:$0xff]
        %v2463 = vld [vmem:[%s5 + $0x138] sm:$0xff]
        %v2464 = vld [vmem:[%s5 + $0x140] sm:$0xff]
        %v2465 = vld [vmem:[%s5 + $0x148] sm:$0xff]
        %v2466 = vld [vmem:[%s5 + $0x150] sm:$0xff]
        %v2467 = vld [vmem:[%s5 + $0x158] sm:$0xff]
        %v2468 = vld [vmem:[%s5 + $0x160] sm:$0xff]
        %v2469 = vld [vmem:[%s5 + $0x168] sm:$0xff]
        %v2470 = vld [vmem:[%s5 + $0x170] sm:$0xff]
        %v2471 = vld [vmem:[%s5 + $0x178] sm:$0xff]
        %v2472 = vld [vmem:[%s5 + $0x180] sm:$0xff]
        %v2473 = vld [vmem:[%s5 + $0x188] sm:$0xff]
        %v2474 = vld [vmem:[%s5 + $0x190] sm:$0xff]
        %v2475 = vld [vmem:[%s5 + $0x198] sm:$0xff]
        %v2476 = vld [vmem:[%s5 + $0x1a0] sm:$0xff]
        %v2477 = vld [vmem:[%s5 + $0x1a8] sm:$0xff]
        %v2478 = vld [vmem:[%s5 + $0x1b0] sm:$0xff]
        %v2479 = vld [vmem:[%s5 + $0x1b8] sm:$0xff]
        %v2480 = vld [vmem:[%s5 + $0x1c0] sm:$0xff]
        %v2481 = vld [vmem:[%s5 + $0x1c8] sm:$0xff]
        %v2482 = vld [vmem:[%s5 + $0x1d0] sm:$0xff]
        %v2483 = vld [vmem:[%s5 + $0x1d8] sm:$0xff]
        %v2484 = vld [vmem:[%s5 + $0x1e0] sm:$0xff]
        %v2485 = vld [vmem:[%s5 + $0x1e8] sm:$0xff]
        %v2486 = vld [vmem:[%s5 + $0x1f0] sm:$0xff]
        %v2487 = vld [vmem:[%s5 + $0x1f8] sm:$0xff]
        %v2488 = vld [vmem:[%s6] sm:$0xff]
        %v2490 = vlaneseq
        %v2491 = vshrl.u32 %v2490, 7
        %v2492 = vsub.s32 0, %v2491
        %v2493 = vrot.slane %v2488, %v2492
        %v2494 = vlaneseq
        %v2495 = vshrl.u32 %v2494, 7
        %v2496 = vsub.s32 1, %v2495
        %v2497 = vrot.slane %v2488, %v2496
        %v2498 = vlaneseq
        %v2499 = vshrl.u32 %v2498, 7
        %v2500 = vsub.s32 2, %v2499
        %v2501 = vrot.slane %v2488, %v2500
        %v2502 = vlaneseq
        %v2503 = vshrl.u32 %v2502, 7
        %v2504 = vsub.s32 3, %v2503
        %v2505 = vrot.slane %v2488, %v2504
        %v2506 = vlaneseq
        %v2507 = vshrl.u32 %v2506, 7
        %v2508 = vsub.s32 4, %v2507
        %v2509 = vrot.slane %v2488, %v2508
        %v2510 = vlaneseq
        %v2511 = vshrl.u32 %v2510, 7
        %v2512 = vsub.s32 5, %v2511
        %v2513 = vrot.slane %v2488, %v2512
        %v2514 = vlaneseq
        %v2515 = vshrl.u32 %v2514, 7
        %v2516 = vsub.s32 6, %v2515
        %v2517 = vrot.slane %v2488, %v2516
        %v2518 = vlaneseq
        %v2519 = vshrl.u32 %v2518, 7
        %v2520 = vsub.s32 7, %v2519
        %v2521 = vrot.slane %v2488, %v2520
        %v2594 = vunpack.c.l.b16 %v2424
        %v2595 = vunpack.c.h.b16 %v2424
        %v2596 = vunpack.c.l.b16 %v2425
        %v2597 = vunpack.c.h.b16 %v2425
        %v2598 = vunpack.c.l.b16 %v2426
        %v2599 = vunpack.c.h.b16 %v2426
        %v2600 = vunpack.c.l.b16 %v2427
        %v2601 = vunpack.c.h.b16 %v2427
        %v2602 = vunpack.c.l.b16 %v2428
        %v2603 = vunpack.c.h.b16 %v2428
        %v2604 = vunpack.c.l.b16 %v2429
        %v2605 = vunpack.c.h.b16 %v2429
        %v2606 = vunpack.c.l.b16 %v2430
        %v2607 = vunpack.c.h.b16 %v2430
        %v2608 = vunpack.c.l.b16 %v2431
        %v2609 = vunpack.c.h.b16 %v2431
        %v2610 = vunpack.c.l.b16 %v2432
        %v2611 = vunpack.c.h.b16 %v2432
        %v2612 = vunpack.c.l.b16 %v2433
        %v2613 = vunpack.c.h.b16 %v2433
        %v2614 = vunpack.c.l.b16 %v2434
        %v2615 = vunpack.c.h.b16 %v2434
        %v2616 = vunpack.c.l.b16 %v2435
        %v2617 = vunpack.c.h.b16 %v2435
        %v2618 = vunpack.c.l.b16 %v2436
        %v2619 = vunpack.c.h.b16 %v2436
        %v2620 = vunpack.c.l.b16 %v2437
        %v2621 = vunpack.c.h.b16 %v2437
        %v2622 = vunpack.c.l.b16 %v2438
        %v2623 = vunpack.c.h.b16 %v2438
        %v2624 = vunpack.c.l.b16 %v2439
        %v2625 = vunpack.c.h.b16 %v2439
        %v2626 = vunpack.c.l.b16 %v2440
        %v2627 = vunpack.c.h.b16 %v2440
        %v2628 = vunpack.c.l.b16 %v2441
        %v2629 = vunpack.c.h.b16 %v2441
        %v2630 = vunpack.c.l.b16 %v2442
        %v2631 = vunpack.c.h.b16 %v2442
        %v2632 = vunpack.c.l.b16 %v2443
        %v2633 = vunpack.c.h.b16 %v2443
        %v2634 = vunpack.c.l.b16 %v2444
        %v2635 = vunpack.c.h.b16 %v2444
        %v2636 = vunpack.c.l.b16 %v2445
        %v2637 = vunpack.c.h.b16 %v2445
        %v2638 = vunpack.c.l.b16 %v2446
        %v2639 = vunpack.c.h.b16 %v2446
        %v2640 = vunpack.c.l.b16 %v2447
        %v2641 = vunpack.c.h.b16 %v2447
        %v2642 = vunpack.c.l.b16 %v2448
        %v2643 = vunpack.c.h.b16 %v2448
        %v2644 = vunpack.c.l.b16 %v2449
        %v2645 = vunpack.c.h.b16 %v2449
        %v2646 = vunpack.c.l.b16 %v2450
        %v2647 = vunpack.c.h.b16 %v2450
        %v2648 = vunpack.c.l.b16 %v2451
        %v2649 = vunpack.c.h.b16 %v2451
        %v2650 = vunpack.c.l.b16 %v2452
        %v2651 = vunpack.c.h.b16 %v2452
        %v2652 = vunpack.c.l.b16 %v2453
        %v2653 = vunpack.c.h.b16 %v2453
        %v2654 = vunpack.c.l.b16 %v2454
        %v2655 = vunpack.c.h.b16 %v2454
        %v2656 = vunpack.c.l.b16 %v2455
        %v2657 = vunpack.c.h.b16 %v2455
        %v2658 = vunpack.c.l.b16 %v2456
        %v2659 = vunpack.c.h.b16 %v2456
        %v2660 = vunpack.c.l.b16 %v2457
        %v2661 = vunpack.c.h.b16 %v2457
        %v2662 = vunpack.c.l.b16 %v2458
        %v2663 = vunpack.c.h.b16 %v2458
        %v2664 = vunpack.c.l.b16 %v2459
        %v2665 = vunpack.c.h.b16 %v2459
        %v2666 = vunpack.c.l.b16 %v2460
        %v2667 = vunpack.c.h.b16 %v2460
        %v2668 = vunpack.c.l.b16 %v2461
        %v2669 = vunpack.c.h.b16 %v2461
        %v2670 = vunpack.c.l.b16 %v2462
        %v2671 = vunpack.c.h.b16 %v2462
        %v2672 = vunpack.c.l.b16 %v2463
        %v2673 = vunpack.c.h.b16 %v2463
        %v2674 = vunpack.c.l.b16 %v2464
        %v2675 = vunpack.c.h.b16 %v2464
        %v2676 = vunpack.c.l.b16 %v2465
        %v2677 = vunpack.c.h.b16 %v2465
        %v2678 = vunpack.c.l.b16 %v2466
        %v2679 = vunpack.c.h.b16 %v2466
        %v2680 = vunpack.c.l.b16 %v2467
        %v2681 = vunpack.c.h.b16 %v2467
        %v2682 = vunpack.c.l.b16 %v2468
        %v2683 = vunpack.c.h.b16 %v2468
        %v2684 = vunpack.c.l.b16 %v2469
        %v2685 = vunpack.c.h.b16 %v2469
        %v2686 = vunpack.c.l.b16 %v2470
        %v2687 = vunpack.c.h.b16 %v2470
        %v2688 = vunpack.c.l.b16 %v2471
        %v2689 = vunpack.c.h.b16 %v2471
        %v2690 = vunpack.c.l.b16 %v2472
        %v2691 = vunpack.c.h.b16 %v2472
        %v2692 = vunpack.c.l.b16 %v2473
        %v2693 = vunpack.c.h.b16 %v2473
        %v2694 = vunpack.c.l.b16 %v2474
        %v2695 = vunpack.c.h.b16 %v2474
        %v2696 = vunpack.c.l.b16 %v2475
        %v2697 = vunpack.c.h.b16 %v2475
        %v2698 = vunpack.c.l.b16 %v2476
        %v2699 = vunpack.c.h.b16 %v2476
        %v2700 = vunpack.c.l.b16 %v2477
        %v2701 = vunpack.c.h.b16 %v2477
        %v2702 = vunpack.c.l.b16 %v2478
        %v2703 = vunpack.c.h.b16 %v2478
        %v2704 = vunpack.c.l.b16 %v2479
        %v2705 = vunpack.c.h.b16 %v2479
        %v2706 = vunpack.c.l.b16 %v2480
        %v2707 = vunpack.c.h.b16 %v2480
        %v2708 = vunpack.c.l.b16 %v2481
        %v2709 = vunpack.c.h.b16 %v2481
        %v2710 = vunpack.c.l.b16 %v2482
        %v2711 = vunpack.c.h.b16 %v2482
        %v2712 = vunpack.c.l.b16 %v2483
        %v2713 = vunpack.c.h.b16 %v2483
        %v2714 = vunpack.c.l.b16 %v2484
        %v2715 = vunpack.c.h.b16 %v2484
        %v2716 = vunpack.c.l.b16 %v2485
        %v2717 = vunpack.c.h.b16 %v2485
        %v2718 = vunpack.c.l.b16 %v2486
        %v2719 = vunpack.c.h.b16 %v2486
        %v2720 = vunpack.c.l.b16 %v2487
        %v2721 = vunpack.c.h.b16 %v2487
        %v2722 = vpack.c.b16 %v2602, %v2594
        %v2723 = vpack.c.b16 %v2603, %v2595
        %v2724 = vpack.c.b16 %v2604, %v2596
        %v2725 = vpack.c.b16 %v2605, %v2597
        %v2726 = vpack.c.b16 %v2606, %v2598
        %v2727 = vpack.c.b16 %v2607, %v2599
        %v2728 = vpack.c.b16 %v2608, %v2600
        %v2729 = vpack.c.b16 %v2609, %v2601
        %v2730 = vpack.c.b16 %v2618, %v2610
        %v2731 = vpack.c.b16 %v2619, %v2611
        %v2732 = vpack.c.b16 %v2620, %v2612
        %v2733 = vpack.c.b16 %v2621, %v2613
        %v2734 = vpack.c.b16 %v2622, %v2614
        %v2735 = vpack.c.b16 %v2623, %v2615
        %v2736 = vpack.c.b16 %v2624, %v2616
        %v2737 = vpack.c.b16 %v2625, %v2617
        %v2738 = vpack.c.b16 %v2634, %v2626
        %v2739 = vpack.c.b16 %v2635, %v2627
        %v2740 = vpack.c.b16 %v2636, %v2628
        %v2741 = vpack.c.b16 %v2637, %v2629
        %v2742 = vpack.c.b16 %v2638, %v2630
        %v2743 = vpack.c.b16 %v2639, %v2631
        %v2744 = vpack.c.b16 %v2640, %v2632
        %v2745 = vpack.c.b16 %v2641, %v2633
        %v2746 = vpack.c.b16 %v2650, %v2642
        %v2747 = vpack.c.b16 %v2651, %v2643
        %v2748 = vpack.c.b16 %v2652, %v2644
        %v2749 = vpack.c.b16 %v2653, %v2645
        %v2750 = vpack.c.b16 %v2654, %v2646
        %v2751 = vpack.c.b16 %v2655, %v2647
        %v2752 = vpack.c.b16 %v2656, %v2648
        %v2753 = vpack.c.b16 %v2657, %v2649
        %v2754 = vpack.c.b16 %v2666, %v2658
        %v2755 = vpack.c.b16 %v2667, %v2659
        %v2756 = vpack.c.b16 %v2668, %v2660
        %v2757 = vpack.c.b16 %v2669, %v2661
        %v2758 = vpack.c.b16 %v2670, %v2662
        %v2759 = vpack.c.b16 %v2671, %v2663
        %v2760 = vpack.c.b16 %v2672, %v2664
        %v2761 = vpack.c.b16 %v2673, %v2665
        %v2762 = vpack.c.b16 %v2682, %v2674
        %v2763 = vpack.c.b16 %v2683, %v2675
        %v2764 = vpack.c.b16 %v2684, %v2676
        %v2765 = vpack.c.b16 %v2685, %v2677
        %v2766 = vpack.c.b16 %v2686, %v2678
        %v2767 = vpack.c.b16 %v2687, %v2679
        %v2768 = vpack.c.b16 %v2688, %v2680
        %v2769 = vpack.c.b16 %v2689, %v2681
        %v2770 = vpack.c.b16 %v2698, %v2690
        %v2771 = vpack.c.b16 %v2699, %v2691
        %v2772 = vpack.c.b16 %v2700, %v2692
        %v2773 = vpack.c.b16 %v2701, %v2693
        %v2774 = vpack.c.b16 %v2702, %v2694
        %v2775 = vpack.c.b16 %v2703, %v2695
        %v2776 = vpack.c.b16 %v2704, %v2696
        %v2777 = vpack.c.b16 %v2705, %v2697
        %v2778 = vpack.c.b16 %v2714, %v2706
        %v2779 = vpack.c.b16 %v2715, %v2707
        %v2780 = vpack.c.b16 %v2716, %v2708
        %v2781 = vpack.c.b16 %v2717, %v2709
        %v2782 = vpack.c.b16 %v2718, %v2710
        %v2783 = vpack.c.b16 %v2719, %v2711
        %v2784 = vpack.c.b16 %v2720, %v2712
        %v2785 = vpack.c.b16 %v2721, %v2713
        %2850 = vmatprep.subr.bf16.mxu0 %v2723
        %2851 = vmatpush1.bf16.msra.mxu0 %v2722
        %2852 = vmatprep.subr.bf16.mxu0 %v2731
        %2853 = vmatpush1.bf16.msra.mxu0 %v2730
        %2854 = vmatprep.subr.bf16.mxu0 %v2739
        %2855 = vmatpush1.bf16.msra.mxu0 %v2738
        %2856 = vmatprep.subr.bf16.mxu0 %v2747
        %2857 = vmatpush1.bf16.msra.mxu0 %v2746
        %2858 = vmatprep.subr.bf16.mxu0 %v2755
        %2859 = vmatpush1.bf16.msra.mxu0 %v2754
        %2860 = vmatprep.subr.bf16.mxu0 %v2763
        %2861 = vmatpush1.bf16.msra.mxu0 %v2762
        %2862 = vmatprep.subr.bf16.mxu0 %v2771
        %2863 = vmatpush1.bf16.msra.mxu0 %v2770
        %2864 = vmatprep.subr.bf16.mxu0 %v2779
        %2865 = vmatpush1.bf16.msra.mxu0 %v2778
        %2866 = vmatprep.subr.bf16.mxu0 0
        %2867 = vmatpush1.bf16.msra.mxu0 0
        %2868 = vmatprep.subr.bf16.mxu0 0
        %2869 = vmatpush1.bf16.msra.mxu0 0
        %2870 = vmatprep.subr.bf16.mxu0 0
        %2871 = vmatpush1.bf16.msra.mxu0 0
        %2872 = vmatprep.subr.bf16.mxu0 0
        %2873 = vmatpush1.bf16.msra.mxu0 0
        %2874 = vmatprep.subr.bf16.mxu0 0
        %2875 = vmatpush1.bf16.msra.mxu0 0
        %2876 = vmatprep.subr.bf16.mxu0 0
        %2877 = vmatpush1.bf16.msra.mxu0 0
        %2878 = vmatprep.subr.bf16.mxu0 0
        %2879 = vmatpush1.bf16.msra.mxu0 0
        %2880 = vmatprep.subr.bf16.mxu0 0
        %2881 = vmatpush1.bf16.msra.mxu0 0
        %2882 = vmatprep.mubr.bf16.mxu0 0
        %2883 = vmatmul.mubr.bf16.gmra.mrb[0].mxu0 %v2392
        %v2884 = vpop.f32.mrb[0].mxu0
        %v2885 = vadd.f32 %v2493, %v2884
        %v2886 = vpop.f32.mrb[0].mxu0
        %v2887 = vadd.f32 %v2497, %v2886
        %v2888 = vpop.f32.mrb[0].mxu0
        %v2889 = vadd.f32 %v2493, %v2888
        %v2890 = vpop.f32.mrb[0].mxu0
        %v2891 = vadd.f32 %v2497, %v2890
        %2892 = vmatprep.mubr.bf16.mxu0 0
        %2893 = vmatmul.mubr.bf16.gmra.mrb[0].mxu0 %v2393
        %v2894 = vpop.f32.mrb[0].mxu0
        %v2895 = vadd.f32 %v2493, %v2894
        %v2896 = vpop.f32.mrb[0].mxu0
        %v2897 = vadd.f32 %v2497, %v2896
        %v2898 = vpop.f32.mrb[0].mxu0
        %v2899 = vadd.f32 %v2493, %v2898
        %v2900 = vpop.f32.mrb[0].mxu0
        %v2901 = vadd.f32 %v2497, %v2900
        %2902 = vmatprep.mubr.bf16.mxu0 0
        %2903 = vmatmul.mubr.bf16.gmra.mrb[0].mxu0 %v2394
        %v2904 = vpop.f32.mrb[0].mxu0
        %v2905 = vadd.f32 %v2493, %v2904
        %v2906 = vpop.f32.mrb[0].mxu0
        %v2907 = vadd.f32 %v2497, %v2906
        %v2908 = vpop.f32.mrb[0].mxu0
        %v2909 = vadd.f32 %v2493, %v2908
        %v2910 = vpop.f32.mrb[0].mxu0
        %v2911 = vadd.f32 %v2497, %v2910
        %2912 = vmatprep.mubr.bf16.mxu0 0
        %2913 = vmatmul.mubr.bf16.gmra.mrb[0].mxu0 %v2395
        %v2914 = vpop.f32.mrb[0].mxu0
        %v2915 = vadd.f32 %v2493, %v2914
        %v2916 = vpop.f32.mrb[0].mxu0
        %v2917 = vadd.f32 %v2497, %v2916
        %v2918 = vpop.f32.mrb[0].mxu0
        %v2919 = vadd.f32 %v2493, %v2918
        %v2920 = vpop.f32.mrb[0].mxu0
        %v2921 = vadd.f32 %v2497, %v2920
        %2922 = vmatprep.mubr.bf16.mxu0 0
        %2923 = vmatmul.mubr.bf16.gmra.mrb[0].mxu0 %v2396
        %v2924 = vpop.f32.mrb[0].mxu0
        %v2925 = vadd.f32 %v2493, %v2924
        %v2926 = vpop.f32.mrb[0].mxu0
        %v2927 = vadd.f32 %v2497, %v2926
        %v2928 = vpop.f32.mrb[0].mxu0
        %v2929 = vadd.f32 %v2493, %v2928
        %v2930 = vpop.f32.mrb[0].mxu0
        %v2931 = vadd.f32 %v2497, %v2930
        %2932 = vmatprep.mubr.bf16.mxu0 0
        %2933 = vmatmul.mubr.bf16.gmra.mrb[0].mxu0 %v2397
        %v2934 = vpop.f32.mrb[0].mxu0
        %v2935 = vadd.f32 %v2493, %v2934
        %v2936 = vpop.f32.mrb[0].mxu0
        %v2937 = vadd.f32 %v2497, %v2936
        %v2938 = vpop.f32.mrb[0].mxu0
        %v2939 = vadd.f32 %v2493, %v2938
        %v2940 = vpop.f32.mrb[0].mxu0
        %v2941 = vadd.f32 %v2497, %v2940
        %2942 = vmatprep.mubr.bf16.mxu0 0
        %2943 = vmatmul.mubr.bf16.gmra.mrb[0].mxu0 %v2398
        %v2944 = vpop.f32.mrb[0].mxu0
        %v2945 = vadd.f32 %v2493, %v2944
        %v2946 = vpop.f32.mrb[0].mxu0
        %v2947 = vadd.f32 %v2497, %v2946
        %v2948 = vpop.f32.mrb[0].mxu0
        %v2949 = vadd.f32 %v2493, %v2948
        %v2950 = vpop.f32.mrb[0].mxu0
        %v2951 = vadd.f32 %v2497, %v2950
        %2952 = vmatprep.mubr.bf16.mxu0 0
        %2953 = vmatmul.mubr.bf16.gmra.mrb[0].mxu0 %v2399
        %v2954 = vpop.f32.mrb[0].mxu0
        %v2955 = vadd.f32 %v2493, %v2954
        %v2956 = vpop.f32.mrb[0].mxu0
        %v2957 = vadd.f32 %v2497, %v2956
        %v2958 = vpop.f32.mrb[0].mxu0
        %v2959 = vadd.f32 %v2493, %v2958
        %v2960 = vpop.f32.mrb[0].mxu0
        %v2961 = vadd.f32 %v2497, %v2960
        %2962 = vmatprep.mubr.bf16.mxu0 0
        %2963 = vmatmul.mubr.bf16.gmra.mrb[0].mxu0 %v2400
        %v2964 = vpop.f32.mrb[0].mxu0
        %v2965 = vadd.f32 %v2493, %v2964
        %v2966 = vpop.f32.mrb[0].mxu0
        %v2967 = vadd.f32 %v2497, %v2966
        %v2968 = vpop.f32.mrb[0].mxu0
        %v2969 = vadd.f32 %v2493, %v2968
        %v2970 = vpop.f32.mrb[0].mxu0
        %v2971 = vadd.f32 %v2497, %v2970
        %2972 = vmatprep.mubr.bf16.mxu0 0
        %2973 = vmatmul.mubr.bf16.gmra.mrb[0].mxu0 %v2401
        %v2974 = vpop.f32.mrb[0].mxu0
        %v2975 = vadd.f32 %v2493, %v2974
        %v2976 = vpop.f32.mrb[0].mxu0
        %v2977 = vadd.f32 %v2497, %v2976
        %v2978 = vpop.f32.mrb[0].mxu0
        %v2979 = vadd.f32 %v2493, %v2978
        %v2980 = vpop.f32.mrb[0].mxu0
        %v2981 = vadd.f32 %v2497, %v2980
        %2982 = vmatprep.mubr.bf16.mxu0 0
        %2983 = vmatmul.mubr.bf16.gmra.mrb[0].mxu0 %v2402
        %v2984 = vpop.f32.mrb[0].mxu0
        %v2985 = vadd.f32 %v2493, %v2984
        %v2986 = vpop.f32.mrb[0].mxu0
        %v2987 = vadd.f32 %v2497, %v2986
        %v2988 = vpop.f32.mrb[0].mxu0
        %v2989 = vadd.f32 %v2493, %v2988
        %v2990 = vpop.f32.mrb[0].mxu0
        %v2991 = vadd.f32 %v2497, %v2990
        %2992 = vmatprep.mubr.bf16.mxu0 0
        %2993 = vmatmul.mubr.bf16.gmra.mrb[0].mxu0 %v2403
        %v2994 = vpop.f32.mrb[0].mxu0
        %v2995 = vadd.f32 %v2493, %v2994
        %v2996 = vpop.f32.mrb[0].mxu0
        %v2997 = vadd.f32 %v2497, %v2996
        %v2998 = vpop.f32.mrb[0].mxu0
        %v2999 = vadd.f32 %v2493, %v2998
        %v3000 = vpop.f32.mrb[0].mxu0
        %v3001 = vadd.f32 %v2497, %v3000
        %3002 = vmatprep.mubr.bf16.mxu0 0
        %3003 = vmatmul.mubr.bf16.gmra.mrb[0].mxu0 %v2404
        %v3004 = vpop.f32.mrb[0].mxu0
        %v3005 = vadd.f32 %v2493, %v3004
        %v3006 = vpop.f32.mrb[0].mxu0
        %v3007 = vadd.f32 %v2497, %v3006
        %v3008 = vpop.f32.mrb[0].mxu0
        %v3009 = vadd.f32 %v2493, %v3008
        %v3010 = vpop.f32.mrb[0].mxu0
        %v3011 = vadd.f32 %v2497, %v3010
        %3012 = vmatprep.mubr.bf16.mxu0 0
        %3013 = vmatmul.mubr.bf16.gmra.mrb[0].mxu0 %v2405
        %v3014 = vpop.f32.mrb[0].mxu0
        %v3015 = vadd.f32 %v2493, %v3014
        %v3016 = vpop.f32.mrb[0].mxu0
        %v3017 = vadd.f32 %v2497, %v3016
        %v3018 = vpop.f32.mrb[0].mxu0
        %v3019 = vadd.f32 %v2493, %v3018
        %v3020 = vpop.f32.mrb[0].mxu0
        %v3021 = vadd.f32 %v2497, %v3020
        %3022 = vmatprep.mubr.bf16.mxu0 0
        %3023 = vmatmul.mubr.bf16.gmra.mrb[0].mxu0 %v2406
        %v3024 = vpop.f32.mrb[0].mxu0
        %v3025 = vadd.f32 %v2493, %v3024
        %v3026 = vpop.f32.mrb[0].mxu0
        %v3027 = vadd.f32 %v2497, %v3026
        %v3028 = vpop.f32.mrb[0].mxu0
        %v3029 = vadd.f32 %v2493, %v3028
        %v3030 = vpop.f32.mrb[0].mxu0
        %v3031 = vadd.f32 %v2497, %v3030
        %3032 = vmatprep.mubr.bf16.mxu0 0
        %3033 = vmatmul.mubr.bf16.gmra.mrb[0].mxu0 %v2407
        %v3034 = vpop.f32.mrb[0].mxu0
        %v3035 = vadd.f32 %v2493, %v3034
        %v3036 = vpop.f32.mrb[0].mxu0
        %v3037 = vadd.f32 %v2497, %v3036
        %v3038 = vpop.f32.mrb[0].mxu0
        %v3039 = vadd.f32 %v2493, %v3038
        %v3040 = vpop.f32.mrb[0].mxu0
        %v3041 = vadd.f32 %v2497, %v3040
        %3042 = vmatprep.mubr.bf16.mxu0 0
        %3043 = vmatmul.mubr.bf16.gmra.mrb[0].mxu0 %v2408
        %v3044 = vpop.f32.mrb[0].mxu0
        %v3045 = vadd.f32 %v2493, %v3044
        %v3046 = vpop.f32.mrb[0].mxu0
        %v3047 = vadd.f32 %v2497, %v3046
        %v3048 = vpop.f32.mrb[0].mxu0
        %v3049 = vadd.f32 %v2493, %v3048
        %v3050 = vpop.f32.mrb[0].mxu0
        %v3051 = vadd.f32 %v2497, %v3050
        %3052 = vmatprep.mubr.bf16.mxu0 0
        %3053 = vmatmul.mubr.bf16.gmra.mrb[0].mxu0 %v2409
        %v3054 = vpop.f32.mrb[0].mxu0
        %v3055 = vadd.f32 %v2493, %v3054
        %v3056 = vpop.f32.mrb[0].mxu0
        %v3057 = vadd.f32 %v2497, %v3056
        %v3058 = vpop.f32.mrb[0].mxu0
        %v3059 = vadd.f32 %v2493, %v3058
        %v3060 = vpop.f32.mrb[0].mxu0
        %v3061 = vadd.f32 %v2497, %v3060
        %3062 = vmatprep.mubr.bf16.mxu0 0
        %3063 = vmatmul.mubr.bf16.gmra.mrb[0].mxu0 %v2410
        %v3064 = vpop.f32.mrb[0].mxu0
        %v3065 = vadd.f32 %v2493, %v3064
        %v3066 = vpop.f32.mrb[0].mxu0
        %v3067 = vadd.f32 %v2497, %v3066
        %v3068 = vpop.f32.mrb[0].mxu0
        %v3069 = vadd.f32 %v2493, %v3068
        %v3070 = vpop.f32.mrb[0].mxu0
        %v3071 = vadd.f32 %v2497, %v3070
        %3072 = vmatprep.mubr.bf16.mxu0 0
        %3073 = vmatmul.mubr.bf16.gmra.mrb[0].mxu0 %v2411
        %v3074 = vpop.f32.mrb[0].mxu0
        %v3075 = vadd.f32 %v2493, %v3074
        %v3076 = vpop.f32.mrb[0].mxu0
        %v3077 = vadd.f32 %v2497, %v3076
        %v3078 = vpop.f32.mrb[0].mxu0
        %v3079 = vadd.f32 %v2493, %v3078
        %v3080 = vpop.f32.mrb[0].mxu0
        %v3081 = vadd.f32 %v2497, %v3080
        %3082 = vmatprep.mubr.bf16.mxu0 0
        %3083 = vmatmul.mubr.bf16.gmra.mrb[0].mxu0 %v2412
        %v3084 = vpop.f32.mrb[0].mxu0
        %v3085 = vadd.f32 %v2493, %v3084
        %v3086 = vpop.f32.mrb[0].mxu0
        %v3087 = vadd.f32 %v2497, %v3086
        %v3088 = vpop.f32.mrb[0].mxu0
        %v3089 = vadd.f32 %v2493, %v3088
        %v3090 = vpop.f32.mrb[0].mxu0
        %v3091 = vadd.f32 %v2497, %v3090
        %3092 = vmatprep.mubr.bf16.mxu0 0
        %3093 = vmatmul.mubr.bf16.gmra.mrb[0].mxu0 %v2413
        %v3094 = vpop.f32.mrb[0].mxu0
        %v3095 = vadd.f32 %v2493, %v3094
        %v3096 = vpop.f32.mrb[0].mxu0
        %v3097 = vadd.f32 %v2497, %v3096
        %v3098 = vpop.f32.mrb[0].mxu0
        %v3099 = vadd.f32 %v2493, %v3098
        %v3100 = vpop.f32.mrb[0].mxu0
        %v3101 = vadd.f32 %v2497, %v3100
        %3102 = vmatprep.mubr.bf16.mxu0 0
        %3103 = vmatmul.mubr.bf16.gmra.mrb[0].mxu0 %v2414
        %v3104 = vpop.f32.mrb[0].mxu0
        %v3105 = vadd.f32 %v2493, %v3104
        %v3106 = vpop.f32.mrb[0].mxu0
        %v3107 = vadd.f32 %v2497, %v3106
        %v3108 = vpop.f32.mrb[0].mxu0
        %v3109 = vadd.f32 %v2493, %v3108
        %v3110 = vpop.f32.mrb[0].mxu0
        %v3111 = vadd.f32 %v2497, %v3110
        %3112 = vmatprep.mubr.bf16.mxu0 0
        %3113 = vmatmul.mubr.bf16.gmra.mrb[0].mxu0 %v2415
        %v3114 = vpop.f32.mrb[0].mxu0
        %v3115 = vadd.f32 %v2493, %v3114
        %v3116 = vpop.f32.mrb[0].mxu0
        %v3117 = vadd.f32 %v2497, %v3116
        %v3118 = vpop.f32.mrb[0].mxu0
        %v3119 = vadd.f32 %v2493, %v3118
        %v3120 = vpop.f32.mrb[0].mxu0
        %v3121 = vadd.f32 %v2497, %v3120
        %3122 = vmatprep.mubr.bf16.mxu0 0
        %3123 = vmatmul.mubr.bf16.gmra.mrb[0].mxu0 %v2416
        %v3124 = vpop.f32.mrb[0].mxu0
        %v3125 = vadd.f32 %v2493, %v3124
        %v3126 = vpop.f32.mrb[0].mxu0
        %v3127 = vadd.f32 %v2497, %v3126
        %v3128 = vpop.f32.mrb[0].mxu0
        %v3129 = vadd.f32 %v2493, %v3128
        %v3130 = vpop.f32.mrb[0].mxu0
        %v3131 = vadd.f32 %v2497, %v3130
        %3132 = vmatprep.mubr.bf16.mxu0 0
        %3133 = vmatmul.mubr.bf16.gmra.mrb[0].mxu0 %v2417
        %v3134 = vpop.f32.mrb[0].mxu0
        %v3135 = vadd.f32 %v2493, %v3134
        %v3136 = vpop.f32.mrb[0].mxu0
        %v3137 = vadd.f32 %v2497, %v3136
        %v3138 = vpop.f32.mrb[0].mxu0
        %v3139 = vadd.f32 %v2493, %v3138
        %v3140 = vpop.f32.mrb[0].mxu0
        %v3141 = vadd.f32 %v2497, %v3140
        %3142 = vmatprep.mubr.bf16.mxu0 0
        %3143 = vmatmul.mubr.bf16.gmra.mrb[0].mxu0 %v2418
        %v3144 = vpop.f32.mrb[0].mxu0
        %v3145 = vadd.f32 %v2493, %v3144
        %v3146 = vpop.f32.mrb[0].mxu0
        %v3147 = vadd.f32 %v2497, %v3146
        %v3148 = vpop.f32.mrb[0].mxu0
        %v3149 = vadd.f32 %v2493, %v3148
        %v3150 = vpop.f32.mrb[0].mxu0
        %v3151 = vadd.f32 %v2497, %v3150
        %3152 = vmatprep.mubr.bf16.mxu0 0
        %3153 = vmatmul.mubr.bf16.gmra.mrb[0].mxu0 %v2419
        %v3154 = vpop.f32.mrb[0].mxu0
        %v3155 = vadd.f32 %v2493, %v3154
        %v3156 = vpop.f32.mrb[0].mxu0
        %v3157 = vadd.f32 %v2497, %v3156
        %v3158 = vpop.f32.mrb[0].mxu0
        %v3159 = vadd.f32 %v2493, %v3158
        %v3160 = vpop.f32.mrb[0].mxu0
        %v3161 = vadd.f32 %v2497, %v3160
        %3162 = vmatprep.mubr.bf16.mxu0 0
        %3163 = vmatmul.mubr.bf16.gmra.mrb[0].mxu0 %v2420
        %v3164 = vpop.f32.mrb[0].mxu0
        %v3165 = vadd.f32 %v2493, %v3164
        %v3166 = vpop.f32.mrb[0].mxu0
        %v3167 = vadd.f32 %v2497, %v3166
        %v3168 = vpop.f32.mrb[0].mxu0
        %v3169 = vadd.f32 %v2493, %v3168
        %v3170 = vpop.f32.mrb[0].mxu0
        %v3171 = vadd.f32 %v2497, %v3170
        %3172 = vmatprep.mubr.bf16.mxu0 0
        %3173 = vmatmul.mubr.bf16.gmra.mrb[0].mxu0 %v2421
        %v3174 = vpop.f32.mrb[0].mxu0
        %v3175 = vadd.f32 %v2493, %v3174
        %v3176 = vpop.f32.mrb[0].mxu0
        %v3177 = vadd.f32 %v2497, %v3176
        %v3178 = vpop.f32.mrb[0].mxu0
        %v3179 = vadd.f32 %v2493, %v3178
        %v3180 = vpop.f32.mrb[0].mxu0
        %v3181 = vadd.f32 %v2497, %v3180
        %3182 = vmatprep.mubr.bf16.mxu0 0
        %3183 = vmatmul.mubr.bf16.gmra.mrb[0].mxu0 %v2422
        %v3184 = vpop.f32.mrb[0].mxu0
        %v3185 = vadd.f32 %v2493, %v3184
        %v3186 = vpop.f32.mrb[0].mxu0
        %v3187 = vadd.f32 %v2497, %v3186
        %v3188 = vpop.f32.mrb[0].mxu0
        %v3189 = vadd.f32 %v2493, %v3188
        %v3190 = vpop.f32.mrb[0].mxu0
        %v3191 = vadd.f32 %v2497, %v3190
        %3192 = vmatprep.mubr.bf16.mxu0 0
        %3193 = vmatmul.mubr.bf16.gmra.mrb[0].mxu0 %v2423
        %v3194 = vpop.f32.mrb[0].mxu0
        %v3195 = vadd.f32 %v2493, %v3194
        %v3196 = vpop.f32.mrb[0].mxu0
        %v3197 = vadd.f32 %v2497, %v3196
        %v3198 = vpop.f32.mrb[0].mxu0
        %v3199 = vadd.f32 %v2493, %v3198
        %v3200 = vpop.f32.mrb[0].mxu0
        %v3201 = vadd.f32 %v2497, %v3200
        %3202 = vdwg.mxu0
        %3203 = vmatprep.subr.bf16.mxu0 %v2725
        %3204 = vmatpush1.bf16.msra.mxu0 %v2724
        %3205 = vmatprep.subr.bf16.mxu0 %v2733
        %3206 = vmatpush1.bf16.msra.mxu0 %v2732
        %3207 = vmatprep.subr.bf16.mxu0 %v2741
        %3208 = vmatpush1.bf16.msra.mxu0 %v2740
        %3209 = vmatprep.subr.bf16.mxu0 %v2749
        %3210 = vmatpush1.bf16.msra.mxu0 %v2748
        %3211 = vmatprep.subr.bf16.mxu0 %v2757
        %3212 = vmatpush1.bf16.msra.mxu0 %v2756
        %3213 = vmatprep.subr.bf16.mxu0 %v2765
        %3214 = vmatpush1.bf16.msra.mxu0 %v2764
        %3215 = vmatprep.subr.bf16.mxu0 %v2773
        %3216 = vmatpush1.bf16.msra.mxu0 %v2772
        %3217 = vmatprep.subr.bf16.mxu0 %v2781
        %3218 = vmatpush1.bf16.msra.mxu0 %v2780
        %3219 = vmatprep.subr.bf16.mxu0 0
        %3220 = vmatpush1.bf16.msra.mxu0 0
        %3221 = vmatprep.subr.bf16.mxu0 0
        %3222 = vmatpush1.bf16.msra.mxu0 0
        %3223 = vmatprep.subr.bf16.mxu0 0
        %3224 = vmatpush1.bf16.msra.mxu0 0
        %3225 = vmatprep.subr.bf16.mxu0 0
        %3226 = vmatpush1.bf16.msra.mxu0 0
        %3227 = vmatprep.subr.bf16.mxu0 0
        %3228 = vmatpush1.bf16.msra.mxu0 0
        %3229 = vmatprep.subr.bf16.mxu0 0
        %3230 = vmatpush1.bf16.msra.mxu0 0
        %3231 = vmatprep.subr.bf16.mxu0 0
        %3232 = vmatpush1.bf16.msra.mxu0 0
        %3233 = vmatprep.subr.bf16.mxu0 0
        %3234 = vmatpush1.bf16.msra.mxu0 0
        %3235 = vmatprep.mubr.bf16.mxu0 0
        %3236 = vmatmul.mubr.bf16.gmra.mrb[0].mxu0 %v2392
        %v3237 = vpop.f32.mrb[0].mxu0
        %v3238 = vadd.f32 %v2501, %v3237
        %v3239 = vpop.f32.mrb[0].mxu0
        %v3240 = vadd.f32 %v2505, %v3239
        %v3241 = vpop.f32.mrb[0].mxu0
        %v3242 = vadd.f32 %v2501, %v3241
        %v3243 = vpop.f32.mrb[0].mxu0
        %v3244 = vadd.f32 %v2505, %v3243
        %3245 = vmatprep.mubr.bf16.mxu0 0
        %3246 = vmatmul.mubr.bf16.gmra.mrb[0].mxu0 %v2393
        %v3247 = vpop.f32.mrb[0].mxu0
        %v3248 = vadd.f32 %v2501, %v3247
        %v3249 = vpop.f32.mrb[0].mxu0
        %v3250 = vadd.f32 %v2505, %v3249
        %v3251 = vpop.f32.mrb[0].mxu0
        %v3252 = vadd.f32 %v2501, %v3251
        %v3253 = vpop.f32.mrb[0].mxu0
        %v3254 = vadd.f32 %v2505, %v3253
        %3255 = vmatprep.mubr.bf16.mxu0 0
        %3256 = vmatmul.mubr.bf16.gmra.mrb[0].mxu0 %v2394
        %v3257 = vpop.f32.mrb[0].mxu0
        %v3258 = vadd.f32 %v2501, %v3257
        %v3259 = vpop.f32.mrb[0].mxu0
        %v3260 = vadd.f32 %v2505, %v3259
        %v3261 = vpop.f32.mrb[0].mxu0
        %v3262 = vadd.f32 %v2501, %v3261
        %v3263 = vpop.f32.mrb[0].mxu0
        %v3264 = vadd.f32 %v2505, %v3263
        %3265 = vmatprep.mubr.bf16.mxu0 0
        %3266 = vmatmul.mubr.bf16.gmra.mrb[0].mxu0 %v2395
        %v3267 = vpop.f32.mrb[0].mxu0
        %v3268 = vadd.f32 %v2501, %v3267
        %v3269 = vpop.f32.mrb[0].mxu0
        %v3270 = vadd.f32 %v2505, %v3269
        %v3271 = vpop.f32.mrb[0].mxu0
        %v3272 = vadd.f32 %v2501, %v3271
        %v3273 = vpop.f32.mrb[0].mxu0
        %v3274 = vadd.f32 %v2505, %v3273
        %3275 = vmatprep.mubr.bf16.mxu0 0
        %3276 = vmatmul.mubr.bf16.gmra.mrb[0].mxu0 %v2396
        %v3277 = vpop.f32.mrb[0].mxu0
        %v3278 = vadd.f32 %v2501, %v3277
        %v3279 = vpop.f32.mrb[0].mxu0
        %v3280 = vadd.f32 %v2505, %v3279
        %v3281 = vpop.f32.mrb[0].mxu0
        %v3282 = vadd.f32 %v2501, %v3281
        %v3283 = vpop.f32.mrb[0].mxu0
        %v3284 = vadd.f32 %v2505, %v3283
        %3285 = vmatprep.mubr.bf16.mxu0 0
        %3286 = vmatmul.mubr.bf16.gmra.mrb[0].mxu0 %v2397
        %v3287 = vpop.f32.mrb[0].mxu0
        %v3288 = vadd.f32 %v2501, %v3287
        %v3289 = vpop.f32.mrb[0].mxu0
        %v3290 = vadd.f32 %v2505, %v3289
        %v3291 = vpop.f32.mrb[0].mxu0
        %v3292 = vadd.f32 %v2501, %v3291
        %v3293 = vpop.f32.mrb[0].mxu0
        %v3294 = vadd.f32 %v2505, %v3293
        %3295 = vmatprep.mubr.bf16.mxu0 0
        %3296 = vmatmul.mubr.bf16.gmra.mrb[0].mxu0 %v2398
        %v3297 = vpop.f32.mrb[0].mxu0
        %v3298 = vadd.f32 %v2501, %v3297
        %v3299 = vpop.f32.mrb[0].mxu0
        %v3300 = vadd.f32 %v2505, %v3299
        %v3301 = vpop.f32.mrb[0].mxu0
        %v3302 = vadd.f32 %v2501, %v3301
        %v3303 = vpop.f32.mrb[0].mxu0
        %v3304 = vadd.f32 %v2505, %v3303
        %3305 = vmatprep.mubr.bf16.mxu0 0
        %3306 = vmatmul.mubr.bf16.gmra.mrb[0].mxu0 %v2399
        %v3307 = vpop.f32.mrb[0].mxu0
        %v3308 = vadd.f32 %v2501, %v3307
        %v3309 = vpop.f32.mrb[0].mxu0
        %v3310 = vadd.f32 %v2505, %v3309
        %v3311 = vpop.f32.mrb[0].mxu0
        %v3312 = vadd.f32 %v2501, %v3311
        %v3313 = vpop.f32.mrb[0].mxu0
        %v3314 = vadd.f32 %v2505, %v3313
        %3315 = vmatprep.mubr.bf16.mxu0 0
        %3316 = vmatmul.mubr.bf16.gmra.mrb[0].mxu0 %v2400
        %v3317 = vpop.f32.mrb[0].mxu0
        %v3318 = vadd.f32 %v2501, %v3317
        %v3319 = vpop.f32.mrb[0].mxu0
        %v3320 = vadd.f32 %v2505, %v3319
        %v3321 = vpop.f32.mrb[0].mxu0
        %v3322 = vadd.f32 %v2501, %v3321
        %v3323 = vpop.f32.mrb[0].mxu0
        %v3324 = vadd.f32 %v2505, %v3323
        %3325 = vmatprep.mubr.bf16.mxu0 0
        %3326 = vmatmul.mubr.bf16.gmra.mrb[0].mxu0 %v2401
        %v3327 = vpop.f32.mrb[0].mxu0
        %v3328 = vadd.f32 %v2501, %v3327
        %v3329 = vpop.f32.mrb[0].mxu0
        %v3330 = vadd.f32 %v2505, %v3329
        %v3331 = vpop.f32.mrb[0].mxu0
        %v3332 = vadd.f32 %v2501, %v3331
        %v3333 = vpop.f32.mrb[0].mxu0
        %v3334 = vadd.f32 %v2505, %v3333
        %3335 = vmatprep.mubr.bf16.mxu0 0
        %3336 = vmatmul.mubr.bf16.gmra.mrb[0].mxu0 %v2402
        %v3337 = vpop.f32.mrb[0].mxu0
        %v3338 = vadd.f32 %v2501, %v3337
        %v3339 = vpop.f32.mrb[0].mxu0
        %v3340 = vadd.f32 %v2505, %v3339
        %v3341 = vpop.f32.mrb[0].mxu0
        %v3342 = vadd.f32 %v2501, %v3341
        %v3343 = vpop.f32.mrb[0].mxu0
        %v3344 = vadd.f32 %v2505, %v3343
        %3345 = vmatprep.mubr.bf16.mxu0 0
        %3346 = vmatmul.mubr.bf16.gmra.mrb[0].mxu0 %v2403
        %v3347 = vpop.f32.mrb[0].mxu0
        %v3348 = vadd.f32 %v2501, %v3347
        %v3349 = vpop.f32.mrb[0].mxu0
        %v3350 = vadd.f32 %v2505, %v3349
        %v3351 = vpop.f32.mrb[0].mxu0
        %v3352 = vadd.f32 %v2501, %v3351
        %v3353 = vpop.f32.mrb[0].mxu0
        %v3354 = vadd.f32 %v2505, %v3353
        %3355 = vmatprep.mubr.bf16.mxu0 0
        %3356 = vmatmul.mubr.bf16.gmra.mrb[0].mxu0 %v2404
        %v3357 = vpop.f32.mrb[0].mxu0
        %v3358 = vadd.f32 %v2501, %v3357
        %v3359 = vpop.f32.mrb[0].mxu0
        %v3360 = vadd.f32 %v2505, %v3359
        %v3361 = vpop.f32.mrb[0].mxu0
        %v3362 = vadd.f32 %v2501, %v3361
        %v3363 = vpop.f32.mrb[0].mxu0
        %v3364 = vadd.f32 %v2505, %v3363
        %3365 = vmatprep.mubr.bf16.mxu0 0
        %3366 = vmatmul.mubr.bf16.gmra.mrb[0].mxu0 %v2405
        %v3367 = vpop.f32.mrb[0].mxu0
        %v3368 = vadd.f32 %v2501, %v3367
        %v3369 = vpop.f32.mrb[0].mxu0
        %v3370 = vadd.f32 %v2505, %v3369
        %v3371 = vpop.f32.mrb[0].mxu0
        %v3372 = vadd.f32 %v2501, %v3371
        %v3373 = vpop.f32.mrb[0].mxu0
        %v3374 = vadd.f32 %v2505, %v3373
        %3375 = vmatprep.mubr.bf16.mxu0 0
        %3376 = vmatmul.mubr.bf16.gmra.mrb[0].mxu0 %v2406
        %v3377 = vpop.f32.mrb[0].mxu0
        %v3378 = vadd.f32 %v2501, %v3377
        %v3379 = vpop.f32.mrb[0].mxu0
        %v3380 = vadd.f32 %v2505, %v3379
        %v3381 = vpop.f32.mrb[0].mxu0
        %v3382 = vadd.f32 %v2501, %v3381
        %v3383 = vpop.f32.mrb[0].mxu0
        %v3384 = vadd.f32 %v2505, %v3383
        %3385 = vmatprep.mubr.bf16.mxu0 0
        %3386 = vmatmul.mubr.bf16.gmra.mrb[0].mxu0 %v2407
        %v3387 = vpop.f32.mrb[0].mxu0
        %v3388 = vadd.f32 %v2501, %v3387
        %v3389 = vpop.f32.mrb[0].mxu0
        %v3390 = vadd.f32 %v2505, %v3389
        %v3391 = vpop.f32.mrb[0].mxu0
        %v3392 = vadd.f32 %v2501, %v3391
        %v3393 = vpop.f32.mrb[0].mxu0
        %v3394 = vadd.f32 %v2505, %v3393
        %3395 = vmatprep.mubr.bf16.mxu0 0
        %3396 = vmatmul.mubr.bf16.gmra.mrb[0].mxu0 %v2408
        %v3397 = vpop.f32.mrb[0].mxu0
        %v3398 = vadd.f32 %v2501, %v3397
        %v3399 = vpop.f32.mrb[0].mxu0
        %v3400 = vadd.f32 %v2505, %v3399
        %v3401 = vpop.f32.mrb[0].mxu0
        %v3402 = vadd.f32 %v2501, %v3401
        %v3403 = vpop.f32.mrb[0].mxu0
        %v3404 = vadd.f32 %v2505, %v3403
        %3405 = vmatprep.mubr.bf16.mxu0 0
        %3406 = vmatmul.mubr.bf16.gmra.mrb[0].mxu0 %v2409
        %v3407 = vpop.f32.mrb[0].mxu0
        %v3408 = vadd.f32 %v2501, %v3407
        %v3409 = vpop.f32.mrb[0].mxu0
        %v3410 = vadd.f32 %v2505, %v3409
        %v3411 = vpop.f32.mrb[0].mxu0
        %v3412 = vadd.f32 %v2501, %v3411
        %v3413 = vpop.f32.mrb[0].mxu0
        %v3414 = vadd.f32 %v2505, %v3413
        %3415 = vmatprep.mubr.bf16.mxu0 0
        %3416 = vmatmul.mubr.bf16.gmra.mrb[0].mxu0 %v2410
        %v3417 = vpop.f32.mrb[0].mxu0
        %v3418 = vadd.f32 %v2501, %v3417
        %v3419 = vpop.f32.mrb[0].mxu0
        %v3420 = vadd.f32 %v2505, %v3419
        %v3421 = vpop.f32.mrb[0].mxu0
        %v3422 = vadd.f32 %v2501, %v3421
        %v3423 = vpop.f32.mrb[0].mxu0
        %v3424 = vadd.f32 %v2505, %v3423
        %3425 = vmatprep.mubr.bf16.mxu0 0
        %3426 = vmatmul.mubr.bf16.gmra.mrb[0].mxu0 %v2411
        %v3427 = vpop.f32.mrb[0].mxu0
        %v3428 = vadd.f32 %v2501, %v3427
        %v3429 = vpop.f32.mrb[0].mxu0
        %v3430 = vadd.f32 %v2505, %v3429
        %v3431 = vpop.f32.mrb[0].mxu0
        %v3432 = vadd.f32 %v2501, %v3431
        %v3433 = vpop.f32.mrb[0].mxu0
        %v3434 = vadd.f32 %v2505, %v3433
        %3435 = vmatprep.mubr.bf16.mxu0 0
        %3436 = vmatmul.mubr.bf16.gmra.mrb[0].mxu0 %v2412
        %v3437 = vpop.f32.mrb[0].mxu0
        %v3438 = vadd.f32 %v2501, %v3437
        %v3439 = vpop.f32.mrb[0].mxu0
        %v3440 = vadd.f32 %v2505, %v3439
        %v3441 = vpop.f32.mrb[0].mxu0
        %v3442 = vadd.f32 %v2501, %v3441
        %v3443 = vpop.f32.mrb[0].mxu0
        %v3444 = vadd.f32 %v2505, %v3443
        %3445 = vmatprep.mubr.bf16.mxu0 0
        %3446 = vmatmul.mubr.bf16.gmra.mrb[0].mxu0 %v2413
        %v3447 = vpop.f32.mrb[0].mxu0
        %v3448 = vadd.f32 %v2501, %v3447
        %v3449 = vpop.f32.mrb[0].mxu0
        %v3450 = vadd.f32 %v2505, %v3449
        %v3451 = vpop.f32.mrb[0].mxu0
        %v3452 = vadd.f32 %v2501, %v3451
        %v3453 = vpop.f32.mrb[0].mxu0
        %v3454 = vadd.f32 %v2505, %v3453
        %3455 = vmatprep.mubr.bf16.mxu0 0
        %3456 = vmatmul.mubr.bf16.gmra.mrb[0].mxu0 %v2414
        %v3457 = vpop.f32.mrb[0].mxu0
        %v3458 = vadd.f32 %v2501, %v3457
        %v3459 = vpop.f32.mrb[0].mxu0
        %v3460 = vadd.f32 %v2505, %v3459
        %v3461 = vpop.f32.mrb[0].mxu0
        %v3462 = vadd.f32 %v2501, %v3461
        %v3463 = vpop.f32.mrb[0].mxu0
        %v3464 = vadd.f32 %v2505, %v3463
        %3465 = vmatprep.mubr.bf16.mxu0 0
        %3466 = vmatmul.mubr.bf16.gmra.mrb[0].mxu0 %v2415
        %v3467 = vpop.f32.mrb[0].mxu0
        %v3468 = vadd.f32 %v2501, %v3467
        %v3469 = vpop.f32.mrb[0].mxu0
        %v3470 = vadd.f32 %v2505, %v3469
        %v3471 = vpop.f32.mrb[0].mxu0
        %v3472 = vadd.f32 %v2501, %v3471
        %v3473 = vpop.f32.mrb[0].mxu0
        %v3474 = vadd.f32 %v2505, %v3473
        %3475 = vmatprep.mubr.bf16.mxu0 0
        %3476 = vmatmul.mubr.bf16.gmra.mrb[0].mxu0 %v2416
        %v3477 = vpop.f32.mrb[0].mxu0
        %v3478 = vadd.f32 %v2501, %v3477
        %v3479 = vpop.f32.mrb[0].mxu0
        %v3480 = vadd.f32 %v2505, %v3479
        %v3481 = vpop.f32.mrb[0].mxu0
        %v3482 = vadd.f32 %v2501, %v3481
        %v3483 = vpop.f32.mrb[0].mxu0
        %v3484 = vadd.f32 %v2505, %v3483
        %3485 = vmatprep.mubr.bf16.mxu0 0
        %3486 = vmatmul.mubr.bf16.gmra.mrb[0].mxu0 %v2417
        %v3487 = vpop.f32.mrb[0].mxu0
        %v3488 = vadd.f32 %v2501, %v3487
        %v3489 = vpop.f32.mrb[0].mxu0
        %v3490 = vadd.f32 %v2505, %v3489
        %v3491 = vpop.f32.mrb[0].mxu0
        %v3492 = vadd.f32 %v2501, %v3491
        %v3493 = vpop.f32.mrb[0].mxu0
        %v3494 = vadd.f32 %v2505, %v3493
        %3495 = vmatprep.mubr.bf16.mxu0 0
        %3496 = vmatmul.mubr.bf16.gmra.mrb[0].mxu0 %v2418
        %v3497 = vpop.f32.mrb[0].mxu0
        %v3498 = vadd.f32 %v2501, %v3497
        %v3499 = vpop.f32.mrb[0].mxu0
        %v3500 = vadd.f32 %v2505, %v3499
        %v3501 = vpop.f32.mrb[0].mxu0
        %v3502 = vadd.f32 %v2501, %v3501
        %v3503 = vpop.f32.mrb[0].mxu0
        %v3504 = vadd.f32 %v2505, %v3503
        %3505 = vmatprep.mubr.bf16.mxu0 0
        %3506 = vmatmul.mubr.bf16.gmra.mrb[0].mxu0 %v2419
        %v3507 = vpop.f32.mrb[0].mxu0
        %v3508 = vadd.f32 %v2501, %v3507
        %v3509 = vpop.f32.mrb[0].mxu0
        %v3510 = vadd.f32 %v2505, %v3509
        %v3511 = vpop.f32.mrb[0].mxu0
        %v3512 = vadd.f32 %v2501, %v3511
        %v3513 = vpop.f32.mrb[0].mxu0
        %v3514 = vadd.f32 %v2505, %v3513
        %3515 = vmatprep.mubr.bf16.mxu0 0
        %3516 = vmatmul.mubr.bf16.gmra.mrb[0].mxu0 %v2420
        %v3517 = vpop.f32.mrb[0].mxu0
        %v3518 = vadd.f32 %v2501, %v3517
        %v3519 = vpop.f32.mrb[0].mxu0
        %v3520 = vadd.f32 %v2505, %v3519
        %v3521 = vpop.f32.mrb[0].mxu0
        %v3522 = vadd.f32 %v2501, %v3521
        %v3523 = vpop.f32.mrb[0].mxu0
        %v3524 = vadd.f32 %v2505, %v3523
        %3525 = vmatprep.mubr.bf16.mxu0 0
        %3526 = vmatmul.mubr.bf16.gmra.mrb[0].mxu0 %v2421
        %v3527 = vpop.f32.mrb[0].mxu0
        %v3528 = vadd.f32 %v2501, %v3527
        %v3529 = vpop.f32.mrb[0].mxu0
        %v3530 = vadd.f32 %v2505, %v3529
        %v3531 = vpop.f32.mrb[0].mxu0
        %v3532 = vadd.f32 %v2501, %v3531
        %v3533 = vpop.f32.mrb[0].mxu0
        %v3534 = vadd.f32 %v2505, %v3533
        %3535 = vmatprep.mubr.bf16.mxu0 0
        %3536 = vmatmul.mubr.bf16.gmra.mrb[0].mxu0 %v2422
        %v3537 = vpop.f32.mrb[0].mxu0
        %v3538 = vadd.f32 %v2501, %v3537
        %v3539 = vpop.f32.mrb[0].mxu0
        %v3540 = vadd.f32 %v2505, %v3539
        %v3541 = vpop.f32.mrb[0].mxu0
        %v3542 = vadd.f32 %v2501, %v3541
        %v3543 = vpop.f32.mrb[0].mxu0
        %v3544 = vadd.f32 %v2505, %v3543
        %3545 = vmatprep.mubr.bf16.mxu0 0
        %3546 = vmatmul.mubr.bf16.gmra.mrb[0].mxu0 %v2423
        %v3547 = vpop.f32.mrb[0].mxu0
        %v3548 = vadd.f32 %v2501, %v3547
        %v3549 = vpop.f32.mrb[0].mxu0
        %v3550 = vadd.f32 %v2505, %v3549
        %v3551 = vpop.f32.mrb[0].mxu0
        %v3552 = vadd.f32 %v2501, %v3551
        %v3553 = vpop.f32.mrb[0].mxu0
        %v3554 = vadd.f32 %v2505, %v3553
        %3555 = vdwg.mxu0
        %3556 = vmatprep.subr.bf16.mxu0 %v2727
        %3557 = vmatpush1.bf16.msra.mxu0 %v2726
        %3558 = vmatprep.subr.bf16.mxu0 %v2735
        %3559 = vmatpush1.bf16.msra.mxu0 %v2734
        %3560 = vmatprep.subr.bf16.mxu0 %v2743
        %3561 = vmatpush1.bf16.msra.mxu0 %v2742
        %3562 = vmatprep.subr.bf16.mxu0 %v2751
        %3563 = vmatpush1.bf16.msra.mxu0 %v2750
        %3564 = vmatprep.subr.bf16.mxu0 %v2759
        %3565 = vmatpush1.bf16.msra.mxu0 %v2758
        %3566 = vmatprep.subr.bf16.mxu0 %v2767
        %3567 = vmatpush1.bf16.msra.mxu0 %v2766
        %3568 = vmatprep.subr.bf16.mxu0 %v2775
        %3569 = vmatpush1.bf16.msra.mxu0 %v2774
        %3570 = vmatprep.subr.bf16.mxu0 %v2783
        %3571 = vmatpush1.bf16.msra.mxu0 %v2782
        %3572 = vmatprep.subr.bf16.mxu0 0
        %3573 = vmatpush1.bf16.msra.mxu0 0
        %3574 = vmatprep.subr.bf16.mxu0 0
        %3575 = vmatpush1.bf16.msra.mxu0 0
        %3576 = vmatprep.subr.bf16.mxu0 0
        %3577 = vmatpush1.bf16.msra.mxu0 0
        %3578 = vmatprep.subr.bf16.mxu0 0
        %3579 = vmatpush1.bf16.msra.mxu0 0
        %3580 = vmatprep.subr.bf16.mxu0 0
        %3581 = vmatpush1.bf16.msra.mxu0 0
        %3582 = vmatprep.subr.bf16.mxu0 0
        %3583 = vmatpush1.bf16.msra.mxu0 0
        %3584 = vmatprep.subr.bf16.mxu0 0
        %3585 = vmatpush1.bf16.msra.mxu0 0
        %3586 = vmatprep.subr.bf16.mxu0 0
        %3587 = vmatpush1.bf16.msra.mxu0 0
        %3588 = vmatprep.mubr.bf16.mxu0 0
        %3589 = vmatmul.mubr.bf16.gmra.mrb[0].mxu0 %v2392
        %v3590 = vpop.f32.mrb[0].mxu0
        %v3591 = vadd.f32 %v2509, %v3590
        %v3592 = vpop.f32.mrb[0].mxu0
        %v3593 = vadd.f32 %v2513, %v3592
        %v3594 = vpop.f32.mrb[0].mxu0
        %v3595 = vadd.f32 %v2509, %v3594
        %v3596 = vpop.f32.mrb[0].mxu0
        %v3597 = vadd.f32 %v2513, %v3596
        %3598 = vmatprep.mubr.bf16.mxu0 0
        %3599 = vmatmul.mubr.bf16.gmra.mrb[0].mxu0 %v2393
        %v3600 = vpop.f32.mrb[0].mxu0
        %v3601 = vadd.f32 %v2509, %v3600
        %v3602 = vpop.f32.mrb[0].mxu0
        %v3603 = vadd.f32 %v2513, %v3602
        %v3604 = vpop.f32.mrb[0].mxu0
        %v3605 = vadd.f32 %v2509, %v3604
        %v3606 = vpop.f32.mrb[0].mxu0
        %v3607 = vadd.f32 %v2513, %v3606
        %3608 = vmatprep.mubr.bf16.mxu0 0
        %3609 = vmatmul.mubr.bf16.gmra.mrb[0].mxu0 %v2394
        %v3610 = vpop.f32.mrb[0].mxu0
        %v3611 = vadd.f32 %v2509, %v3610
        %v3612 = vpop.f32.mrb[0].mxu0
        %v3613 = vadd.f32 %v2513, %v3612
        %v3614 = vpop.f32.mrb[0].mxu0
        %v3615 = vadd.f32 %v2509, %v3614
        %v3616 = vpop.f32.mrb[0].mxu0
        %v3617 = vadd.f32 %v2513, %v3616
        %3618 = vmatprep.mubr.bf16.mxu0 0
        %3619 = vmatmul.mubr.bf16.gmra.mrb[0].mxu0 %v2395
        %v3620 = vpop.f32.mrb[0].mxu0
        %v3621 = vadd.f32 %v2509, %v3620
        %v3622 = vpop.f32.mrb[0].mxu0
        %v3623 = vadd.f32 %v2513, %v3622
        %v3624 = vpop.f32.mrb[0].mxu0
        %v3625 = vadd.f32 %v2509, %v3624
        %v3626 = vpop.f32.mrb[0].mxu0
        %v3627 = vadd.f32 %v2513, %v3626
        %3628 = vmatprep.mubr.bf16.mxu0 0
        %3629 = vmatmul.mubr.bf16.gmra.mrb[0].mxu0 %v2396
        %v3630 = vpop.f32.mrb[0].mxu0
        %v3631 = vadd.f32 %v2509, %v3630
        %v3632 = vpop.f32.mrb[0].mxu0
        %v3633 = vadd.f32 %v2513, %v3632
        %v3634 = vpop.f32.mrb[0].mxu0
        %v3635 = vadd.f32 %v2509, %v3634
        %v3636 = vpop.f32.mrb[0].mxu0
        %v3637 = vadd.f32 %v2513, %v3636
        %3638 = vmatprep.mubr.bf16.mxu0 0
        %3639 = vmatmul.mubr.bf16.gmra.mrb[0].mxu0 %v2397
        %v3640 = vpop.f32.mrb[0].mxu0
        %v3641 = vadd.f32 %v2509, %v3640
        %v3642 = vpop.f32.mrb[0].mxu0
        %v3643 = vadd.f32 %v2513, %v3642
        %v3644 = vpop.f32.mrb[0].mxu0
        %v3645 = vadd.f32 %v2509, %v3644
        %v3646 = vpop.f32.mrb[0].mxu0
        %v3647 = vadd.f32 %v2513, %v3646
        %3648 = vmatprep.mubr.bf16.mxu0 0
        %3649 = vmatmul.mubr.bf16.gmra.mrb[0].mxu0 %v2398
        %v3650 = vpop.f32.mrb[0].mxu0
        %v3651 = vadd.f32 %v2509, %v3650
        %v3652 = vpop.f32.mrb[0].mxu0
        %v3653 = vadd.f32 %v2513, %v3652
        %v3654 = vpop.f32.mrb[0].mxu0
        %v3655 = vadd.f32 %v2509, %v3654
        %v3656 = vpop.f32.mrb[0].mxu0
        %v3657 = vadd.f32 %v2513, %v3656
        %3658 = vmatprep.mubr.bf16.mxu0 0
        %3659 = vmatmul.mubr.bf16.gmra.mrb[0].mxu0 %v2399
        %v3660 = vpop.f32.mrb[0].mxu0
        %v3661 = vadd.f32 %v2509, %v3660
        %v3662 = vpop.f32.mrb[0].mxu0
        %v3663 = vadd.f32 %v2513, %v3662
        %v3664 = vpop.f32.mrb[0].mxu0
        %v3665 = vadd.f32 %v2509, %v3664
        %v3666 = vpop.f32.mrb[0].mxu0
        %v3667 = vadd.f32 %v2513, %v3666
        %3668 = vmatprep.mubr.bf16.mxu0 0
        %3669 = vmatmul.mubr.bf16.gmra.mrb[0].mxu0 %v2400
        %v3670 = vpop.f32.mrb[0].mxu0
        %v3671 = vadd.f32 %v2509, %v3670
        %v3672 = vpop.f32.mrb[0].mxu0
        %v3673 = vadd.f32 %v2513, %v3672
        %v3674 = vpop.f32.mrb[0].mxu0
        %v3675 = vadd.f32 %v2509, %v3674
        %v3676 = vpop.f32.mrb[0].mxu0
        %v3677 = vadd.f32 %v2513, %v3676
        %3678 = vmatprep.mubr.bf16.mxu0 0
        %3679 = vmatmul.mubr.bf16.gmra.mrb[0].mxu0 %v2401
        %v3680 = vpop.f32.mrb[0].mxu0
        %v3681 = vadd.f32 %v2509, %v3680
        %v3682 = vpop.f32.mrb[0].mxu0
        %v3683 = vadd.f32 %v2513, %v3682
        %v3684 = vpop.f32.mrb[0].mxu0
        %v3685 = vadd.f32 %v2509, %v3684
        %v3686 = vpop.f32.mrb[0].mxu0
        %v3687 = vadd.f32 %v2513, %v3686
        %3688 = vmatprep.mubr.bf16.mxu0 0
        %3689 = vmatmul.mubr.bf16.gmra.mrb[0].mxu0 %v2402
        %v3690 = vpop.f32.mrb[0].mxu0
        %v3691 = vadd.f32 %v2509, %v3690
        %v3692 = vpop.f32.mrb[0].mxu0
        %v3693 = vadd.f32 %v2513, %v3692
        %v3694 = vpop.f32.mrb[0].mxu0
        %v3695 = vadd.f32 %v2509, %v3694
        %v3696 = vpop.f32.mrb[0].mxu0
        %v3697 = vadd.f32 %v2513, %v3696
        %3698 = vmatprep.mubr.bf16.mxu0 0
        %3699 = vmatmul.mubr.bf16.gmra.mrb[0].mxu0 %v2403
        %v3700 = vpop.f32.mrb[0].mxu0
        %v3701 = vadd.f32 %v2509, %v3700
        %v3702 = vpop.f32.mrb[0].mxu0
        %v3703 = vadd.f32 %v2513, %v3702
        %v3704 = vpop.f32.mrb[0].mxu0
        %v3705 = vadd.f32 %v2509, %v3704
        %v3706 = vpop.f32.mrb[0].mxu0
        %v3707 = vadd.f32 %v2513, %v3706
        %3708 = vmatprep.mubr.bf16.mxu0 0
        %3709 = vmatmul.mubr.bf16.gmra.mrb[0].mxu0 %v2404
        %v3710 = vpop.f32.mrb[0].mxu0
        %v3711 = vadd.f32 %v2509, %v3710
        %v3712 = vpop.f32.mrb[0].mxu0
        %v3713 = vadd.f32 %v2513, %v3712
        %v3714 = vpop.f32.mrb[0].mxu0
        %v3715 = vadd.f32 %v2509, %v3714
        %v3716 = vpop.f32.mrb[0].mxu0
        %v3717 = vadd.f32 %v2513, %v3716
        %3718 = vmatprep.mubr.bf16.mxu0 0
        %3719 = vmatmul.mubr.bf16.gmra.mrb[0].mxu0 %v2405
        %v3720 = vpop.f32.mrb[0].mxu0
        %v3721 = vadd.f32 %v2509, %v3720
        %v3722 = vpop.f32.mrb[0].mxu0
        %v3723 = vadd.f32 %v2513, %v3722
        %v3724 = vpop.f32.mrb[0].mxu0
        %v3725 = vadd.f32 %v2509, %v3724
        %v3726 = vpop.f32.mrb[0].mxu0
        %v3727 = vadd.f32 %v2513, %v3726
        %3728 = vmatprep.mubr.bf16.mxu0 0
        %3729 = vmatmul.mubr.bf16.gmra.mrb[0].mxu0 %v2406
        %v3730 = vpop.f32.mrb[0].mxu0
        %v3731 = vadd.f32 %v2509, %v3730
        %v3732 = vpop.f32.mrb[0].mxu0
        %v3733 = vadd.f32 %v2513, %v3732
        %v3734 = vpop.f32.mrb[0].mxu0
        %v3735 = vadd.f32 %v2509, %v3734
        %v3736 = vpop.f32.mrb[0].mxu0
        %v3737 = vadd.f32 %v2513, %v3736
        %3738 = vmatprep.mubr.bf16.mxu0 0
        %3739 = vmatmul.mubr.bf16.gmra.mrb[0].mxu0 %v2407
        %v3740 = vpop.f32.mrb[0].mxu0
        %v3741 = vadd.f32 %v2509, %v3740
        %v3742 = vpop.f32.mrb[0].mxu0
        %v3743 = vadd.f32 %v2513, %v3742
        %v3744 = vpop.f32.mrb[0].mxu0
        %v3745 = vadd.f32 %v2509, %v3744
        %v3746 = vpop.f32.mrb[0].mxu0
        %v3747 = vadd.f32 %v2513, %v3746
        %3748 = vmatprep.mubr.bf16.mxu0 0
        %3749 = vmatmul.mubr.bf16.gmra.mrb[0].mxu0 %v2408
        %v3750 = vpop.f32.mrb[0].mxu0
        %v3751 = vadd.f32 %v2509, %v3750
        %v3752 = vpop.f32.mrb[0].mxu0
        %v3753 = vadd.f32 %v2513, %v3752
        %v3754 = vpop.f32.mrb[0].mxu0
        %v3755 = vadd.f32 %v2509, %v3754
        %v3756 = vpop.f32.mrb[0].mxu0
        %v3757 = vadd.f32 %v2513, %v3756
        %3758 = vmatprep.mubr.bf16.mxu0 0
        %3759 = vmatmul.mubr.bf16.gmra.mrb[0].mxu0 %v2409
        %v3760 = vpop.f32.mrb[0].mxu0
        %v3761 = vadd.f32 %v2509, %v3760
        %v3762 = vpop.f32.mrb[0].mxu0
        %v3763 = vadd.f32 %v2513, %v3762
        %v3764 = vpop.f32.mrb[0].mxu0
        %v3765 = vadd.f32 %v2509, %v3764
        %v3766 = vpop.f32.mrb[0].mxu0
        %v3767 = vadd.f32 %v2513, %v3766
        %3768 = vmatprep.mubr.bf16.mxu0 0
        %3769 = vmatmul.mubr.bf16.gmra.mrb[0].mxu0 %v2410
        %v3770 = vpop.f32.mrb[0].mxu0
        %v3771 = vadd.f32 %v2509, %v3770
        %v3772 = vpop.f32.mrb[0].mxu0
        %v3773 = vadd.f32 %v2513, %v3772
        %v3774 = vpop.f32.mrb[0].mxu0
        %v3775 = vadd.f32 %v2509, %v3774
        %v3776 = vpop.f32.mrb[0].mxu0
        %v3777 = vadd.f32 %v2513, %v3776
        %3778 = vmatprep.mubr.bf16.mxu0 0
        %3779 = vmatmul.mubr.bf16.gmra.mrb[0].mxu0 %v2411
        %v3780 = vpop.f32.mrb[0].mxu0
        %v3781 = vadd.f32 %v2509, %v3780
        %v3782 = vpop.f32.mrb[0].mxu0
        %v3783 = vadd.f32 %v2513, %v3782
        %v3784 = vpop.f32.mrb[0].mxu0
        %v3785 = vadd.f32 %v2509, %v3784
        %v3786 = vpop.f32.mrb[0].mxu0
        %v3787 = vadd.f32 %v2513, %v3786
        %3788 = vmatprep.mubr.bf16.mxu0 0
        %3789 = vmatmul.mubr.bf16.gmra.mrb[0].mxu0 %v2412
        %v3790 = vpop.f32.mrb[0].mxu0
        %v3791 = vadd.f32 %v2509, %v3790
        %v3792 = vpop.f32.mrb[0].mxu0
        %v3793 = vadd.f32 %v2513, %v3792
        %v3794 = vpop.f32.mrb[0].mxu0
        %v3795 = vadd.f32 %v2509, %v3794
        %v3796 = vpop.f32.mrb[0].mxu0
        %v3797 = vadd.f32 %v2513, %v3796
        %3798 = vmatprep.mubr.bf16.mxu0 0
        %3799 = vmatmul.mubr.bf16.gmra.mrb[0].mxu0 %v2413
        %v3800 = vpop.f32.mrb[0].mxu0
        %v3801 = vadd.f32 %v2509, %v3800
        %v3802 = vpop.f32.mrb[0].mxu0
        %v3803 = vadd.f32 %v2513, %v3802
        %v3804 = vpop.f32.mrb[0].mxu0
        %v3805 = vadd.f32 %v2509, %v3804
        %v3806 = vpop.f32.mrb[0].mxu0
        %v3807 = vadd.f32 %v2513, %v3806
        %3808 = vmatprep.mubr.bf16.mxu0 0
        %3809 = vmatmul.mubr.bf16.gmra.mrb[0].mxu0 %v2414
        %v3810 = vpop.f32.mrb[0].mxu0
        %v3811 = vadd.f32 %v2509, %v3810
        %v3812 = vpop.f32.mrb[0].mxu0
        %v3813 = vadd.f32 %v2513, %v3812
        %v3814 = vpop.f32.mrb[0].mxu0
        %v3815 = vadd.f32 %v2509, %v3814
        %v3816 = vpop.f32.mrb[0].mxu0
        %v3817 = vadd.f32 %v2513, %v3816
        %3818 = vmatprep.mubr.bf16.mxu0 0
        %3819 = vmatmul.mubr.bf16.gmra.mrb[0].mxu0 %v2415
        %v3820 = vpop.f32.mrb[0].mxu0
        %v3821 = vadd.f32 %v2509, %v3820
        %v3822 = vpop.f32.mrb[0].mxu0
        %v3823 = vadd.f32 %v2513, %v3822
        %v3824 = vpop.f32.mrb[0].mxu0
        %v3825 = vadd.f32 %v2509, %v3824
        %v3826 = vpop.f32.mrb[0].mxu0
        %v3827 = vadd.f32 %v2513, %v3826
        %3828 = vmatprep.mubr.bf16.mxu0 0
        %3829 = vmatmul.mubr.bf16.gmra.mrb[0].mxu0 %v2416
        %v3830 = vpop.f32.mrb[0].mxu0
        %v3831 = vadd.f32 %v2509, %v3830
        %v3832 = vpop.f32.mrb[0].mxu0
        %v3833 = vadd.f32 %v2513, %v3832
        %v3834 = vpop.f32.mrb[0].mxu0
        %v3835 = vadd.f32 %v2509, %v3834
        %v3836 = vpop.f32.mrb[0].mxu0
        %v3837 = vadd.f32 %v2513, %v3836
        %3838 = vmatprep.mubr.bf16.mxu0 0
        %3839 = vmatmul.mubr.bf16.gmra.mrb[0].mxu0 %v2417
        %v3840 = vpop.f32.mrb[0].mxu0
        %v3841 = vadd.f32 %v2509, %v3840
        %v3842 = vpop.f32.mrb[0].mxu0
        %v3843 = vadd.f32 %v2513, %v3842
        %v3844 = vpop.f32.mrb[0].mxu0
        %v3845 = vadd.f32 %v2509, %v3844
        %v3846 = vpop.f32.mrb[0].mxu0
        %v3847 = vadd.f32 %v2513, %v3846
        %3848 = vmatprep.mubr.bf16.mxu0 0
        %3849 = vmatmul.mubr.bf16.gmra.mrb[0].mxu0 %v2418
        %v3850 = vpop.f32.mrb[0].mxu0
        %v3851 = vadd.f32 %v2509, %v3850
        %v3852 = vpop.f32.mrb[0].mxu0
        %v3853 = vadd.f32 %v2513, %v3852
        %v3854 = vpop.f32.mrb[0].mxu0
        %v3855 = vadd.f32 %v2509, %v3854
        %v3856 = vpop.f32.mrb[0].mxu0
        %v3857 = vadd.f32 %v2513, %v3856
        %3858 = vmatprep.mubr.bf16.mxu0 0
        %3859 = vmatmul.mubr.bf16.gmra.mrb[0].mxu0 %v2419
        %v3860 = vpop.f32.mrb[0].mxu0
        %v3861 = vadd.f32 %v2509, %v3860
        %v3862 = vpop.f32.mrb[0].mxu0
        %v3863 = vadd.f32 %v2513, %v3862
        %v3864 = vpop.f32.mrb[0].mxu0
        %v3865 = vadd.f32 %v2509, %v3864
        %v3866 = vpop.f32.mrb[0].mxu0
        %v3867 = vadd.f32 %v2513, %v3866
        %3868 = vmatprep.mubr.bf16.mxu0 0
        %3869 = vmatmul.mubr.bf16.gmra.mrb[0].mxu0 %v2420
        %v3870 = vpop.f32.mrb[0].mxu0
        %v3871 = vadd.f32 %v2509, %v3870
        %v3872 = vpop.f32.mrb[0].mxu0
        %v3873 = vadd.f32 %v2513, %v3872
        %v3874 = vpop.f32.mrb[0].mxu0
        %v3875 = vadd.f32 %v2509, %v3874
        %v3876 = vpop.f32.mrb[0].mxu0
        %v3877 = vadd.f32 %v2513, %v3876
        %3878 = vmatprep.mubr.bf16.mxu0 0
        %3879 = vmatmul.mubr.bf16.gmra.mrb[0].mxu0 %v2421
        %v3880 = vpop.f32.mrb[0].mxu0
        %v3881 = vadd.f32 %v2509, %v3880
        %v3882 = vpop.f32.mrb[0].mxu0
        %v3883 = vadd.f32 %v2513, %v3882
        %v3884 = vpop.f32.mrb[0].mxu0
        %v3885 = vadd.f32 %v2509, %v3884
        %v3886 = vpop.f32.mrb[0].mxu0
        %v3887 = vadd.f32 %v2513, %v3886
        %3888 = vmatprep.mubr.bf16.mxu0 0
        %3889 = vmatmul.mubr.bf16.gmra.mrb[0].mxu0 %v2422
        %v3890 = vpop.f32.mrb[0].mxu0
        %v3891 = vadd.f32 %v2509, %v3890
        %v3892 = vpop.f32.mrb[0].mxu0
        %v3893 = vadd.f32 %v2513, %v3892
        %v3894 = vpop.f32.mrb[0].mxu0
        %v3895 = vadd.f32 %v2509, %v3894
        %v3896 = vpop.f32.mrb[0].mxu0
        %v3897 = vadd.f32 %v2513, %v3896
        %3898 = vmatprep.mubr.bf16.mxu0 0
        %3899 = vmatmul.mubr.bf16.gmra.mrb[0].mxu0 %v2423
        %v3900 = vpop.f32.mrb[0].mxu0
        %v3901 = vadd.f32 %v2509, %v3900
        %v3902 = vpop.f32.mrb[0].mxu0
        %v3903 = vadd.f32 %v2513, %v3902
        %v3904 = vpop.f32.mrb[0].mxu0
        %v3905 = vadd.f32 %v2509, %v3904
        %v3906 = vpop.f32.mrb[0].mxu0
        %v3907 = vadd.f32 %v2513, %v3906
        %3908 = vdwg.mxu0
        %3909 = vmatprep.subr.bf16.mxu0 %v2729
        %3910 = vmatpush1.bf16.msra.mxu0 %v2728
        %3911 = vmatprep.subr.bf16.mxu0 %v2737
        %3912 = vmatpush1.bf16.msra.mxu0 %v2736
        %3913 = vmatprep.subr.bf16.mxu0 %v2745
        %3914 = vmatpush1.bf16.msra.mxu0 %v2744
        %3915 = vmatprep.subr.bf16.mxu0 %v2753
        %3916 = vmatpush1.bf16.msra.mxu0 %v2752
        %3917 = vmatprep.subr.bf16.mxu0 %v2761
        %3918 = vmatpush1.bf16.msra.mxu0 %v2760
        %3919 = vmatprep.subr.bf16.mxu0 %v2769
        %3920 = vmatpush1.bf16.msra.mxu0 %v2768
        %3921 = vmatprep.subr.bf16.mxu0 %v2777
        %3922 = vmatpush1.bf16.msra.mxu0 %v2776
        %3923 = vmatprep.subr.bf16.mxu0 %v2785
        %3924 = vmatpush1.bf16.msra.mxu0 %v2784
        %3925 = vmatprep.subr.bf16.mxu0 0
        %3926 = vmatpush1.bf16.msra.mxu0 0
        %3927 = vmatprep.subr.bf16.mxu0 0
        %3928 = vmatpush1.bf16.msra.mxu0 0
        %3929 = vmatprep.subr.bf16.mxu0 0
        %3930 = vmatpush1.bf16.msra.mxu0 0
        %3931 = vmatprep.subr.bf16.mxu0 0
        %3932 = vmatpush1.bf16.msra.mxu0 0
        %3933 = vmatprep.subr.bf16.mxu0 0
        %3934 = vmatpush1.bf16.msra.mxu0 0
        %3935 = vmatprep.subr.bf16.mxu0 0
        %3936 = vmatpush1.bf16.msra.mxu0 0
        %3937 = vmatprep.subr.bf16.mxu0 0
        %3938 = vmatpush1.bf16.msra.mxu0 0
        %3939 = vmatprep.subr.bf16.mxu0 0
        %3940 = vmatpush1.bf16.msra.mxu0 0
        %3941 = vmatprep.mubr.bf16.mxu0 0
        %3942 = vmatmul.mubr.bf16.gmra.mrb[0].mxu0 %v2392
        %v3943 = vpop.f32.mrb[0].mxu0
        %v3944 = vadd.f32 %v2517, %v3943
        %v3945 = vpop.f32.mrb[0].mxu0
        %v3946 = vadd.f32 %v2521, %v3945
        %v3947 = vpop.f32.mrb[0].mxu0
        %v3948 = vadd.f32 %v2517, %v3947
        %v3949 = vpop.f32.mrb[0].mxu0
        %v3950 = vadd.f32 %v2521, %v3949
        %3951 = vmatprep.mubr.bf16.mxu0 0
        %3952 = vmatmul.mubr.bf16.gmra.mrb[0].mxu0 %v2393
        %v3953 = vpop.f32.mrb[0].mxu0
        %v3954 = vadd.f32 %v2517, %v3953
        %v3955 = vpop.f32.mrb[0].mxu0
        %v3956 = vadd.f32 %v2521, %v3955
        %v3957 = vpop.f32.mrb[0].mxu0
        %v3958 = vadd.f32 %v2517, %v3957
        %v3959 = vpop.f32.mrb[0].mxu0
        %v3960 = vadd.f32 %v2521, %v3959
        %3961 = vmatprep.mubr.bf16.mxu0 0
        %3962 = vmatmul.mubr.bf16.gmra.mrb[0].mxu0 %v2394
        %v3963 = vpop.f32.mrb[0].mxu0
        %v3964 = vadd.f32 %v2517, %v3963
        %v3965 = vpop.f32.mrb[0].mxu0
        %v3966 = vadd.f32 %v2521, %v3965
        %v3967 = vpop.f32.mrb[0].mxu0
        %v3968 = vadd.f32 %v2517, %v3967
        %v3969 = vpop.f32.mrb[0].mxu0
        %v3970 = vadd.f32 %v2521, %v3969
        %3971 = vmatprep.mubr.bf16.mxu0 0
        %3972 = vmatmul.mubr.bf16.gmra.mrb[0].mxu0 %v2395
        %v3973 = vpop.f32.mrb[0].mxu0
        %v3974 = vadd.f32 %v2517, %v3973
        %v3975 = vpop.f32.mrb[0].mxu0
        %v3976 = vadd.f32 %v2521, %v3975
        %v3977 = vpop.f32.mrb[0].mxu0
        %v3978 = vadd.f32 %v2517, %v3977
        %v3979 = vpop.f32.mrb[0].mxu0
        %v3980 = vadd.f32 %v2521, %v3979
        %3981 = vmatprep.mubr.bf16.mxu0 0
        %3982 = vmatmul.mubr.bf16.gmra.mrb[0].mxu0 %v2396
        %v3983 = vpop.f32.mrb[0].mxu0
        %v3984 = vadd.f32 %v2517, %v3983
        %v3985 = vpop.f32.mrb[0].mxu0
        %v3986 = vadd.f32 %v2521, %v3985
        %v3987 = vpop.f32.mrb[0].mxu0
        %v3988 = vadd.f32 %v2517, %v3987
        %v3989 = vpop.f32.mrb[0].mxu0
        %v3990 = vadd.f32 %v2521, %v3989
        %3991 = vmatprep.mubr.bf16.mxu0 0
        %3992 = vmatmul.mubr.bf16.gmra.mrb[0].mxu0 %v2397
        %v3993 = vpop.f32.mrb[0].mxu0
        %v3994 = vadd.f32 %v2517, %v3993
        %v3995 = vpop.f32.mrb[0].mxu0
        %v3996 = vadd.f32 %v2521, %v3995
        %v3997 = vpop.f32.mrb[0].mxu0
        %v3998 = vadd.f32 %v2517, %v3997
        %v3999 = vpop.f32.mrb[0].mxu0
        %v4000 = vadd.f32 %v2521, %v3999
        %4001 = vmatprep.mubr.bf16.mxu0 0
        %4002 = vmatmul.mubr.bf16.gmra.mrb[0].mxu0 %v2398
        %v4003 = vpop.f32.mrb[0].mxu0
        %v4004 = vadd.f32 %v2517, %v4003
        %v4005 = vpop.f32.mrb[0].mxu0
        %v4006 = vadd.f32 %v2521, %v4005
        %v4007 = vpop.f32.mrb[0].mxu0
        %v4008 = vadd.f32 %v2517, %v4007
        %v4009 = vpop.f32.mrb[0].mxu0
        %v4010 = vadd.f32 %v2521, %v4009
        %4011 = vmatprep.mubr.bf16.mxu0 0
        %4012 = vmatmul.mubr.bf16.gmra.mrb[0].mxu0 %v2399
        %v4013 = vpop.f32.mrb[0].mxu0
        %v4014 = vadd.f32 %v2517, %v4013
        %v4015 = vpop.f32.mrb[0].mxu0
        %v4016 = vadd.f32 %v2521, %v4015
        %v4017 = vpop.f32.mrb[0].mxu0
        %v4018 = vadd.f32 %v2517, %v4017
        %v4019 = vpop.f32.mrb[0].mxu0
        %v4020 = vadd.f32 %v2521, %v4019
        %4021 = vmatprep.mubr.bf16.mxu0 0
        %4022 = vmatmul.mubr.bf16.gmra.mrb[0].mxu0 %v2400
        %v4023 = vpop.f32.mrb[0].mxu0
        %v4024 = vadd.f32 %v2517, %v4023
        %v4025 = vpop.f32.mrb[0].mxu0
        %v4026 = vadd.f32 %v2521, %v4025
        %v4027 = vpop.f32.mrb[0].mxu0
        %v4028 = vadd.f32 %v2517, %v4027
        %v4029 = vpop.f32.mrb[0].mxu0
        %v4030 = vadd.f32 %v2521, %v4029
        %4031 = vmatprep.mubr.bf16.mxu0 0
        %4032 = vmatmul.mubr.bf16.gmra.mrb[0].mxu0 %v2401
        %v4033 = vpop.f32.mrb[0].mxu0
        %v4034 = vadd.f32 %v2517, %v4033
        %v4035 = vpop.f32.mrb[0].mxu0
        %v4036 = vadd.f32 %v2521, %v4035
        %v4037 = vpop.f32.mrb[0].mxu0
        %v4038 = vadd.f32 %v2517, %v4037
        %v4039 = vpop.f32.mrb[0].mxu0
        %v4040 = vadd.f32 %v2521, %v4039
        %4041 = vmatprep.mubr.bf16.mxu0 0
        %4042 = vmatmul.mubr.bf16.gmra.mrb[0].mxu0 %v2402
        %v4043 = vpop.f32.mrb[0].mxu0
        %v4044 = vadd.f32 %v2517, %v4043
        %v4045 = vpop.f32.mrb[0].mxu0
        %v4046 = vadd.f32 %v2521, %v4045
        %v4047 = vpop.f32.mrb[0].mxu0
        %v4048 = vadd.f32 %v2517, %v4047
        %v4049 = vpop.f32.mrb[0].mxu0
        %v4050 = vadd.f32 %v2521, %v4049
        %4051 = vmatprep.mubr.bf16.mxu0 0
        %4052 = vmatmul.mubr.bf16.gmra.mrb[0].mxu0 %v2403
        %v4053 = vpop.f32.mrb[0].mxu0
        %v4054 = vadd.f32 %v2517, %v4053
        %v4055 = vpop.f32.mrb[0].mxu0
        %v4056 = vadd.f32 %v2521, %v4055
        %v4057 = vpop.f32.mrb[0].mxu0
        %v4058 = vadd.f32 %v2517, %v4057
        %v4059 = vpop.f32.mrb[0].mxu0
        %v4060 = vadd.f32 %v2521, %v4059
        %4061 = vmatprep.mubr.bf16.mxu0 0
        %4062 = vmatmul.mubr.bf16.gmra.mrb[0].mxu0 %v2404
        %v4063 = vpop.f32.mrb[0].mxu0
        %v4064 = vadd.f32 %v2517, %v4063
        %v4065 = vpop.f32.mrb[0].mxu0
        %v4066 = vadd.f32 %v2521, %v4065
        %v4067 = vpop.f32.mrb[0].mxu0
        %v4068 = vadd.f32 %v2517, %v4067
        %v4069 = vpop.f32.mrb[0].mxu0
        %v4070 = vadd.f32 %v2521, %v4069
        %4071 = vmatprep.mubr.bf16.mxu0 0
        %4072 = vmatmul.mubr.bf16.gmra.mrb[0].mxu0 %v2405
        %v4073 = vpop.f32.mrb[0].mxu0
        %v4074 = vadd.f32 %v2517, %v4073
        %v4075 = vpop.f32.mrb[0].mxu0
        %v4076 = vadd.f32 %v2521, %v4075
        %v4077 = vpop.f32.mrb[0].mxu0
        %v4078 = vadd.f32 %v2517, %v4077
        %v4079 = vpop.f32.mrb[0].mxu0
        %v4080 = vadd.f32 %v2521, %v4079
        %4081 = vmatprep.mubr.bf16.mxu0 0
        %4082 = vmatmul.mubr.bf16.gmra.mrb[0].mxu0 %v2406
        %v4083 = vpop.f32.mrb[0].mxu0
        %v4084 = vadd.f32 %v2517, %v4083
        %v4085 = vpop.f32.mrb[0].mxu0
        %v4086 = vadd.f32 %v2521, %v4085
        %v4087 = vpop.f32.mrb[0].mxu0
        %v4088 = vadd.f32 %v2517, %v4087
        %v4089 = vpop.f32.mrb[0].mxu0
        %v4090 = vadd.f32 %v2521, %v4089
        %4091 = vmatprep.mubr.bf16.mxu0 0
        %4092 = vmatmul.mubr.bf16.gmra.mrb[0].mxu0 %v2407
        %v4093 = vpop.f32.mrb[0].mxu0
        %v4094 = vadd.f32 %v2517, %v4093
        %v4095 = vpop.f32.mrb[0].mxu0
        %v4096 = vadd.f32 %v2521, %v4095
        %v4097 = vpop.f32.mrb[0].mxu0
        %v4098 = vadd.f32 %v2517, %v4097
        %v4099 = vpop.f32.mrb[0].mxu0
        %v4100 = vadd.f32 %v2521, %v4099
        %4101 = vmatprep.mubr.bf16.mxu0 0
        %4102 = vmatmul.mubr.bf16.gmra.mrb[0].mxu0 %v2408
        %v4103 = vpop.f32.mrb[0].mxu0
        %v4104 = vadd.f32 %v2517, %v4103
        %v4105 = vpop.f32.mrb[0].mxu0
        %v4106 = vadd.f32 %v2521, %v4105
        %v4107 = vpop.f32.mrb[0].mxu0
        %v4108 = vadd.f32 %v2517, %v4107
        %v4109 = vpop.f32.mrb[0].mxu0
        %v4110 = vadd.f32 %v2521, %v4109
        %4111 = vmatprep.mubr.bf16.mxu0 0
        %4112 = vmatmul.mubr.bf16.gmra.mrb[0].mxu0 %v2409
        %v4113 = vpop.f32.mrb[0].mxu0
        %v4114 = vadd.f32 %v2517, %v4113
        %v4115 = vpop.f32.mrb[0].mxu0
        %v4116 = vadd.f32 %v2521, %v4115
        %v4117 = vpop.f32.mrb[0].mxu0
        %v4118 = vadd.f32 %v2517, %v4117
        %v4119 = vpop.f32.mrb[0].mxu0
        %v4120 = vadd.f32 %v2521, %v4119
        %4121 = vmatprep.mubr.bf16.mxu0 0
        %4122 = vmatmul.mubr.bf16.gmra.mrb[0].mxu0 %v2410
        %v4123 = vpop.f32.mrb[0].mxu0
        %v4124 = vadd.f32 %v2517, %v4123
        %v4125 = vpop.f32.mrb[0].mxu0
        %v4126 = vadd.f32 %v2521, %v4125
        %v4127 = vpop.f32.mrb[0].mxu0
        %v4128 = vadd.f32 %v2517, %v4127
        %v4129 = vpop.f32.mrb[0].mxu0
        %v4130 = vadd.f32 %v2521, %v4129
        %4131 = vmatprep.mubr.bf16.mxu0 0
        %4132 = vmatmul.mubr.bf16.gmra.mrb[0].mxu0 %v2411
        %v4133 = vpop.f32.mrb[0].mxu0
        %v4134 = vadd.f32 %v2517, %v4133
        %v4135 = vpop.f32.mrb[0].mxu0
        %v4136 = vadd.f32 %v2521, %v4135
        %v4137 = vpop.f32.mrb[0].mxu0
        %v4138 = vadd.f32 %v2517, %v4137
        %v4139 = vpop.f32.mrb[0].mxu0
        %v4140 = vadd.f32 %v2521, %v4139
        %4141 = vmatprep.mubr.bf16.mxu0 0
        %4142 = vmatmul.mubr.bf16.gmra.mrb[0].mxu0 %v2412
        %v4143 = vpop.f32.mrb[0].mxu0
        %v4144 = vadd.f32 %v2517, %v4143
        %v4145 = vpop.f32.mrb[0].mxu0
        %v4146 = vadd.f32 %v2521, %v4145
        %v4147 = vpop.f32.mrb[0].mxu0
        %v4148 = vadd.f32 %v2517, %v4147
        %v4149 = vpop.f32.mrb[0].mxu0
        %v4150 = vadd.f32 %v2521, %v4149
        %4151 = vmatprep.mubr.bf16.mxu0 0
        %4152 = vmatmul.mubr.bf16.gmra.mrb[0].mxu0 %v2413
        %v4153 = vpop.f32.mrb[0].mxu0
        %v4154 = vadd.f32 %v2517, %v4153
        %v4155 = vpop.f32.mrb[0].mxu0
        %v4156 = vadd.f32 %v2521, %v4155
        %v4157 = vpop.f32.mrb[0].mxu0
        %v4158 = vadd.f32 %v2517, %v4157
        %v4159 = vpop.f32.mrb[0].mxu0
        %v4160 = vadd.f32 %v2521, %v4159
        %4161 = vmatprep.mubr.bf16.mxu0 0
        %4162 = vmatmul.mubr.bf16.gmra.mrb[0].mxu0 %v2414
        %v4163 = vpop.f32.mrb[0].mxu0
        %v4164 = vadd.f32 %v2517, %v4163
        %v4165 = vpop.f32.mrb[0].mxu0
        %v4166 = vadd.f32 %v2521, %v4165
        %v4167 = vpop.f32.mrb[0].mxu0
        %v4168 = vadd.f32 %v2517, %v4167
        %v4169 = vpop.f32.mrb[0].mxu0
        %v4170 = vadd.f32 %v2521, %v4169
        %4171 = vmatprep.mubr.bf16.mxu0 0
        %4172 = vmatmul.mubr.bf16.gmra.mrb[0].mxu0 %v2415
        %v4173 = vpop.f32.mrb[0].mxu0
        %v4174 = vadd.f32 %v2517, %v4173
        %v4175 = vpop.f32.mrb[0].mxu0
        %v4176 = vadd.f32 %v2521, %v4175
        %v4177 = vpop.f32.mrb[0].mxu0
        %v4178 = vadd.f32 %v2517, %v4177
        %v4179 = vpop.f32.mrb[0].mxu0
        %v4180 = vadd.f32 %v2521, %v4179
        %4181 = vmatprep.mubr.bf16.mxu0 0
        %4182 = vmatmul.mubr.bf16.gmra.mrb[0].mxu0 %v2416
        %v4183 = vpop.f32.mrb[0].mxu0
        %v4184 = vadd.f32 %v2517, %v4183
        %v4185 = vpop.f32.mrb[0].mxu0
        %v4186 = vadd.f32 %v2521, %v4185
        %v4187 = vpop.f32.mrb[0].mxu0
        %v4188 = vadd.f32 %v2517, %v4187
        %v4189 = vpop.f32.mrb[0].mxu0
        %v4190 = vadd.f32 %v2521, %v4189
        %4191 = vmatprep.mubr.bf16.mxu0 0
        %4192 = vmatmul.mubr.bf16.gmra.mrb[0].mxu0 %v2417
        %v4193 = vpop.f32.mrb[0].mxu0
        %v4194 = vadd.f32 %v2517, %v4193
        %v4195 = vpop.f32.mrb[0].mxu0
        %v4196 = vadd.f32 %v2521, %v4195
        %v4197 = vpop.f32.mrb[0].mxu0
        %v4198 = vadd.f32 %v2517, %v4197
        %v4199 = vpop.f32.mrb[0].mxu0
        %v4200 = vadd.f32 %v2521, %v4199
        %4201 = vmatprep.mubr.bf16.mxu0 0
        %4202 = vmatmul.mubr.bf16.gmra.mrb[0].mxu0 %v2418
        %v4203 = vpop.f32.mrb[0].mxu0
        %v4204 = vadd.f32 %v2517, %v4203
        %v4205 = vpop.f32.mrb[0].mxu0
        %v4206 = vadd.f32 %v2521, %v4205
        %v4207 = vpop.f32.mrb[0].mxu0
        %v4208 = vadd.f32 %v2517, %v4207
        %v4209 = vpop.f32.mrb[0].mxu0
        %v4210 = vadd.f32 %v2521, %v4209
        %4211 = vmatprep.mubr.bf16.mxu0 0
        %4212 = vmatmul.mubr.bf16.gmra.mrb[0].mxu0 %v2419
        %v4213 = vpop.f32.mrb[0].mxu0
        %v4214 = vadd.f32 %v2517, %v4213
        %v4215 = vpop.f32.mrb[0].mxu0
        %v4216 = vadd.f32 %v2521, %v4215
        %v4217 = vpop.f32.mrb[0].mxu0
        %v4218 = vadd.f32 %v2517, %v4217
        %v4219 = vpop.f32.mrb[0].mxu0
        %v4220 = vadd.f32 %v2521, %v4219
        %4221 = vmatprep.mubr.bf16.mxu0 0
        %4222 = vmatmul.mubr.bf16.gmra.mrb[0].mxu0 %v2420
        %v4223 = vpop.f32.mrb[0].mxu0
        %v4224 = vadd.f32 %v2517, %v4223
        %v4225 = vpop.f32.mrb[0].mxu0
        %v4226 = vadd.f32 %v2521, %v4225
        %v4227 = vpop.f32.mrb[0].mxu0
        %v4228 = vadd.f32 %v2517, %v4227
        %v4229 = vpop.f32.mrb[0].mxu0
        %v4230 = vadd.f32 %v2521, %v4229
        %4231 = vmatprep.mubr.bf16.mxu0 0
        %4232 = vmatmul.mubr.bf16.gmra.mrb[0].mxu0 %v2421
        %v4233 = vpop.f32.mrb[0].mxu0
        %v4234 = vadd.f32 %v2517, %v4233
        %v4235 = vpop.f32.mrb[0].mxu0
        %v4236 = vadd.f32 %v2521, %v4235
        %v4237 = vpop.f32.mrb[0].mxu0
        %v4238 = vadd.f32 %v2517, %v4237
        %v4239 = vpop.f32.mrb[0].mxu0
        %v4240 = vadd.f32 %v2521, %v4239
        %4241 = vmatprep.mubr.bf16.mxu0 0
        %4242 = vmatmul.mubr.bf16.gmra.mrb[0].mxu0 %v2422
        %v4243 = vpop.f32.mrb[0].mxu0
        %v4244 = vadd.f32 %v2517, %v4243
        %v4245 = vpop.f32.mrb[0].mxu0
        %v4246 = vadd.f32 %v2521, %v4245
        %v4247 = vpop.f32.mrb[0].mxu0
        %v4248 = vadd.f32 %v2517, %v4247
        %v4249 = vpop.f32.mrb[0].mxu0
        %v4250 = vadd.f32 %v2521, %v4249
        %4251 = vmatprep.mubr.bf16.mxu0 0
        %4252 = vmatmul.mubr.bf16.gmra.mrb[0].mxu0 %v2423
        %v4253 = vpop.f32.mrb[0].mxu0
        %v4254 = vadd.f32 %v2517, %v4253
        %v4255 = vpop.f32.mrb[0].mxu0
        %v4256 = vadd.f32 %v2521, %v4255
        %v4257 = vpop.f32.mrb[0].mxu0
        %v4258 = vadd.f32 %v2517, %v4257
        %v4259 = vpop.f32.mrb[0].mxu0
        %v4260 = vadd.f32 %v2521, %v4259
        %4261 = vdwg.mxu0
        %v4262 = vmax.f32 %v2885, %v2889
        %v4263 = vmax.f32 %v4262, %v2895
        %v4264 = vmax.f32 %v4263, %v2899
        %v4265 = vmax.f32 %v4264, %v2905
        %v4266 = vmax.f32 %v4265, %v2909
        %v4267 = vmax.f32 %v4266, %v2915
        %v4268 = vmax.f32 %v4267, %v2919
        %v4269 = vmax.f32 %v4268, %v2925
        %v4270 = vmax.f32 %v4269, %v2929
        %v4271 = vmax.f32 %v4270, %v2935
        %v4272 = vmax.f32 %v4271, %v2939
        %v4273 = vmax.f32 %v4272, %v2945
        %v4274 = vmax.f32 %v4273, %v2949
        %v4275 = vmax.f32 %v4274, %v2955
        %v4276 = vmax.f32 %v4275, %v2959
        %v4277 = vmax.f32 %v4276, %v2965
        %v4278 = vmax.f32 %v4277, %v2969
        %v4279 = vmax.f32 %v4278, %v2975
        %v4280 = vmax.f32 %v4279, %v2979
        %v4281 = vmax.f32 %v4280, %v2985
        %v4282 = vmax.f32 %v4281, %v2989
        %v4283 = vmax.f32 %v4282, %v2995
        %v4284 = vmax.f32 %v4283, %v2999
        %v4285 = vmax.f32 %v4284, %v3005
        %v4286 = vmax.f32 %v4285, %v3009
        %v4287 = vmax.f32 %v4286, %v3015
        %v4288 = vmax.f32 %v4287, %v3019
        %v4289 = vmax.f32 %v4288, %v3025
        %v4290 = vmax.f32 %v4289, %v3029
        %v4291 = vmax.f32 %v4290, %v3035
        %v4292 = vmax.f32 %v4291, %v3039
        %v4293 = vmax.f32 %v4292, %v3045
        %v4294 = vmax.f32 %v4293, %v3049
        %v4295 = vmax.f32 %v4294, %v3055
        %v4296 = vmax.f32 %v4295, %v3059
        %v4297 = vmax.f32 %v4296, %v3065
        %v4298 = vmax.f32 %v4297, %v3069
        %v4299 = vmax.f32 %v4298, %v3075
        %v4300 = vmax.f32 %v4299, %v3079
        %v4301 = vmax.f32 %v4300, %v3085
        %v4302 = vmax.f32 %v4301, %v3089
        %v4303 = vmax.f32 %v4302, %v3095
        %v4304 = vmax.f32 %v4303, %v3099
        %v4305 = vmax.f32 %v4304, %v3105
        %v4306 = vmax.f32 %v4305, %v3109
        %v4307 = vmax.f32 %v4306, %v3115
        %v4308 = vmax.f32 %v4307, %v3119
        %v4309 = vmax.f32 %v4308, %v3125
        %v4310 = vmax.f32 %v4309, %v3129
        %v4311 = vmax.f32 %v4310, %v3135
        %v4312 = vmax.f32 %v4311, %v3139
        %v4313 = vmax.f32 %v4312, %v3145
        %v4314 = vmax.f32 %v4313, %v3149
        %v4315 = vmax.f32 %v4314, %v3155
        %v4316 = vmax.f32 %v4315, %v3159
        %v4317 = vmax.f32 %v4316, %v3165
        %v4318 = vmax.f32 %v4317, %v3169
        %v4319 = vmax.f32 %v4318, %v3175
        %v4320 = vmax.f32 %v4319, %v3179
        %v4321 = vmax.f32 %v4320, %v3185
        %v4322 = vmax.f32 %v4321, %v3189
        %v4323 = vmax.f32 %v4322, %v3195
        %v4324 = vmax.f32 %v4323, %v3199
        %v4325 = vrot.slane %v4324, 4
        %v4326 = vmax.f32 %v4324, %v4325
        %v4327 = vrot.slane %v4326, 2
        %v4328 = vmax.f32 %v4326, %v4327
        %v4329 = vrot.slane %v4328, 1
        %v4330 = vmax.f32 %v4328, %v4329
        %v4331 = vmax.f32 %v2887, %v2891
        %v4332 = vmax.f32 %v4331, %v2897
        %v4333 = vmax.f32 %v4332, %v2901
        %v4334 = vmax.f32 %v4333, %v2907
        %v4335 = vmax.f32 %v4334, %v2911
        %v4336 = vmax.f32 %v4335, %v2917
        %v4337 = vmax.f32 %v4336, %v2921
        %v4338 = vmax.f32 %v4337, %v2927
        %v4339 = vmax.f32 %v4338, %v2931
        %v4340 = vmax.f32 %v4339, %v2937
        %v4341 = vmax.f32 %v4340, %v2941
        %v4342 = vmax.f32 %v4341, %v2947
        %v4343 = vmax.f32 %v4342, %v2951
        %v4344 = vmax.f32 %v4343, %v2957
        %v4345 = vmax.f32 %v4344, %v2961
        %v4346 = vmax.f32 %v4345, %v2967
        %v4347 = vmax.f32 %v4346, %v2971
        %v4348 = vmax.f32 %v4347, %v2977
        %v4349 = vmax.f32 %v4348, %v2981
        %v4350 = vmax.f32 %v4349, %v2987
        %v4351 = vmax.f32 %v4350, %v2991
        %v4352 = vmax.f32 %v4351, %v2997
        %v4353 = vmax.f32 %v4352, %v3001
        %v4354 = vmax.f32 %v4353, %v3007
        %v4355 = vmax.f32 %v4354, %v3011
        %v4356 = vmax.f32 %v4355, %v3017
        %v4357 = vmax.f32 %v4356, %v3021
        %v4358 = vmax.f32 %v4357, %v3027
        %v4359 = vmax.f32 %v4358, %v3031
        %v4360 = vmax.f32 %v4359, %v3037
        %v4361 = vmax.f32 %v4360, %v3041
        %v4362 = vmax.f32 %v4361, %v3047
        %v4363 = vmax.f32 %v4362, %v3051
        %v4364 = vmax.f32 %v4363, %v3057
        %v4365 = vmax.f32 %v4364, %v3061
        %v4366 = vmax.f32 %v4365, %v3067
        %v4367 = vmax.f32 %v4366, %v3071
        %v4368 = vmax.f32 %v4367, %v3077
        %v4369 = vmax.f32 %v4368, %v3081
        %v4370 = vmax.f32 %v4369, %v3087
        %v4371 = vmax.f32 %v4370, %v3091
        %v4372 = vmax.f32 %v4371, %v3097
        %v4373 = vmax.f32 %v4372, %v3101
        %v4374 = vmax.f32 %v4373, %v3107
        %v4375 = vmax.f32 %v4374, %v3111
        %v4376 = vmax.f32 %v4375, %v3117
        %v4377 = vmax.f32 %v4376, %v3121
        %v4378 = vmax.f32 %v4377, %v3127
        %v4379 = vmax.f32 %v4378, %v3131
        %v4380 = vmax.f32 %v4379, %v3137
        %v4381 = vmax.f32 %v4380, %v3141
        %v4382 = vmax.f32 %v4381, %v3147
        %v4383 = vmax.f32 %v4382, %v3151
        %v4384 = vmax.f32 %v4383, %v3157
        %v4385 = vmax.f32 %v4384, %v3161
        %v4386 = vmax.f32 %v4385, %v3167
        %v4387 = vmax.f32 %v4386, %v3171
        %v4388 = vmax.f32 %v4387, %v3177
        %v4389 = vmax.f32 %v4388, %v3181
        %v4390 = vmax.f32 %v4389, %v3187
        %v4391 = vmax.f32 %v4390, %v3191
        %v4392 = vmax.f32 %v4391, %v3197
        %v4393 = vmax.f32 %v4392, %v3201
        %v4394 = vrot.slane %v4393, 4
        %v4395 = vmax.f32 %v4393, %v4394
        %v4396 = vrot.slane %v4395, 2
        %v4397 = vmax.f32 %v4395, %v4396
        %v4398 = vrot.slane %v4397, 1
        %v4399 = vmax.f32 %v4397, %v4398
        %v4400 = vmax.f32 %v3238, %v3242
        %v4401 = vmax.f32 %v4400, %v3248
        %v4402 = vmax.f32 %v4401, %v3252
        %v4403 = vmax.f32 %v4402, %v3258
        %v4404 = vmax.f32 %v4403, %v3262
        %v4405 = vmax.f32 %v4404, %v3268
        %v4406 = vmax.f32 %v4405, %v3272
        %v4407 = vmax.f32 %v4406, %v3278
        %v4408 = vmax.f32 %v4407, %v3282
        %v4409 = vmax.f32 %v4408, %v3288
        %v4410 = vmax.f32 %v4409, %v3292
        %v4411 = vmax.f32 %v4410, %v3298
        %v4412 = vmax.f32 %v4411, %v3302
        %v4413 = vmax.f32 %v4412, %v3308
        %v4414 = vmax.f32 %v4413, %v3312
        %v4415 = vmax.f32 %v4414, %v3318
        %v4416 = vmax.f32 %v4415, %v3322
        %v4417 = vmax.f32 %v4416, %v3328
        %v4418 = vmax.f32 %v4417, %v3332
        %v4419 = vmax.f32 %v4418, %v3338
        %v4420 = vmax.f32 %v4419, %v3342
        %v4421 = vmax.f32 %v4420, %v3348
        %v4422 = vmax.f32 %v4421, %v3352
        %v4423 = vmax.f32 %v4422, %v3358
        %v4424 = vmax.f32 %v4423, %v3362
        %v4425 = vmax.f32 %v4424, %v3368
        %v4426 = vmax.f32 %v4425, %v3372
        %v4427 = vmax.f32 %v4426, %v3378
        %v4428 = vmax.f32 %v4427, %v3382
        %v4429 = vmax.f32 %v4428, %v3388
        %v4430 = vmax.f32 %v4429, %v3392
        %v4431 = vmax.f32 %v4430, %v3398
        %v4432 = vmax.f32 %v4431, %v3402
        %v4433 = vmax.f32 %v4432, %v3408
        %v4434 = vmax.f32 %v4433, %v3412
        %v4435 = vmax.f32 %v4434, %v3418
        %v4436 = vmax.f32 %v4435, %v3422
        %v4437 = vmax.f32 %v4436, %v3428
        %v4438 = vmax.f32 %v4437, %v3432
        %v4439 = vmax.f32 %v4438, %v3438
        %v4440 = vmax.f32 %v4439, %v3442
        %v4441 = vmax.f32 %v4440, %v3448
        %v4442 = vmax.f32 %v4441, %v3452
        %v4443 = vmax.f32 %v4442, %v3458
        %v4444 = vmax.f32 %v4443, %v3462
        %v4445 = vmax.f32 %v4444, %v3468
        %v4446 = vmax.f32 %v4445, %v3472
        %v4447 = vmax.f32 %v4446, %v3478
        %v4448 = vmax.f32 %v4447, %v3482
        %v4449 = vmax.f32 %v4448, %v3488
        %v4450 = vmax.f32 %v4449, %v3492
        %v4451 = vmax.f32 %v4450, %v3498
        %v4452 = vmax.f32 %v4451, %v3502
        %v4453 = vmax.f32 %v4452, %v3508
        %v4454 = vmax.f32 %v4453, %v3512
        %v4455 = vmax.f32 %v4454, %v3518
        %v4456 = vmax.f32 %v4455, %v3522
        %v4457 = vmax.f32 %v4456, %v3528
        %v4458 = vmax.f32 %v4457, %v3532
        %v4459 = vmax.f32 %v4458, %v3538
        %v4460 = vmax.f32 %v4459, %v3542
        %v4461 = vmax.f32 %v4460, %v3548
        %v4462 = vmax.f32 %v4461, %v3552
        %v4463 = vrot.slane %v4462, 4
        %v4464 = vmax.f32 %v4462, %v4463
        %v4465 = vrot.slane %v4464, 2
        %v4466 = vmax.f32 %v4464, %v4465
        %v4467 = vrot.slane %v4466, 1
        %v4468 = vmax.f32 %v4466, %v4467
        %v4469 = vmax.f32 %v3240, %v3244
        %v4470 = vmax.f32 %v4469, %v3250
        %v4471 = vmax.f32 %v4470, %v3254
        %v4472 = vmax.f32 %v4471, %v3260
        %v4473 = vmax.f32 %v4472, %v3264
        %v4474 = vmax.f32 %v4473, %v3270
        %v4475 = vmax.f32 %v4474, %v3274
        %v4476 = vmax.f32 %v4475, %v3280
        %v4477 = vmax.f32 %v4476, %v3284
        %v4478 = vmax.f32 %v4477, %v3290
        %v4479 = vmax.f32 %v4478, %v3294
        %v4480 = vmax.f32 %v4479, %v3300
        %v4481 = vmax.f32 %v4480, %v3304
        %v4482 = vmax.f32 %v4481, %v3310
        %v4483 = vmax.f32 %v4482, %v3314
        %v4484 = vmax.f32 %v4483, %v3320
        %v4485 = vmax.f32 %v4484, %v3324
        %v4486 = vmax.f32 %v4485, %v3330
        %v4487 = vmax.f32 %v4486, %v3334
        %v4488 = vmax.f32 %v4487, %v3340
        %v4489 = vmax.f32 %v4488, %v3344
        %v4490 = vmax.f32 %v4489, %v3350
        %v4491 = vmax.f32 %v4490, %v3354
        %v4492 = vmax.f32 %v4491, %v3360
        %v4493 = vmax.f32 %v4492, %v3364
        %v4494 = vmax.f32 %v4493, %v3370
        %v4495 = vmax.f32 %v4494, %v3374
        %v4496 = vmax.f32 %v4495, %v3380
        %v4497 = vmax.f32 %v4496, %v3384
        %v4498 = vmax.f32 %v4497, %v3390
        %v4499 = vmax.f32 %v4498, %v3394
        %v4500 = vmax.f32 %v4499, %v3400
        %v4501 = vmax.f32 %v4500, %v3404
        %v4502 = vmax.f32 %v4501, %v3410
        %v4503 = vmax.f32 %v4502, %v3414
        %v4504 = vmax.f32 %v4503, %v3420
        %v4505 = vmax.f32 %v4504, %v3424
        %v4506 = vmax.f32 %v4505, %v3430
        %v4507 = vmax.f32 %v4506, %v3434
        %v4508 = vmax.f32 %v4507, %v3440
        %v4509 = vmax.f32 %v4508, %v3444
        %v4510 = vmax.f32 %v4509, %v3450
        %v4511 = vmax.f32 %v4510, %v3454
        %v4512 = vmax.f32 %v4511, %v3460
        %v4513 = vmax.f32 %v4512, %v3464
        %v4514 = vmax.f32 %v4513, %v3470
        %v4515 = vmax.f32 %v4514, %v3474
        %v4516 = vmax.f32 %v4515, %v3480
        %v4517 = vmax.f32 %v4516, %v3484
        %v4518 = vmax.f32 %v4517, %v3490
        %v4519 = vmax.f32 %v4518, %v3494
        %v4520 = vmax.f32 %v4519, %v3500
        %v4521 = vmax.f32 %v4520, %v3504
        %v4522 = vmax.f32 %v4521, %v3510
        %v4523 = vmax.f32 %v4522, %v3514
        %v4524 = vmax.f32 %v4523, %v3520
        %v4525 = vmax.f32 %v4524, %v3524
        %v4526 = vmax.f32 %v4525, %v3530
        %v4527 = vmax.f32 %v4526, %v3534
        %v4528 = vmax.f32 %v4527, %v3540
        %v4529 = vmax.f32 %v4528, %v3544
        %v4530 = vmax.f32 %v4529, %v3550
        %v4531 = vmax.f32 %v4530, %v3554
        %v4532 = vrot.slane %v4531, 4
        %v4533 = vmax.f32 %v4531, %v4532
        %v4534 = vrot.slane %v4533, 2
        %v4535 = vmax.f32 %v4533, %v4534
        %v4536 = vrot.slane %v4535, 1
        %v4537 = vmax.f32 %v4535, %v4536
        %v4538 = vmax.f32 %v3591, %v3595
        %v4539 = vmax.f32 %v4538, %v3601
        %v4540 = vmax.f32 %v4539, %v3605
        %v4541 = vmax.f32 %v4540, %v3611
        %v4542 = vmax.f32 %v4541, %v3615
        %v4543 = vmax.f32 %v4542, %v3621
        %v4544 = vmax.f32 %v4543, %v3625
        %v4545 = vmax.f32 %v4544, %v3631
        %v4546 = vmax.f32 %v4545, %v3635
        %v4547 = vmax.f32 %v4546, %v3641
        %v4548 = vmax.f32 %v4547, %v3645
        %v4549 = vmax.f32 %v4548, %v3651
        %v4550 = vmax.f32 %v4549, %v3655
        %v4551 = vmax.f32 %v4550, %v3661
        %v4552 = vmax.f32 %v4551, %v3665
        %v4553 = vmax.f32 %v4552, %v3671
        %v4554 = vmax.f32 %v4553, %v3675
        %v4555 = vmax.f32 %v4554, %v3681
        %v4556 = vmax.f32 %v4555, %v3685
        %v4557 = vmax.f32 %v4556, %v3691
        %v4558 = vmax.f32 %v4557, %v3695
        %v4559 = vmax.f32 %v4558, %v3701
        %v4560 = vmax.f32 %v4559, %v3705
        %v4561 = vmax.f32 %v4560, %v3711
        %v4562 = vmax.f32 %v4561, %v3715
        %v4563 = vmax.f32 %v4562, %v3721
        %v4564 = vmax.f32 %v4563, %v3725
        %v4565 = vmax.f32 %v4564, %v3731
        %v4566 = vmax.f32 %v4565, %v3735
        %v4567 = vmax.f32 %v4566, %v3741
        %v4568 = vmax.f32 %v4567, %v3745
        %v4569 = vmax.f32 %v4568, %v3751
        %v4570 = vmax.f32 %v4569, %v3755
        %v4571 = vmax.f32 %v4570, %v3761
        %v4572 = vmax.f32 %v4571, %v3765
        %v4573 = vmax.f32 %v4572, %v3771
        %v4574 = vmax.f32 %v4573, %v3775
        %v4575 = vmax.f32 %v4574, %v3781
        %v4576 = vmax.f32 %v4575, %v3785
        %v4577 = vmax.f32 %v4576, %v3791
        %v4578 = vmax.f32 %v4577, %v3795
        %v4579 = vmax.f32 %v4578, %v3801
        %v4580 = vmax.f32 %v4579, %v3805
        %v4581 = vmax.f32 %v4580, %v3811
        %v4582 = vmax.f32 %v4581, %v3815
        %v4583 = vmax.f32 %v4582, %v3821
        %v4584 = vmax.f32 %v4583, %v3825
        %v4585 = vmax.f32 %v4584, %v3831
        %v4586 = vmax.f32 %v4585, %v3835
        %v4587 = vmax.f32 %v4586, %v3841
        %v4588 = vmax.f32 %v4587, %v3845
        %v4589 = vmax.f32 %v4588, %v3851
        %v4590 = vmax.f32 %v4589, %v3855
        %v4591 = vmax.f32 %v4590, %v3861
        %v4592 = vmax.f32 %v4591, %v3865
        %v4593 = vmax.f32 %v4592, %v3871
        %v4594 = vmax.f32 %v4593, %v3875
        %v4595 = vmax.f32 %v4594, %v3881
        %v4596 = vmax.f32 %v4595, %v3885
        %v4597 = vmax.f32 %v4596, %v3891
        %v4598 = vmax.f32 %v4597, %v3895
        %v4599 = vmax.f32 %v4598, %v3901
        %v4600 = vmax.f32 %v4599, %v3905
        %v4601 = vrot.slane %v4600, 4
        %v4602 = vmax.f32 %v4600, %v4601
        %v4603 = vrot.slane %v4602, 2
        %v4604 = vmax.f32 %v4602, %v4603
        %v4605 = vrot.slane %v4604, 1
        %v4606 = vmax.f32 %v4604, %v4605
        %v4607 = vmax.f32 %v3593, %v3597
        %v4608 = vmax.f32 %v4607, %v3603
        %v4609 = vmax.f32 %v4608, %v3607
        %v4610 = vmax.f32 %v4609, %v3613
        %v4611 = vmax.f32 %v4610, %v3617
        %v4612 = vmax.f32 %v4611, %v3623
        %v4613 = vmax.f32 %v4612, %v3627
        %v4614 = vmax.f32 %v4613, %v3633
        %v4615 = vmax.f32 %v4614, %v3637
        %v4616 = vmax.f32 %v4615, %v3643
        %v4617 = vmax.f32 %v4616, %v3647
        %v4618 = vmax.f32 %v4617, %v3653
        %v4619 = vmax.f32 %v4618, %v3657
        %v4620 = vmax.f32 %v4619, %v3663
        %v4621 = vmax.f32 %v4620, %v3667
        %v4622 = vmax.f32 %v4621, %v3673
        %v4623 = vmax.f32 %v4622, %v3677
        %v4624 = vmax.f32 %v4623, %v3683
        %v4625 = vmax.f32 %v4624, %v3687
        %v4626 = vmax.f32 %v4625, %v3693
        %v4627 = vmax.f32 %v4626, %v3697
        %v4628 = vmax.f32 %v4627, %v3703
        %v4629 = vmax.f32 %v4628, %v3707
        %v4630 = vmax.f32 %v4629, %v3713
        %v4631 = vmax.f32 %v4630, %v3717
        %v4632 = vmax.f32 %v4631, %v3723
        %v4633 = vmax.f32 %v4632, %v3727
        %v4634 = vmax.f32 %v4633, %v3733
        %v4635 = vmax.f32 %v4634, %v3737
        %v4636 = vmax.f32 %v4635, %v3743
        %v4637 = vmax.f32 %v4636, %v3747
        %v4638 = vmax.f32 %v4637, %v3753
        %v4639 = vmax.f32 %v4638, %v3757
        %v4640 = vmax.f32 %v4639, %v3763
        %v4641 = vmax.f32 %v4640, %v3767
        %v4642 = vmax.f32 %v4641, %v3773
        %v4643 = vmax.f32 %v4642, %v3777
        %v4644 = vmax.f32 %v4643, %v3783
        %v4645 = vmax.f32 %v4644, %v3787
        %v4646 = vmax.f32 %v4645, %v3793
        %v4647 = vmax.f32 %v4646, %v3797
        %v4648 = vmax.f32 %v4647, %v3803
        %v4649 = vmax.f32 %v4648, %v3807
        %v4650 = vmax.f32 %v4649, %v3813
        %v4651 = vmax.f32 %v4650, %v3817
        %v4652 = vmax.f32 %v4651, %v3823
        %v4653 = vmax.f32 %v4652, %v3827
        %v4654 = vmax.f32 %v4653, %v3833
        %v4655 = vmax.f32 %v4654, %v3837
        %v4656 = vmax.f32 %v4655, %v3843
        %v4657 = vmax.f32 %v4656, %v3847
        %v4658 = vmax.f32 %v4657, %v3853
        %v4659 = vmax.f32 %v4658, %v3857
        %v4660 = vmax.f32 %v4659, %v3863
        %v4661 = vmax.f32 %v4660, %v3867
        %v4662 = vmax.f32 %v4661, %v3873
        %v4663 = vmax.f32 %v4662, %v3877
        %v4664 = vmax.f32 %v4663, %v3883
        %v4665 = vmax.f32 %v4664, %v3887
        %v4666 = vmax.f32 %v4665, %v3893
        %v4667 = vmax.f32 %v4666, %v3897
        %v4668 = vmax.f32 %v4667, %v3903
        %v4669 = vmax.f32 %v4668, %v3907
        %v4670 = vrot.slane %v4669, 4
        %v4671 = vmax.f32 %v4669, %v4670
        %v4672 = vrot.slane %v4671, 2
        %v4673 = vmax.f32 %v4671, %v4672
        %v4674 = vrot.slane %v4673, 1
        %v4675 = vmax.f32 %v4673, %v4674
        %v4676 = vmax.f32 %v3944, %v3948
        %v4677 = vmax.f32 %v4676, %v3954
        %v4678 = vmax.f32 %v4677, %v3958
        %v4679 = vmax.f32 %v4678, %v3964
        %v4680 = vmax.f32 %v4679, %v3968
        %v4681 = vmax.f32 %v4680, %v3974
        %v4682 = vmax.f32 %v4681, %v3978
        %v4683 = vmax.f32 %v4682, %v3984
        %v4684 = vmax.f32 %v4683, %v3988
        %v4685 = vmax.f32 %v4684, %v3994
        %v4686 = vmax.f32 %v4685, %v3998
        %v4687 = vmax.f32 %v4686, %v4004
        %v4688 = vmax.f32 %v4687, %v4008
        %v4689 = vmax.f32 %v4688, %v4014
        %v4690 = vmax.f32 %v4689, %v4018
        %v4691 = vmax.f32 %v4690, %v4024
        %v4692 = vmax.f32 %v4691, %v4028
        %v4693 = vmax.f32 %v4692, %v4034
        %v4694 = vmax.f32 %v4693, %v4038
        %v4695 = vmax.f32 %v4694, %v4044
        %v4696 = vmax.f32 %v4695, %v4048
        %v4697 = vmax.f32 %v4696, %v4054
        %v4698 = vmax.f32 %v4697, %v4058
        %v4699 = vmax.f32 %v4698, %v4064
        %v4700 = vmax.f32 %v4699, %v4068
        %v4701 = vmax.f32 %v4700, %v4074
        %v4702 = vmax.f32 %v4701, %v4078
        %v4703 = vmax.f32 %v4702, %v4084
        %v4704 = vmax.f32 %v4703, %v4088
        %v4705 = vmax.f32 %v4704, %v4094
        %v4706 = vmax.f32 %v4705, %v4098
        %v4707 = vmax.f32 %v4706, %v4104
        %v4708 = vmax.f32 %v4707, %v4108
        %v4709 = vmax.f32 %v4708, %v4114
        %v4710 = vmax.f32 %v4709, %v4118
        %v4711 = vmax.f32 %v4710, %v4124
        %v4712 = vmax.f32 %v4711, %v4128
        %v4713 = vmax.f32 %v4712, %v4134
        %v4714 = vmax.f32 %v4713, %v4138
        %v4715 = vmax.f32 %v4714, %v4144
        %v4716 = vmax.f32 %v4715, %v4148
        %v4717 = vmax.f32 %v4716, %v4154
        %v4718 = vmax.f32 %v4717, %v4158
        %v4719 = vmax.f32 %v4718, %v4164
        %v4720 = vmax.f32 %v4719, %v4168
        %v4721 = vmax.f32 %v4720, %v4174
        %v4722 = vmax.f32 %v4721, %v4178
        %v4723 = vmax.f32 %v4722, %v4184
        %v4724 = vmax.f32 %v4723, %v4188
        %v4725 = vmax.f32 %v4724, %v4194
        %v4726 = vmax.f32 %v4725, %v4198
        %v4727 = vmax.f32 %v4726, %v4204
        %v4728 = vmax.f32 %v4727, %v4208
        %v4729 = vmax.f32 %v4728, %v4214
        %v4730 = vmax.f32 %v4729, %v4218
        %v4731 = vmax.f32 %v4730, %v4224
        %v4732 = vmax.f32 %v4731, %v4228
        %v4733 = vmax.f32 %v4732, %v4234
        %v4734 = vmax.f32 %v4733, %v4238
        %v4735 = vmax.f32 %v4734, %v4244
        %v4736 = vmax.f32 %v4735, %v4248
        %v4737 = vmax.f32 %v4736, %v4254
        %v4738 = vmax.f32 %v4737, %v4258
        %v4739 = vrot.slane %v4738, 4
        %v4740 = vmax.f32 %v4738, %v4739
        %v4741 = vrot.slane %v4740, 2
        %v4742 = vmax.f32 %v4740, %v4741
        %v4743 = vrot.slane %v4742, 1
        %v4744 = vmax.f32 %v4742, %v4743
        %v4745 = vmax.f32 %v3946, %v3950
        %v4746 = vmax.f32 %v4745, %v3956
        %v4747 = vmax.f32 %v4746, %v3960
        %v4748 = vmax.f32 %v4747, %v3966
        %v4749 = vmax.f32 %v4748, %v3970
        %v4750 = vmax.f32 %v4749, %v3976
        %v4751 = vmax.f32 %v4750, %v3980
        %v4752 = vmax.f32 %v4751, %v3986
        %v4753 = vmax.f32 %v4752, %v3990
        %v4754 = vmax.f32 %v4753, %v3996
        %v4755 = vmax.f32 %v4754, %v4000
        %v4756 = vmax.f32 %v4755, %v4006
        %v4757 = vmax.f32 %v4756, %v4010
        %v4758 = vmax.f32 %v4757, %v4016
        %v4759 = vmax.f32 %v4758, %v4020
        %v4760 = vmax.f32 %v4759, %v4026
        %v4761 = vmax.f32 %v4760, %v4030
        %v4762 = vmax.f32 %v4761, %v4036
        %v4763 = vmax.f32 %v4762, %v4040
        %v4764 = vmax.f32 %v4763, %v4046
        %v4765 = vmax.f32 %v4764, %v4050
        %v4766 = vmax.f32 %v4765, %v4056
        %v4767 = vmax.f32 %v4766, %v4060
        %v4768 = vmax.f32 %v4767, %v4066
        %v4769 = vmax.f32 %v4768, %v4070
        %v4770 = vmax.f32 %v4769, %v4076
        %v4771 = vmax.f32 %v4770, %v4080
        %v4772 = vmax.f32 %v4771, %v4086
        %v4773 = vmax.f32 %v4772, %v4090
        %v4774 = vmax.f32 %v4773, %v4096
        %v4775 = vmax.f32 %v4774, %v4100
        %v4776 = vmax.f32 %v4775, %v4106
        %v4777 = vmax.f32 %v4776, %v4110
        %v4778 = vmax.f32 %v4777, %v4116
        %v4779 = vmax.f32 %v4778, %v4120
        %v4780 = vmax.f32 %v4779, %v4126
        %v4781 = vmax.f32 %v4780, %v4130
        %v4782 = vmax.f32 %v4781, %v4136
        %v4783 = vmax.f32 %v4782, %v4140
        %v4784 = vmax.f32 %v4783, %v4146
        %v4785 = vmax.f32 %v4784, %v4150
        %v4786 = vmax.f32 %v4785, %v4156
        %v4787 = vmax.f32 %v4786, %v4160
        %v4788 = vmax.f32 %v4787, %v4166
        %v4789 = vmax.f32 %v4788, %v4170
        %v4790 = vmax.f32 %v4789, %v4176
        %v4791 = vmax.f32 %v4790, %v4180
        %v4792 = vmax.f32 %v4791, %v4186
        %v4793 = vmax.f32 %v4792, %v4190
        %v4794 = vmax.f32 %v4793, %v4196
        %v4795 = vmax.f32 %v4794, %v4200
        %v4796 = vmax.f32 %v4795, %v4206
        %v4797 = vmax.f32 %v4796, %v4210
        %v4798 = vmax.f32 %v4797, %v4216
        %v4799 = vmax.f32 %v4798, %v4220
        %v4800 = vmax.f32 %v4799, %v4226
        %v4801 = vmax.f32 %v4800, %v4230
        %v4802 = vmax.f32 %v4801, %v4236
        %v4803 = vmax.f32 %v4802, %v4240
        %v4804 = vmax.f32 %v4803, %v4246
        %v4805 = vmax.f32 %v4804, %v4250
        %v4806 = vmax.f32 %v4805, %v4256
        %v4807 = vmax.f32 %v4806, %v4260
        %v4808 = vrot.slane %v4807, 4
        %v4809 = vmax.f32 %v4807, %v4808
        %v4810 = vrot.slane %v4809, 2
        %v4811 = vmax.f32 %v4809, %v4810
        %v4812 = vrot.slane %v4811, 1
        %v4813 = vmax.f32 %v4811, %v4812
        %p4814 = scmp.eq.s32.totalorder %s31, 0
        // Predicated region
        $region49: #{tpu_custom_call.1} parent=47 // pred_check
          %p4815 = pneg %p4814
        $region50: #{tpu_custom_call.1} parent=47 // pred_check_branch
          %4817 = sbr.rel (%p4815) target = $region52
        $region51: #{tpu_custom_call.1} parent=47 // pred_region
          %4818 = vst [vmem:[%s334] sm:$0xff] -inf
        $region52: #{tpu_custom_call.1} parent=47 // pred_fallthru
          _
        %v4819 = vld [vmem:[%s334] sm:$0xff]
        %v4828 = vcombine.low %v4330, %v4399
        %v4829 = vcombine.low %v4468, %v4537
        %v4830 = vcombine.low %v4606, %v4675
        %v4831 = vcombine.low %v4744, %v4813
        %v4833 = vunpack.c.l.s4 1966171168
        %v4834 = vunpack.c.0.s8 %v4833
        %v4835 = vlaneseq
        %v4836 = vshrl.u32 %v4835, 7
        %v4837 = vsub.s32 %v4834, %v4836
        %v4838 = vrot.slane %v4828, %v4837
        %v4840 = vunpack.c.l.s4 1966171168
        %v4841 = vunpack.c.0.s8 %v4840
        %v4842 = vlaneseq
        %v4843 = vshrl.u32 %v4842, 7
        %v4844 = vsub.s32 %v4841, %v4843
        %v4845 = vrot.slane %v4829, %v4844
        %v4847 = vunpack.c.l.s4 1966171168
        %v4848 = vunpack.c.0.s8 %v4847
        %v4849 = vlaneseq
        %v4850 = vshrl.u32 %v4849, 7
        %v4851 = vsub.s32 %v4848, %v4850
        %v4852 = vrot.slane %v4830, %v4851
        %v4854 = vunpack.c.l.s4 1966171168
        %v4855 = vunpack.c.0.s8 %v4854
        %v4856 = vlaneseq
        %v4857 = vshrl.u32 %v4856, 7
        %v4858 = vsub.s32 %v4855, %v4857
        %v4859 = vrot.slane %v4831, %v4858
        %v4860 = vcombine.low %v4838, %v4845
        %v4861 = vcombine.low %v4852, %v4859
        %v4863 = vunpack.c.l.s4 1966171168
        %v4864 = vunpack.c.0.s8 %v4863
        %v4865 = vlaneseq
        %v4866 = vshrl.u32 %v4865, 7
        %v4867 = vsub.s32 %v4864, %v4866
        %v4868 = vrot.slane %v4860, %v4867
        %v4870 = vunpack.c.l.s4 1966171168
        %v4871 = vunpack.c.0.s8 %v4870
        %v4872 = vlaneseq
        %v4873 = vshrl.u32 %v4872, 7
        %v4874 = vsub.s32 %v4871, %v4873
        %v4875 = vrot.slane %v4861, %v4874
        %v4876 = vcombine.low %v4868, %v4875
        %v4878 = vmax.f32 %v4819, %v4876
        %4879 = vst [vmem:[%s334] sm:$0xff] %v4878
        %s4880 = sand.u32 %s202, 1
        %s4881 = scalar_lea.sflag [#allocation3], %s4880
        %s4882 = sand.u32 %s202, 1
        %s4883 = smul.addr %s4882, 256
        %s4884 = scalar_lea.vmem [#allocation2], %s4883
        %s4885 = sand.u32 %s228, 1
        %s4886 = scalar_lea.sflag [#allocation5], %s4885
        %s4887 = sand.u32 %s228, 1
        %s4888 = smul.addr %s4887, 8
        %s4889 = scalar_lea.vmem [#allocation4], %s4888
        // Predicated region
        $region53: #{tpu_custom_call.1} parent=47 // pred_check
          %p4890 = pneg %p212
        $region54: #{tpu_custom_call.1} parent=47 // pred_check_branch
          %4892 = sbr.rel (%p4890) target = $region56
        $region55: #{tpu_custom_call.1} parent=47 // pred_region
          %s4893 = smul.u32 4, %s31
          %s4895 = ssub.s32 4096, 4096
          %4896 = vsyncadd %s4881, %s4895
          %s4897 = smul.addr %s30, 32
          %s4898 = sadd.s32 %s4893, %s4897
          %s4899 = smul.addr %s4898, 128
          %s4900 = scalar_lea.hbm %s7, %s4899
          %s4901 = sshll.u32 %s4884, 4
          %s4902 = int_to_ptr.vmem [resolvable:$true] %s4901
          %4907 = dma.vmem_to_hbm [thread:$0]  %s4902, 4096, %s4900, %s4881, 512, 512, 32
        $region56: #{tpu_custom_call.1} parent=47 // pred_fallthru
          _
        // Predicated region
        $region57: #{tpu_custom_call.1} parent=47 // pred_check
          %p4908 = pneg %p238
        $region58: #{tpu_custom_call.1} parent=47 // pred_check_branch
          %4910 = sbr.rel (%p4908) target = $region60
        $region59: #{tpu_custom_call.1} parent=47 // pred_region
          %s4912 = ssub.s32 128, 128
          %4913 = vsyncadd %s4886, %s4912
          %s4914 = smul.addr %s30, 8
          %s4915 = smul.addr %s4914, 16
          %s4916 = scalar_lea.hbm %s8, %s4915
          %s4918 = sshll.u32 %s4889, 4
          %s4919 = int_to_ptr.vmem [resolvable:$true] %s4918
          %4921 = dma.vmem_to_hbm [thread:$0]  %s4919, 128, %s4916, %s4886
        $region60: #{tpu_custom_call.1} parent=47 // pred_fallthru
          _
      $region48: #{tpu_custom_call.1} parent=5 // pred_fallthru
        _
      %p4922 = scmp.le.s32.totalorder 2, %s21
      // Predicated region
      $region61: #{tpu_custom_call.1} parent=5 // pred_check
        %p4923 = pneg %p4922
      $region62: #{tpu_custom_call.1} parent=5 // pred_check_branch
        %4925 = sbr.rel (%p4923) target = $region64
      $region63: #{tpu_custom_call.1} parent=5 // pred_region
        %s4926 = ssub.s32 %s21, 2
        // Predicated region
        $region65: #{tpu_custom_call.1} parent=63 // pred_check
          %p4927 = pneg %p218
        $region66: #{tpu_custom_call.1} parent=63 // pred_check_branch
          %4929 = sbr.rel (%p4927) target = $region68
        $region67: #{tpu_custom_call.1} parent=63 // pred_region
          %s4930 = sand.u32 %s203, 1
          %s4931 = scalar_lea.sflag [#allocation3], %s4930
          %s4932 = sand.u32 %s203, 1
          %s4933 = smul.addr %s4932, 256
          %s4934 = scalar_lea.vmem [#allocation2], %s4933
          %4935 = dma.done %s4931, 4096
        $region68: #{tpu_custom_call.1} parent=63 // pred_fallthru
          _
        // Predicated region
        $region69: #{tpu_custom_call.1} parent=63 // pred_check
          %p4936 = pneg %p244
        $region70: #{tpu_custom_call.1} parent=63 // pred_check_branch
          %4938 = sbr.rel (%p4936) target = $region72
        $region71: #{tpu_custom_call.1} parent=63 // pred_region
          %s4939 = sand.u32 %s229, 1
          %s4940 = scalar_lea.sflag [#allocation5], %s4939
          %s4941 = sand.u32 %s229, 1
          %s4942 = smul.addr %s4941, 8
          %s4943 = scalar_lea.vmem [#allocation4], %s4942
          %4944 = dma.done %s4940, 128
        $region72: #{tpu_custom_call.1} parent=63 // pred_fallthru
          _
      $region64: #{tpu_custom_call.1} parent=5 // pred_fallthru
        _
    $region6: #{tpu_custom_call.1} parent=1 // loop_footer
      %s25 = sadd.s32 1, %s21
    $region7: #{tpu_custom_call.1} parent=1 // loop_footer_branch
      %20 = sbr.rel target = $region3
    $region8: #{tpu_custom_call.1} parent=1 // loop_exit
      _
    %4945 = vsyncpa [#allocation3], 1
    %s4946 = scalar_lea.sflag [#allocation3], 1
    %4947 = vsyncpa %s4946, 1
    %4948 = vsyncpa [#allocation5], 1
    %s4949 = scalar_lea.sflag [#allocation5], 1
    %4950 = vsyncpa %s4949, 1

</llo_original>
